<compile_context>
chip_gen: v7x
topology: tpu7x:2x2x1
jax: 0.10.0
libtpu: 0.0.40
codegen_flags: <defaults>
</compile_context>

<pallas_src>
import functools
import math

import jax
import jax.numpy as jnp
from jax import lax
from jax.experimental import pallas as pl
from jax.experimental.pallas import tpu as pltpu


VMEM_LIMIT_BYTES = 48 * 1024 * 1024   # fits v7x (64 MiB) with headroom; > default scoped on v5e/v6e


# ----------------------------- small helpers -------------------------------

def _layernorm_f32(x, g, b, eps=1e-5):
    """LayerNorm with statistics in f32; returns f32."""
    xf = x.astype(jnp.float32)
    mu = jnp.mean(xf, axis=-1, keepdims=True)
    var = jnp.mean((xf - mu) ** 2, axis=-1, keepdims=True)
    return (xf - mu) * lax.rsqrt(var + eps) * g + b


def _gelu_tanh(x):
    # matches nn.GELU(approximate='tanh')
    return 0.5 * x * (1.0 + jnp.tanh(0.7978845608028654 * (x + 0.044715 * x * x * x)))


def _seq_tile(n, target):
    """Largest 'nice' tile: target if it divides n, else the full dimension."""
    return target if (n % target == 0) else n


def _compiler_params(dims):
    return pltpu.CompilerParams(dimension_semantics=dims,
                                vmem_limit_bytes=VMEM_LIMIT_BYTES)


# --------------------- kernel 1: LN1 + QKV projection ----------------------

def ln_qkv_kernel(x_ref, g_ref, b_ref, w_ref, bias_ref, q_ref, k_ref, v_ref, *, n_head):
    C = x_ref.shape[-1]
    D = C // n_head
    h = _layernorm_f32(x_ref[0], g_ref[...], b_ref[...]).astype(jnp.bfloat16)
    qkv = jnp.dot(h, w_ref[...], preferred_element_type=jnp.float32) + bias_ref[...]
    qkv = qkv.astype(jnp.bfloat16)                        # (TT, 3C)
    # Split into per-head (H, TT, D) layout once, here (not in the attention inner loop).
    for hh in range(n_head):
        q_ref[0, hh] = qkv[:, hh * D:(hh + 1) * D]
        k_ref[0, hh] = qkv[:, C + hh * D:C + (hh + 1) * D]
        v_ref[0, hh] = qkv[:, 2 * C + hh * D:2 * C + (hh + 1) * D]


def ln_qkv_call(x, g, b, w, bias, n_head, tt):
    B, T, C = x.shape
    H, D = n_head, C // n_head
    kern = functools.partial(ln_qkv_kernel, n_head=n_head)
    out_sd = jax.ShapeDtypeStruct((B, H, T, D), jnp.bfloat16)
    qkv_spec = pl.BlockSpec((1, H, tt, D), lambda bi, ti: (bi, 0, ti, 0))
    cost = pl.CostEstimate(
        flops=2 * B * T * C * 3 * C,
        transcendentals=B * T,
        bytes_accessed=B * T * C * 2 + C * 3 * C * 2 + 3 * C * 4 + 2 * C * 4 + 3 * B * T * C * 2)
    return pl.pallas_call(
        kern,
        out_shape=(out_sd, out_sd, out_sd),
        grid=(B, T // tt),
        in_specs=[
            pl.BlockSpec((1, tt, C), lambda bi, ti: (bi, ti, 0)),
            pl.BlockSpec((1, C), lambda bi, ti: (0, 0)),
            pl.BlockSpec((1, C), lambda bi, ti: (0, 0)),
            pl.BlockSpec((C, 3 * C), lambda bi, ti: (0, 0)),
            pl.BlockSpec((1, 3 * C), lambda bi, ti: (0, 0)),
        ],
        out_specs=(qkv_spec, qkv_spec, qkv_spec),
        compiler_params=_compiler_params(("parallel", "parallel")),
        cost_estimate=cost,
    )(x, g, b, w, bias)


# ------- kernel 2: flash-style causal attention + proj + residual ----------

def attn_kernel(x_ref, q_ref, k_ref, v_ref, wp_ref, bp_ref, o_ref,
                m_sc, l_sc, acc_sc, *, tq, tk, scale):
    qi = pl.program_id(1)
    ki = pl.program_id(2)
    nk = pl.num_programs(2)

    @pl.when(ki == 0)
    def _init():
        m_sc[...] = jnp.full_like(m_sc, -jnp.inf)
        l_sc[...] = jnp.zeros_like(l_sc)
        acc_sc[...] = jnp.zeros_like(acc_sc)

    # Skip KV tiles that are entirely in the causal-masked future.
    @pl.when(ki * tk <= qi * tq + (tq - 1))
    def _compute():
        q = q_ref[0]                                       # (H, TQ, D) bf16
        k = k_ref[0]                                       # (H, TK, D) bf16
        v = v_ref[0]                                       # (H, TK, D) bf16
        s = jnp.einsum('hqd,hkd->hqk', q, k,
                       preferred_element_type=jnp.float32) * scale
        row = qi * tq + lax.broadcasted_iota(jnp.int32, (tq, tk), 0)
        col = ki * tk + lax.broadcasted_iota(jnp.int32, (tq, tk), 1)
        mask = (col <= row)[None, :, :]                    # (1, TQ, TK)
        s = jnp.where(mask, s, -1e30)
        m_prev = m_sc[...]
        m_new = jnp.maximum(m_prev, jnp.max(s, axis=-1, keepdims=True))
        alpha = jnp.exp(m_prev - m_new)
        p = jnp.exp(s - m_new)
        p = jnp.where(mask, p, 0.0)
        l_sc[...] = alpha * l_sc[...] + jnp.sum(p, axis=-1, keepdims=True)
        acc_sc[...] = alpha * acc_sc[...] + jnp.einsum(
            'hqk,hkd->hqd', p.astype(jnp.bfloat16), v,
            preferred_element_type=jnp.float32)
        m_sc[...] = m_new

    @pl.when(ki == nk - 1)
    def _finalize():
        inv_l = pl.reciprocal(l_sc[...], approx=True)      # EUP, off the VPU path
        y = (acc_sc[...] * inv_l).astype(jnp.bfloat16)     # (H, TQ, D)
        # Per-head accumulated output projection: sum_h y_h @ Wproj[h*D:(h+1)*D, :]
        proj_h = jnp.einsum('hqd,hdc->hqc', y, wp_ref[...],
                            preferred_element_type=jnp.float32)
        proj = jnp.sum(proj_h, axis=0) + bp_ref[...]       # (TQ, C) f32
        o_ref[0] = (x_ref[0].astype(jnp.float32) + proj).astype(o_ref.dtype)


def attention_residual(x, q, k, v, w_proj_hdc, b_proj, *, tq, tk):
    B, T, C = x.shape
    H, D = q.shape[1], q.shape[3]
    scale = 1.0 / math.sqrt(D)
    kern = functools.partial(attn_kernel, tq=tq, tk=tk, scale=scale)
    cost = pl.CostEstimate(
        flops=4 * B * H * T * T * D + 2 * B * T * C * C,
        transcendentals=2 * B * H * T * T,
        bytes_accessed=2 * B * T * C * 2 + 3 * B * T * C * 2 + H * D * C * 2 + C * 4)
    return pl.pallas_call(
        kern,
        out_shape=jax.ShapeDtypeStruct((B, T, C), x.dtype),
        grid=(B, T // tq, T // tk),
        in_specs=[
            pl.BlockSpec((1, tq, C), lambda bi, qi, ki: (bi, qi, 0)),
            pl.BlockSpec((1, H, tq, D), lambda bi, qi, ki: (bi, 0, qi, 0)),
            pl.BlockSpec((1, H, tk, D), lambda bi, qi, ki: (bi, 0, ki, 0)),
            pl.BlockSpec((1, H, tk, D), lambda bi, qi, ki: (bi, 0, ki, 0)),
            pl.BlockSpec((H, D, C), lambda bi, qi, ki: (0, 0, 0)),
            pl.BlockSpec((1, C), lambda bi, qi, ki: (0, 0)),
        ],
        out_specs=pl.BlockSpec((1, tq, C), lambda bi, qi, ki: (bi, qi, 0)),
        scratch_shapes=[
            pltpu.VMEM((H, tq, 1), jnp.float32),   # m (running max)
            pltpu.VMEM((H, tq, 1), jnp.float32),   # l (running denom)
            pltpu.VMEM((H, tq, D), jnp.float32),   # acc
        ],
        compiler_params=_compiler_params(("parallel", "parallel", "arbitrary")),
        cost_estimate=cost,
    )(x, q, k, v, w_proj_hdc, b_proj)


# --------------------- kernel 3: LN2 + MLP + residual ----------------------

def mlp_kernel(x_ref, g_ref, b_ref, wfc_ref, bfc_ref, wfp_ref, bfp_ref, o_ref):
    x = x_ref[0]                                           # (TT, C) bf16
    h = _layernorm_f32(x, g_ref[...], b_ref[...]).astype(jnp.bfloat16)
    ff = jnp.dot(h, wfc_ref[...], preferred_element_type=jnp.float32) + bfc_ref[...]
    ff = _gelu_tanh(ff).astype(jnp.bfloat16)               # GELU in f32, feed bf16 to MXU
    ff = jnp.dot(ff, wfp_ref[...], preferred_element_type=jnp.float32) + bfp_ref[...]
    o_ref[0] = (x.astype(jnp.float32) + ff).astype(o_ref.dtype)


def mlp_residual(x, g, b, wfc, bfc, wfp, bfp, tt):
    B, T, C = x.shape
    cost = pl.CostEstimate(
        flops=16 * B * T * C * C,
        transcendentals=B * T * (4 * C + 1),
        bytes_accessed=2 * B * T * C * 2 + 8 * C * C * 2 + 5 * C * 4)
    return pl.pallas_call(
        mlp_kernel,
        out_shape=jax.ShapeDtypeStruct((B, T, C), x.dtype),
        grid=(B, T // tt),
        in_specs=[
            pl.BlockSpec((1, tt, C), lambda bi, ti: (bi, ti, 0)),
            pl.BlockSpec((1, C), lambda bi, ti: (0, 0)),
            pl.BlockSpec((1, C), lambda bi, ti: (0, 0)),
            pl.BlockSpec((C, 4 * C), lambda bi, ti: (0, 0)),
            pl.BlockSpec((1, 4 * C), lambda bi, ti: (0, 0)),
            pl.BlockSpec((4 * C, C), lambda bi, ti: (0, 0)),
            pl.BlockSpec((1, C), lambda bi, ti: (0, 0)),
        ],
        out_specs=pl.BlockSpec((1, tt, C), lambda bi, ti: (bi, ti, 0)),
        compiler_params=_compiler_params(("parallel", "parallel")),
        cost_estimate=cost,
    )(x, g, b, wfc, bfc, wfp, bfp)


# ------------------ final ln_f + tied lm_head (tiled) -----------------------

def head_kernel(x_ref, g_ref, b_ref, w_ref, o_ref):
    h = _layernorm_f32(x_ref[...], g_ref[...], b_ref[...]).astype(jnp.bfloat16)
    # logits = h @ wte.T, contracted in place (no transposed wte copy in HBM).
    o_ref[...] = lax.dot_general(h, w_ref[...], (((1,), (1,)), ((), ())),
                                 preferred_element_type=jnp.float32)


def lm_head_call(x2d, g, b, wte, tm, tv):
    N, C = x2d.shape
    V = wte.shape[0]
    cost = pl.CostEstimate(
        flops=2 * N * C * V,
        transcendentals=N,
        bytes_accessed=N * C * 2 + V * C * 2 + N * V * 4)
    return pl.pallas_call(
        head_kernel,
        out_shape=jax.ShapeDtypeStruct((N, V), jnp.float32),
        grid=(N // tm, V // tv),
        in_specs=[
            pl.BlockSpec((tm, C), lambda i, j: (i, 0)),
            pl.BlockSpec((1, C), lambda i, j: (0, 0)),
            pl.BlockSpec((1, C), lambda i, j: (0, 0)),
            pl.BlockSpec((tv, C), lambda i, j: (j, 0)),
        ],
        out_specs=pl.BlockSpec((tm, tv), lambda i, j: (i, j)),
        compiler_params=_compiler_params(("parallel", "parallel")),
        cost_estimate=cost,
    )(x2d, g, b, wte)


# ------------------------------ model wrapper -------------------------------

def init_params(key, cfg):
    V, BS, L, C = cfg['vocab_size'], cfg['block_size'], cfg['n_layer'], cfg['n_embd']
    std = 0.02
    std_proj = 0.02 * (2 * L) ** -0.5            # NANOGPT_SCALE_INIT on attn.c_proj
    keys = iter(jax.random.split(key, 6 * L + 4))
    bf16 = jnp.bfloat16

    params = {
        'wte': (std * jax.random.normal(next(keys), (V, C), jnp.float32)).astype(bf16),
        'wpe': (std * jax.random.normal(next(keys), (BS, C), jnp.float32)).astype(bf16),
        'lnf_g': jnp.ones((1, C), jnp.float32),
        'lnf_b': jnp.zeros((1, C), jnp.float32),
        'blocks': [],
    }
    for _ in range(L):
        blk = {
            'ln1_g': jnp.ones((1, C), jnp.float32),
            'ln1_b': jnp.zeros((1, C), jnp.float32),
            'w_attn': (std * jax.random.normal(next(keys), (C, 3 * C), jnp.float32)).astype(bf16),
            'b_attn': jnp.zeros((1, 3 * C), jnp.float32),
            'w_proj': (std_proj * jax.random.normal(next(keys), (C, C), jnp.float32)).astype(bf16),
            'b_proj': jnp.zeros((1, C), jnp.float32),
            'ln2_g': jnp.ones((1, C), jnp.float32),
            'ln2_b': jnp.zeros((1, C), jnp.float32),
            'w_fc': (std * jax.random.normal(next(keys), (C, 4 * C), jnp.float32)).astype(bf16),
            'b_fc': jnp.zeros((1, 4 * C), jnp.float32),
            'w_fcproj': (std * jax.random.normal(next(keys), (4 * C, C), jnp.float32)).astype(bf16),
            'b_fcproj': jnp.zeros((1, C), jnp.float32),
        }
        params['blocks'].append(blk)
    return params


def transformer_block(x, p, n_head, tt):
    B, T, C = x.shape
    H, D = n_head, C // n_head
    q, k, v = ln_qkv_call(x, p['ln1_g'], p['ln1_b'], p['w_attn'], p['b_attn'], n_head, tt)
    # w_proj reshaped (C, C) -> (H, D, C) is a free contiguous reshape (no transpose copy).
    x = attention_residual(x, q, k, v, p['w_proj'].reshape(H, D, C), p['b_proj'],
                           tq=tt, tk=tt)
    x = mlp_residual(x, p['ln2_g'], p['ln2_b'], p['w_fc'], p['b_fc'],
                     p['w_fcproj'], p['b_fcproj'], tt)
    return x


def gpt_forward(idx, params, cfg):
    B, T = idx.shape
    C, H, V = cfg['n_embd'], cfg['n_head'], cfg['vocab_size']
    tok_emb = jnp.take(params['wte'], idx, axis=0)        # (B, T, C) gather (plain-JAX glue)
    pos_emb = params['wpe'][:T]                           # (T, C)
    x = (tok_emb + pos_emb[None, :, :]).astype(jnp.bfloat16)

    tt = _seq_tile(T, 128)                                # sequence tile (Q and KV)
    for blk in params['blocks']:
        x = transformer_block(x, blk, H, tt)

    x2 = x.reshape(B * T, C)
    tm = _seq_tile(B * T, 128)
    tv = _seq_tile(V, 512)                                # lane-dense vocab tile
    logits = lm_head_call(x2, params['lnf_g'], params['lnf_b'], params['wte'], tm, tv)
    return logits.reshape(B, T, V)
    # TODO(synk): cross-entropy loss path (targets is not None) not implemented.


# ------------------------------ pure-JAX reference ---------------------------

def gpt_reference(idx, params, cfg):
    f32 = lambda a: a.astype(jnp.float32)
    B, T = idx.shape
    C, H = cfg['n_embd'], cfg['n_head']
    D = C // H
    x = f32(params['wte'])[idx] + f32(params['wpe'])[:T][None]
    causal = jnp.tril(jnp.ones((T, T), bool))
    for p in params['blocks']:
        h = _layernorm_f32(x, p['ln1_g'], p['ln1_b'])
        qkv = h @ f32(p['w_attn']) + p['b_attn']
        q, k, v = jnp.split(qkv, 3, axis=-1)
        q = q.reshape(B, T, H, D).transpose(0, 2, 1, 3)
        k = k.reshape(B, T, H, D).transpose(0, 2, 1, 3)
        v = v.reshape(B, T, H, D).transpose(0, 2, 1, 3)
        att = jnp.einsum('bhtd,bhsd->bhts', q, k) / math.sqrt(D)
        att = jnp.where(causal, att, -1e30)
        att = jax.nn.softmax(att, axis=-1)
        y = jnp.einsum('bhts,bhsd->bhtd', att, v).transpose(0, 2, 1, 3).reshape(B, T, C)
        x = x + (y @ f32(p['w_proj']) + p['b_proj'])
        h2 = _layernorm_f32(x, p['ln2_g'], p['ln2_b'])
        ff = _gelu_tanh(h2 @ f32(p['w_fc']) + p['b_fc'])
        x = x + (ff @ f32(p['w_fcproj']) + p['b_fcproj'])
    x = _layernorm_f32(x, params['lnf_g'], params['lnf_b'])
    return x @ f32(params['wte']).T


# ------------------------------------ main -----------------------------------

if __name__ == "__main__":
    cfg = dict(vocab_size=512, block_size=64, n_layer=2, n_head=4, n_embd=32)
    B, T = 2, 8

    key = jax.random.PRNGKey(0)
    kp, ki = jax.random.split(key)
    params = init_params(kp, cfg)
    idx = jax.random.randint(ki, (B, T), 0, cfg['vocab_size'], dtype=jnp.int32)

    forward = jax.jit(lambda idx_, params_: gpt_forward(idx_, params_, cfg))
    logits = forward(idx, params)
    logits = jax.block_until_ready(logits)

    ref = gpt_reference(idx, params, cfg)
    assert logits.shape == (B, T, cfg['vocab_size'])
    assert bool(jnp.all(jnp.isfinite(logits)))
    assert bool(jnp.allclose(logits.astype(jnp.float32), ref, atol=3e-2, rtol=0)), \
        "mismatch vs reference"

    print("KERNEL_OK")
</pallas_src>

<mosaic_0001>
module attributes {stable_mosaic.version = 11 : i64} {
  func.func @mlp_kernel(%arg0: i32, %arg1: i32, %arg2: memref<1x8x32xbf16, #tpu.memory_space<vmem>>, %arg3: memref<1x32xf32, #tpu.memory_space<vmem>>, %arg4: memref<1x32xf32, #tpu.memory_space<vmem>>, %arg5: memref<32x128xbf16, #tpu.memory_space<vmem>>, %arg6: memref<1x128xf32, #tpu.memory_space<vmem>>, %arg7: memref<128x32xbf16, #tpu.memory_space<vmem>>, %arg8: memref<1x32xf32, #tpu.memory_space<vmem>>, %arg9: memref<1x8x32xbf16, #tpu.memory_space<vmem>>) attributes {dimension_semantics = [#tpu.dimension_semantics<parallel>, #tpu.dimension_semantics<parallel>], iteration_bounds = array<i64: 2, 1>, scalar_prefetch = 0 : i64, scratch_operands = 0 : i64, tpu.core_type = #tpu.core_type<tc>, window_params = [{transform_indices = @transform_0, window_bounds = array<i64: 1, 8, 32>}, {pipeline_mode = #tpu.pipeline_mode<synchronous>, transform_indices = @transform_1, window_bounds = array<i64: 1, 32>}, {pipeline_mode = #tpu.pipeline_mode<synchronous>, transform_indices = @transform_2, window_bounds = array<i64: 1, 32>}, {pipeline_mode = #tpu.pipeline_mode<synchronous>, transform_indices = @transform_3, window_bounds = array<i64: 32, 128>}, {pipeline_mode = #tpu.pipeline_mode<synchronous>, transform_indices = @transform_4, window_bounds = array<i64: 1, 128>}, {pipeline_mode = #tpu.pipeline_mode<synchronous>, transform_indices = @transform_5, window_bounds = array<i64: 128, 32>}, {pipeline_mode = #tpu.pipeline_mode<synchronous>, transform_indices = @transform_6, window_bounds = array<i64: 1, 32>}, {transform_indices = @transform_7, window_bounds = array<i64: 1, 8, 32>}]} {
    %c0 = arith.constant 0 : index
    %c0_0 = arith.constant 0 : index
    %c0_1 = arith.constant 0 : index
    %0 = vector.load %arg2[%c0, %c0_0, %c0_1] : memref<1x8x32xbf16, #tpu.memory_space<vmem>>, vector<1x8x32xbf16>
    %1 = vector.shape_cast %0 : vector<1x8x32xbf16> to vector<8x32xbf16>
    %c0_2 = arith.constant 0 : index
    %c0_3 = arith.constant 0 : index
    %2 = vector.load %arg3[%c0_2, %c0_3] : memref<1x32xf32, #tpu.memory_space<vmem>>, vector<1x32xf32>
    %c0_4 = arith.constant 0 : index
    %c0_5 = arith.constant 0 : index
    %3 = vector.load %arg4[%c0_4, %c0_5] : memref<1x32xf32, #tpu.memory_space<vmem>>, vector<1x32xf32>
    %4 = arith.extf %1 : vector<8x32xbf16> to vector<8x32xf32>
    %cst = arith.constant dense<0.000000e+00> : vector<8xf32>
    %5 = vector.multi_reduction <add>, %4, %cst [1] : vector<8x32xf32> to vector<8xf32>
    %6 = vector.shape_cast %5 : vector<8xf32> to vector<8x1xf32>
    %cst_6 = arith.constant 3.200000e+01 : f32
    %7 = vector.broadcast %cst_6 : f32 to vector<8x1xf32>
    %8 = arith.divf %6, %7 : vector<8x1xf32>
    %9 = vector.broadcast %8 : vector<8x1xf32> to vector<8x32xf32>
    %10 = arith.subf %4, %9 : vector<8x32xf32>
    %11 = arith.mulf %10, %10 : vector<8x32xf32>
    %cst_7 = arith.constant dense<0.000000e+00> : vector<8xf32>
    %12 = vector.multi_reduction <add>, %11, %cst_7 [1] : vector<8x32xf32> to vector<8xf32>
    %13 = vector.shape_cast %12 : vector<8xf32> to vector<8x1xf32>
    %cst_8 = arith.constant 3.200000e+01 : f32
    %14 = vector.broadcast %cst_8 : f32 to vector<8x1xf32>
    %15 = arith.divf %13, %14 : vector<8x1xf32>
    %16 = vector.broadcast %8 : vector<8x1xf32> to vector<8x32xf32>
    %17 = arith.subf %4, %16 : vector<8x32xf32>
    %cst_9 = arith.constant 9.99999974E-6 : f32
    %18 = vector.broadcast %cst_9 : f32 to vector<8x1xf32>
    %19 = arith.addf %15, %18 : vector<8x1xf32>
    %20 = math.rsqrt %19 : vector<8x1xf32>
    %21 = vector.broadcast %20 : vector<8x1xf32> to vector<8x32xf32>
    %22 = arith.mulf %17, %21 : vector<8x32xf32>
    %23 = vector.broadcast %2 : vector<1x32xf32> to vector<8x32xf32>
    %24 = arith.mulf %22, %23 : vector<8x32xf32>
    %25 = vector.broadcast %3 : vector<1x32xf32> to vector<8x32xf32>
    %26 = arith.addf %24, %25 : vector<8x32xf32>
    %27 = arith.truncf %26 : vector<8x32xf32> to vector<8x32xbf16>
    %c0_10 = arith.constant 0 : index
    %c0_11 = arith.constant 0 : index
    %28 = vector.load %arg5[%c0_10, %c0_11] : memref<32x128xbf16, #tpu.memory_space<vmem>>, vector<32x128xbf16>
    %cst_12 = arith.constant dense<0.000000e+00> : vector<8x128xf32>
    %29 = tpu.matmul %27, %28, %cst_12 {dimension_numbers = #tpu.dot_dimension_numbers<[1], [0], [0], [1], [0, 0, 1, 1], [], []>} : vector<8x32xbf16>, vector<32x128xbf16>, vector<8x128xf32> -> vector<8x128xf32>
    %c0_13 = arith.constant 0 : index
    %c0_14 = arith.constant 0 : index
    %30 = vector.load %arg6[%c0_13, %c0_14] : memref<1x128xf32, #tpu.memory_space<vmem>>, vector<1x128xf32>
    %31 = vector.broadcast %30 : vector<1x128xf32> to vector<8x128xf32>
    %32 = arith.addf %29, %31 : vector<8x128xf32>
    %cst_15 = arith.constant 5.000000e-01 : f32
    %33 = vector.broadcast %cst_15 : f32 to vector<8x128xf32>
    %34 = arith.mulf %33, %32 : vector<8x128xf32>
    %cst_16 = arith.constant 4.471500e-02 : f32
    %35 = vector.broadcast %cst_16 : f32 to vector<8x128xf32>
    %36 = arith.mulf %35, %32 : vector<8x128xf32>
    %37 = arith.mulf %36, %32 : vector<8x128xf32>
    %38 = arith.mulf %37, %32 : vector<8x128xf32>
    %39 = arith.addf %32, %38 : vector<8x128xf32>
    %cst_17 = arith.constant 0.797884583 : f32
    %40 = vector.broadcast %cst_17 : f32 to vector<8x128xf32>
    %41 = arith.mulf %40, %39 : vector<8x128xf32>
    %42 = math.tanh %41 : vector<8x128xf32>
    %cst_18 = arith.constant 1.000000e+00 : f32
    %43 = vector.broadcast %cst_18 : f32 to vector<8x128xf32>
    %44 = arith.addf %43, %42 : vector<8x128xf32>
    %45 = arith.mulf %34, %44 : vector<8x128xf32>
    %46 = arith.truncf %45 : vector<8x128xf32> to vector<8x128xbf16>
    %c0_19 = arith.constant 0 : index
    %c0_20 = arith.constant 0 : index
    %47 = vector.load %arg7[%c0_19, %c0_20] : memref<128x32xbf16, #tpu.memory_space<vmem>>, vector<128x32xbf16>
    %cst_21 = arith.constant dense<0.000000e+00> : vector<8x32xf32>
    %48 = tpu.matmul %46, %47, %cst_21 {dimension_numbers = #tpu.dot_dimension_numbers<[1], [0], [0], [1], [0, 0, 1, 1], [], []>} : vector<8x128xbf16>, vector<128x32xbf16>, vector<8x32xf32> -> vector<8x32xf32>
    %c0_22 = arith.constant 0 : index
    %c0_23 = arith.constant 0 : index
    %49 = vector.load %arg8[%c0_22, %c0_23] : memref<1x32xf32, #tpu.memory_space<vmem>>, vector<1x32xf32>
    %50 = vector.broadcast %49 : vector<1x32xf32> to vector<8x32xf32>
    %51 = arith.addf %48, %50 : vector<8x32xf32>
    %52 = arith.extf %1 : vector<8x32xbf16> to vector<8x32xf32>
    %53 = arith.addf %52, %51 : vector<8x32xf32>
    %54 = arith.truncf %53 : vector<8x32xf32> to vector<8x32xbf16>
    %c0_24 = arith.constant 0 : index
    %c0_25 = arith.constant 0 : index
    %c0_26 = arith.constant 0 : index
    %55 = vector.load %arg9[%c0_24, %c0_25, %c0_26] : memref<1x8x32xbf16, #tpu.memory_space<vmem>>, vector<1x8x32xbf16>
    %56 = vector.shape_cast %55 : vector<1x8x32xbf16> to vector<8x32xbf16>
    %57 = vector.shape_cast %54 : vector<8x32xbf16> to vector<1x8x32xbf16>
    tpu.vector_store %arg9[%c0_24, %c0_25, %c0_26], %57 {strides = array<i32>} : memref<1x8x32xbf16, #tpu.memory_space<vmem>>, vector<1x8x32xbf16>,
    return
  }
  func.func @transform_0(%arg0: i32, %arg1: i32) -> (i32, i32, i32) {
    %c0_i32 = arith.constant 0 : i32
    %c0_i32_0 = arith.constant 0 : i32
    return %arg0, %arg1, %c0_i32 : i32, i32, i32
  }
  func.func @transform_1(%arg0: i32, %arg1: i32) -> (i32, i32) {
    %c0_i32 = arith.constant 0 : i32
    %c0_i32_0 = arith.constant 0 : i32
    %c0_i32_1 = arith.constant 0 : i32
    return %c0_i32, %c0_i32_0 : i32, i32
  }
  func.func @transform_2(%arg0: i32, %arg1: i32) -> (i32, i32) {
    %c0_i32 = arith.constant 0 : i32
    %c0_i32_0 = arith.constant 0 : i32
    %c0_i32_1 = arith.constant 0 : i32
    return %c0_i32, %c0_i32_0 : i32, i32
  }
  func.func @transform_3(%arg0: i32, %arg1: i32) -> (i32, i32) {
    %c0_i32 = arith.constant 0 : i32
    %c0_i32_0 = arith.constant 0 : i32
    %c0_i32_1 = arith.constant 0 : i32
    return %c0_i32, %c0_i32_0 : i32, i32
  }
  func.func @transform_4(%arg0: i32, %arg1: i32) -> (i32, i32) {
    %c0_i32 = arith.constant 0 : i32
    %c0_i32_0 = arith.constant 0 : i32
    %c0_i32_1 = arith.constant 0 : i32
    return %c0_i32, %c0_i32_0 : i32, i32
  }
  func.func @transform_5(%arg0: i32, %arg1: i32) -> (i32, i32) {
    %c0_i32 = arith.constant 0 : i32
    %c0_i32_0 = arith.constant 0 : i32
    %c0_i32_1 = arith.constant 0 : i32
    return %c0_i32, %c0_i32_0 : i32, i32
  }
  func.func @transform_6(%arg0: i32, %arg1: i32) -> (i32, i32) {
    %c0_i32 = arith.constant 0 : i32
    %c0_i32_0 = arith.constant 0 : i32
    %c0_i32_1 = arith.constant 0 : i32
    return %c0_i32, %c0_i32_0 : i32, i32
  }
  func.func @transform_7(%arg0: i32, %arg1: i32) -> (i32, i32, i32) {
    %c0_i32 = arith.constant 0 : i32
    %c0_i32_0 = arith.constant 0 : i32
    return %arg0, %arg1, %c0_i32 : i32, i32, i32
  }
}

module attributes {stable_mosaic.version = 11 : i64} {
  func.func @ln_qkv_kernel(%arg0: i32, %arg1: i32, %arg2: memref<1x8x32xbf16, #tpu.memory_space<vmem>>, %arg3: memref<1x32xf32, #tpu.memory_space<vmem>>, %arg4: memref<1x32xf32, #tpu.memory_space<vmem>>, %arg5: memref<32x96xbf16, #tpu.memory_space<vmem>>, %arg6: memref<1x96xf32, #tpu.memory_space<vmem>>, %arg7: memref<1x4x8x8xbf16, #tpu.memory_space<vmem>>, %arg8: memref<1x4x8x8xbf16, #tpu.memory_space<vmem>>, %arg9: memref<1x4x8x8xbf16, #tpu.memory_space<vmem>>) attributes {dimension_semantics = [#tpu.dimension_semantics<parallel>, #tpu.dimension_semantics<parallel>], iteration_bounds = array<i64: 2, 1>, scalar_prefetch = 0 : i64, scratch_operands = 0 : i64, tpu.core_type = #tpu.core_type<tc>, window_params = [{transform_indices = @transform_0, window_bounds = array<i64: 1, 8, 32>}, {pipeline_mode = #tpu.pipeline_mode<synchronous>, transform_indices = @transform_1, window_bounds = array<i64: 1, 32>}, {pipeline_mode = #tpu.pipeline_mode<synchronous>, transform_indices = @transform_2, window_bounds = array<i64: 1, 32>}, {pipeline_mode = #tpu.pipeline_mode<synchronous>, transform_indices = @transform_3, window_bounds = array<i64: 32, 96>}, {pipeline_mode = #tpu.pipeline_mode<synchronous>, transform_indices = @transform_4, window_bounds = array<i64: 1, 96>}, {transform_indices = @transform_5, window_bounds = array<i64: 1, 4, 8, 8>}, {transform_indices = @transform_6, window_bounds = array<i64: 1, 4, 8, 8>}, {transform_indices = @transform_7, window_bounds = array<i64: 1, 4, 8, 8>}]} {
    %c0 = arith.constant 0 : index
    %c0_0 = arith.constant 0 : index
    %c0_1 = arith.constant 0 : index
    %0 = vector.load %arg2[%c0, %c0_0, %c0_1] : memref<1x8x32xbf16, #tpu.memory_space<vmem>>, vector<1x8x32xbf16>
    %1 = vector.shape_cast %0 : vector<1x8x32xbf16> to vector<8x32xbf16>
    %c0_2 = arith.constant 0 : index
    %c0_3 = arith.constant 0 : index
    %2 = vector.load %arg3[%c0_2, %c0_3] : memref<1x32xf32, #tpu.memory_space<vmem>>, vector<1x32xf32>
    %c0_4 = arith.constant 0 : index
    %c0_5 = arith.constant 0 : index
    %3 = vector.load %arg4[%c0_4, %c0_5] : memref<1x32xf32, #tpu.memory_space<vmem>>, vector<1x32xf32>
    %4 = arith.extf %1 : vector<8x32xbf16> to vector<8x32xf32>
    %cst = arith.constant dense<0.000000e+00> : vector<8xf32>
    %5 = vector.multi_reduction <add>, %4, %cst [1] : vector<8x32xf32> to vector<8xf32>
    %6 = vector.shape_cast %5 : vector<8xf32> to vector<8x1xf32>
    %cst_6 = arith.constant 3.200000e+01 : f32
    %7 = vector.broadcast %cst_6 : f32 to vector<8x1xf32>
    %8 = arith.divf %6, %7 : vector<8x1xf32>
    %9 = vector.broadcast %8 : vector<8x1xf32> to vector<8x32xf32>
    %10 = arith.subf %4, %9 : vector<8x32xf32>
    %11 = arith.mulf %10, %10 : vector<8x32xf32>
    %cst_7 = arith.constant dense<0.000000e+00> : vector<8xf32>
    %12 = vector.multi_reduction <add>, %11, %cst_7 [1] : vector<8x32xf32> to vector<8xf32>
    %13 = vector.shape_cast %12 : vector<8xf32> to vector<8x1xf32>
    %cst_8 = arith.constant 3.200000e+01 : f32
    %14 = vector.broadcast %cst_8 : f32 to vector<8x1xf32>
    %15 = arith.divf %13, %14 : vector<8x1xf32>
    %16 = vector.broadcast %8 : vector<8x1xf32> to vector<8x32xf32>
    %17 = arith.subf %4, %16 : vector<8x32xf32>
    %cst_9 = arith.constant 9.99999974E-6 : f32
    %18 = vector.broadcast %cst_9 : f32 to vector<8x1xf32>
    %19 = arith.addf %15, %18 : vector<8x1xf32>
    %20 = math.rsqrt %19 : vector<8x1xf32>
    %21 = vector.broadcast %20 : vector<8x1xf32> to vector<8x32xf32>
    %22 = arith.mulf %17, %21 : vector<8x32xf32>
    %23 = vector.broadcast %2 : vector<1x32xf32> to vector<8x32xf32>
    %24 = arith.mulf %22, %23 : vector<8x32xf32>
    %25 = vector.broadcast %3 : vector<1x32xf32> to vector<8x32xf32>
    %26 = arith.addf %24, %25 : vector<8x32xf32>
    %27 = arith.truncf %26 : vector<8x32xf32> to vector<8x32xbf16>
    %c0_10 = arith.constant 0 : index
    %c0_11 = arith.constant 0 : index
    %28 = vector.load %arg5[%c0_10, %c0_11] : memref<32x96xbf16, #tpu.memory_space<vmem>>, vector<32x96xbf16>
    %cst_12 = arith.constant dense<0.000000e+00> : vector<8x96xf32>
    %29 = tpu.matmul %27, %28, %cst_12 {dimension_numbers = #tpu.dot_dimension_numbers<[1], [0], [0], [1], [0, 0, 1, 1], [], []>} : vector<8x32xbf16>, vector<32x96xbf16>, vector<8x96xf32> -> vector<8x96xf32>
    %c0_13 = arith.constant 0 : index
    %c0_14 = arith.constant 0 : index
    %30 = vector.load %arg6[%c0_13, %c0_14] : memref<1x96xf32, #tpu.memory_space<vmem>>, vector<1x96xf32>
    %31 = vector.broadcast %30 : vector<1x96xf32> to vector<8x96xf32>
    %32 = arith.addf %29, %31 : vector<8x96xf32>
    %33 = arith.truncf %32 : vector<8x96xf32> to vector<8x96xbf16>
    %34 = vector.extract_strided_slice %33 {offsets = [0, 0], sizes = [8, 8], strides = [1, 1]} : vector<8x96xbf16> to vector<8x8xbf16>
    %c0_15 = arith.constant 0 : index
    %c0_16 = arith.constant 0 : index
    %c0_17 = arith.constant 0 : index
    %c0_18 = arith.constant 0 : index
    %35 = vector.load %arg7[%c0_15, %c0_16, %c0_17, %c0_18] : memref<1x4x8x8xbf16, #tpu.memory_space<vmem>>, vector<1x1x8x8xbf16>
    %36 = vector.shape_cast %35 : vector<1x1x8x8xbf16> to vector<8x8xbf16>
    %37 = vector.shape_cast %34 : vector<8x8xbf16> to vector<1x1x8x8xbf16>
    tpu.vector_store %arg7[%c0_15, %c0_16, %c0_17, %c0_18], %37 {strides = array<i32>} : memref<1x4x8x8xbf16, #tpu.memory_space<vmem>>, vector<1x1x8x8xbf16>,
    %38 = vector.extract_strided_slice %33 {offsets = [0, 32], sizes = [8, 8], strides = [1, 1]} : vector<8x96xbf16> to vector<8x8xbf16>
    %c0_19 = arith.constant 0 : index
    %c0_20 = arith.constant 0 : index
    %c0_21 = arith.constant 0 : index
    %c0_22 = arith.constant 0 : index
    %39 = vector.load %arg8[%c0_19, %c0_20, %c0_21, %c0_22] : memref<1x4x8x8xbf16, #tpu.memory_space<vmem>>, vector<1x1x8x8xbf16>
    %40 = vector.shape_cast %39 : vector<1x1x8x8xbf16> to vector<8x8xbf16>
    %41 = vector.shape_cast %38 : vector<8x8xbf16> to vector<1x1x8x8xbf16>
    tpu.vector_store %arg8[%c0_19, %c0_20, %c0_21, %c0_22], %41 {strides = array<i32>} : memref<1x4x8x8xbf16, #tpu.memory_space<vmem>>, vector<1x1x8x8xbf16>,
    %42 = vector.extract_strided_slice %33 {offsets = [0, 64], sizes = [8, 8], strides = [1, 1]} : vector<8x96xbf16> to vector<8x8xbf16>
    %c0_23 = arith.constant 0 : index
    %c0_24 = arith.constant 0 : index
    %c0_25 = arith.constant 0 : index
    %c0_26 = arith.constant 0 : index
    %43 = vector.load %arg9[%c0_23, %c0_24, %c0_25, %c0_26] : memref<1x4x8x8xbf16, #tpu.memory_space<vmem>>, vector<1x1x8x8xbf16>
    %44 = vector.shape_cast %43 : vector<1x1x8x8xbf16> to vector<8x8xbf16>
    %45 = vector.shape_cast %42 : vector<8x8xbf16> to vector<1x1x8x8xbf16>
    tpu.vector_store %arg9[%c0_23, %c0_24, %c0_25, %c0_26], %45 {strides = array<i32>} : memref<1x4x8x8xbf16, #tpu.memory_space<vmem>>, vector<1x1x8x8xbf16>,
    %46 = vector.extract_strided_slice %33 {offsets = [0, 8], sizes = [8, 8], strides = [1, 1]} : vector<8x96xbf16> to vector<8x8xbf16>
    %c0_27 = arith.constant 0 : index
    %c1 = arith.constant 1 : index
    %c0_28 = arith.constant 0 : index
    %c0_29 = arith.constant 0 : index
    %47 = vector.load %arg7[%c0_27, %c1, %c0_28, %c0_29] : memref<1x4x8x8xbf16, #tpu.memory_space<vmem>>, vector<1x1x8x8xbf16>
    %48 = vector.shape_cast %47 : vector<1x1x8x8xbf16> to vector<8x8xbf16>
    %49 = vector.shape_cast %46 : vector<8x8xbf16> to vector<1x1x8x8xbf16>
    tpu.vector_store %arg7[%c0_27, %c1, %c0_28, %c0_29], %49 {strides = array<i32>} : memref<1x4x8x8xbf16, #tpu.memory_space<vmem>>, vector<1x1x8x8xbf16>,
    %50 = vector.extract_strided_slice %33 {offsets = [0, 40], sizes = [8, 8], strides = [1, 1]} : vector<8x96xbf16> to vector<8x8xbf16>
    %c0_30 = arith.constant 0 : index
    %c1_31 = arith.constant 1 : index
    %c0_32 = arith.constant 0 : index
    %c0_33 = arith.constant 0 : index
    %51 = vector.load %arg8[%c0_30, %c1_31, %c0_32, %c0_33] : memref<1x4x8x8xbf16, #tpu.memory_space<vmem>>, vector<1x1x8x8xbf16>
    %52 = vector.shape_cast %51 : vector<1x1x8x8xbf16> to vector<8x8xbf16>
    %53 = vector.shape_cast %50 : vector<8x8xbf16> to vector<1x1x8x8xbf16>
    tpu.vector_store %arg8[%c0_30, %c1_31, %c0_32, %c0_33], %53 {strides = array<i32>} : memref<1x4x8x8xbf16, #tpu.memory_space<vmem>>, vector<1x1x8x8xbf16>,
    %54 = vector.extract_strided_slice %33 {offsets = [0, 72], sizes = [8, 8], strides = [1, 1]} : vector<8x96xbf16> to vector<8x8xbf16>
    %c0_34 = arith.constant 0 : index
    %c1_35 = arith.constant 1 : index
    %c0_36 = arith.constant 0 : index
    %c0_37 = arith.constant 0 : index
    %55 = vector.load %arg9[%c0_34, %c1_35, %c0_36, %c0_37] : memref<1x4x8x8xbf16, #tpu.memory_space<vmem>>, vector<1x1x8x8xbf16>
    %56 = vector.shape_cast %55 : vector<1x1x8x8xbf16> to vector<8x8xbf16>
    %57 = vector.shape_cast %54 : vector<8x8xbf16> to vector<1x1x8x8xbf16>
    tpu.vector_store %arg9[%c0_34, %c1_35, %c0_36, %c0_37], %57 {strides = array<i32>} : memref<1x4x8x8xbf16, #tpu.memory_space<vmem>>, vector<1x1x8x8xbf16>,
    %58 = vector.extract_strided_slice %33 {offsets = [0, 16], sizes = [8, 8], strides = [1, 1]} : vector<8x96xbf16> to vector<8x8xbf16>
    %c0_38 = arith.constant 0 : index
    %c2 = arith.constant 2 : index
    %c0_39 = arith.constant 0 : index
    %c0_40 = arith.constant 0 : index
    %59 = vector.load %arg7[%c0_38, %c2, %c0_39, %c0_40] : memref<1x4x8x8xbf16, #tpu.memory_space<vmem>>, vector<1x1x8x8xbf16>
    %60 = vector.shape_cast %59 : vector<1x1x8x8xbf16> to vector<8x8xbf16>
    %61 = vector.shape_cast %58 : vector<8x8xbf16> to vector<1x1x8x8xbf16>
    tpu.vector_store %arg7[%c0_38, %c2, %c0_39, %c0_40], %61 {strides = array<i32>} : memref<1x4x8x8xbf16, #tpu.memory_space<vmem>>, vector<1x1x8x8xbf16>,
    %62 = vector.extract_strided_slice %33 {offsets = [0, 48], sizes = [8, 8], strides = [1, 1]} : vector<8x96xbf16> to vector<8x8xbf16>
    %c0_41 = arith.constant 0 : index
    %c2_42 = arith.constant 2 : index
    %c0_43 = arith.constant 0 : index
    %c0_44 = arith.constant 0 : index
    %63 = vector.load %arg8[%c0_41, %c2_42, %c0_43, %c0_44] : memref<1x4x8x8xbf16, #tpu.memory_space<vmem>>, vector<1x1x8x8xbf16>
    %64 = vector.shape_cast %63 : vector<1x1x8x8xbf16> to vector<8x8xbf16>
    %65 = vector.shape_cast %62 : vector<8x8xbf16> to vector<1x1x8x8xbf16>
    tpu.vector_store %arg8[%c0_41, %c2_42, %c0_43, %c0_44], %65 {strides = array<i32>} : memref<1x4x8x8xbf16, #tpu.memory_space<vmem>>, vector<1x1x8x8xbf16>,
    %66 = vector.extract_strided_slice %33 {offsets = [0, 80], sizes = [8, 8], strides = [1, 1]} : vector<8x96xbf16> to vector<8x8xbf16>
    %c0_45 = arith.constant 0 : index
    %c2_46 = arith.constant 2 : index
    %c0_47 = arith.constant 0 : index
    %c0_48 = arith.constant 0 : index
    %67 = vector.load %arg9[%c0_45, %c2_46, %c0_47, %c0_48] : memref<1x4x8x8xbf16, #tpu.memory_space<vmem>>, vector<1x1x8x8xbf16>
    %68 = vector.shape_cast %67 : vector<1x1x8x8xbf16> to vector<8x8xbf16>
    %69 = vector.shape_cast %66 : vector<8x8xbf16> to vector<1x1x8x8xbf16>
    tpu.vector_store %arg9[%c0_45, %c2_46, %c0_47, %c0_48], %69 {strides = array<i32>} : memref<1x4x8x8xbf16, #tpu.memory_space<vmem>>, vector<1x1x8x8xbf16>,
    %70 = vector.extract_strided_slice %33 {offsets = [0, 24], sizes = [8, 8], strides = [1, 1]} : vector<8x96xbf16> to vector<8x8xbf16>
    %c0_49 = arith.constant 0 : index
    %c3 = arith.constant 3 : index
    %c0_50 = arith.constant 0 : index
    %c0_51 = arith.constant 0 : index
    %71 = vector.load %arg7[%c0_49, %c3, %c0_50, %c0_51] : memref<1x4x8x8xbf16, #tpu.memory_space<vmem>>, vector<1x1x8x8xbf16>
    %72 = vector.shape_cast %71 : vector<1x1x8x8xbf16> to vector<8x8xbf16>
    %73 = vector.shape_cast %70 : vector<8x8xbf16> to vector<1x1x8x8xbf16>
    tpu.vector_store %arg7[%c0_49, %c3, %c0_50, %c0_51], %73 {strides = array<i32>} : memref<1x4x8x8xbf16, #tpu.memory_space<vmem>>, vector<1x1x8x8xbf16>,
    %74 = vector.extract_strided_slice %33 {offsets = [0, 56], sizes = [8, 8], strides = [1, 1]} : vector<8x96xbf16> to vector<8x8xbf16>
    %c0_52 = arith.constant 0 : index
    %c3_53 = arith.constant 3 : index
    %c0_54 = arith.constant 0 : index
    %c0_55 = arith.constant 0 : index
    %75 = vector.load %arg8[%c0_52, %c3_53, %c0_54, %c0_55] : memref<1x4x8x8xbf16, #tpu.memory_space<vmem>>, vector<1x1x8x8xbf16>
    %76 = vector.shape_cast %75 : vector<1x1x8x8xbf16> to vector<8x8xbf16>
    %77 = vector.shape_cast %74 : vector<8x8xbf16> to vector<1x1x8x8xbf16>
    tpu.vector_store %arg8[%c0_52, %c3_53, %c0_54, %c0_55], %77 {strides = array<i32>} : memref<1x4x8x8xbf16, #tpu.memory_space<vmem>>, vector<1x1x8x8xbf16>,
    %78 = vector.extract_strided_slice %33 {offsets = [0, 88], sizes = [8, 8], strides = [1, 1]} : vector<8x96xbf16> to vector<8x8xbf16>
    %c0_56 = arith.constant 0 : index
    %c3_57 = arith.constant 3 : index
    %c0_58 = arith.constant 0 : index
    %c0_59 = arith.constant 0 : index
    %79 = vector.load %arg9[%c0_56, %c3_57, %c0_58, %c0_59] : memref<1x4x8x8xbf16, #tpu.memory_space<vmem>>, vector<1x1x8x8xbf16>
    %80 = vector.shape_cast %79 : vector<1x1x8x8xbf16> to vector<8x8xbf16>
    %81 = vector.shape_cast %78 : vector<8x8xbf16> to vector<1x1x8x8xbf16>
    tpu.vector_store %arg9[%c0_56, %c3_57, %c0_58, %c0_59], %81 {strides = array<i32>} : memref<1x4x8x8xbf16, #tpu.memory_space<vmem>>, vector<1x1x8x8xbf16>,
    return
  }
  func.func @transform_0(%arg0: i32, %arg1: i32) -> (i32, i32, i32) {
    %c0_i32 = arith.constant 0 : i32
    %c0_i32_0 = arith.constant 0 : i32
    return %arg0, %arg1, %c0_i32 : i32, i32, i32
  }
  func.func @transform_1(%arg0: i32, %arg1: i32) -> (i32, i32) {
    %c0_i32 = arith.constant 0 : i32
    %c0_i32_0 = arith.constant 0 : i32
    %c0_i32_1 = arith.constant 0 : i32
    return %c0_i32, %c0_i32_0 : i32, i32
  }
  func.func @transform_2(%arg0: i32, %arg1: i32) -> (i32, i32) {
    %c0_i32 = arith.constant 0 : i32
    %c0_i32_0 = arith.constant 0 : i32
    %c0_i32_1 = arith.constant 0 : i32
    return %c0_i32, %c0_i32_0 : i32, i32
  }
  func.func @transform_3(%arg0: i32, %arg1: i32) -> (i32, i32) {
    %c0_i32 = arith.constant 0 : i32
    %c0_i32_0 = arith.constant 0 : i32
    %c0_i32_1 = arith.constant 0 : i32
    return %c0_i32, %c0_i32_0 : i32, i32
  }
  func.func @transform_4(%arg0: i32, %arg1: i32) -> (i32, i32) {
    %c0_i32 = arith.constant 0 : i32
    %c0_i32_0 = arith.constant 0 : i32
    %c0_i32_1 = arith.constant 0 : i32
    return %c0_i32, %c0_i32_0 : i32, i32
  }
  func.func @transform_5(%arg0: i32, %arg1: i32) -> (i32, i32, i32, i32) {
    %c0_i32 = arith.constant 0 : i32
    %c0_i32_0 = arith.constant 0 : i32
    %c0_i32_1 = arith.constant 0 : i32
    return %arg0, %c0_i32, %arg1, %c0_i32_0 : i32, i32, i32, i32
  }
  func.func @transform_6(%arg0: i32, %arg1: i32) -> (i32, i32, i32, i32) {
    %c0_i32 = arith.constant 0 : i32
    %c0_i32_0 = arith.constant 0 : i32
    %c0_i32_1 = arith.constant 0 : i32
    return %arg0, %c0_i32, %arg1, %c0_i32_0 : i32, i32, i32, i32
  }
  func.func @transform_7(%arg0: i32, %arg1: i32) -> (i32, i32, i32, i32) {
    %c0_i32 = arith.constant 0 : i32
    %c0_i32_0 = arith.constant 0 : i32
    %c0_i32_1 = arith.constant 0 : i32
    return %arg0, %c0_i32, %arg1, %c0_i32_0 : i32, i32, i32, i32
  }
}

module attributes {stable_mosaic.version = 11 : i64} {
  func.func @head_kernel(%arg0: i32, %arg1: i32, %arg2: memref<16x32xbf16, #tpu.memory_space<vmem>>, %arg3: memref<1x32xf32, #tpu.memory_space<vmem>>, %arg4: memref<1x32xf32, #tpu.memory_space<vmem>>, %arg5: memref<512x32xbf16, #tpu.memory_space<vmem>>, %arg6: memref<16x512xf32, #tpu.memory_space<vmem>>) attributes {dimension_semantics = [#tpu.dimension_semantics<parallel>, #tpu.dimension_semantics<parallel>], iteration_bounds = array<i64: 1, 1>, scalar_prefetch = 0 : i64, scratch_operands = 0 : i64, tpu.core_type = #tpu.core_type<tc>, window_params = [{transform_indices = @transform_0, window_bounds = array<i64: 16, 32>}, {pipeline_mode = #tpu.pipeline_mode<synchronous>, transform_indices = @transform_1, window_bounds = array<i64: 1, 32>}, {pipeline_mode = #tpu.pipeline_mode<synchronous>, transform_indices = @transform_2, window_bounds = array<i64: 1, 32>}, {transform_indices = @transform_3, window_bounds = array<i64: 512, 32>}, {transform_indices = @transform_4, window_bounds = array<i64: 16, 512>}]} {
    %c0 = arith.constant 0 : index
    %c0_0 = arith.constant 0 : index
    %0 = vector.load %arg2[%c0, %c0_0] : memref<16x32xbf16, #tpu.memory_space<vmem>>, vector<16x32xbf16>
    %c0_1 = arith.constant 0 : index
    %c0_2 = arith.constant 0 : index
    %1 = vector.load %arg3[%c0_1, %c0_2] : memref<1x32xf32, #tpu.memory_space<vmem>>, vector<1x32xf32>
    %c0_3 = arith.constant 0 : index
    %c0_4 = arith.constant 0 : index
    %2 = vector.load %arg4[%c0_3, %c0_4] : memref<1x32xf32, #tpu.memory_space<vmem>>, vector<1x32xf32>
    %3 = arith.extf %0 : vector<16x32xbf16> to vector<16x32xf32>
    %cst = arith.constant dense<0.000000e+00> : vector<16xf32>
    %4 = vector.multi_reduction <add>, %3, %cst [1] : vector<16x32xf32> to vector<16xf32>
    %5 = vector.shape_cast %4 : vector<16xf32> to vector<16x1xf32>
    %cst_5 = arith.constant 3.200000e+01 : f32
    %6 = vector.broadcast %cst_5 : f32 to vector<16x1xf32>
    %7 = arith.divf %5, %6 : vector<16x1xf32>
    %8 = vector.broadcast %7 : vector<16x1xf32> to vector<16x32xf32>
    %9 = arith.subf %3, %8 : vector<16x32xf32>
    %10 = arith.mulf %9, %9 : vector<16x32xf32>
    %cst_6 = arith.constant dense<0.000000e+00> : vector<16xf32>
    %11 = vector.multi_reduction <add>, %10, %cst_6 [1] : vector<16x32xf32> to vector<16xf32>
    %12 = vector.shape_cast %11 : vector<16xf32> to vector<16x1xf32>
    %cst_7 = arith.constant 3.200000e+01 : f32
    %13 = vector.broadcast %cst_7 : f32 to vector<16x1xf32>
    %14 = arith.divf %12, %13 : vector<16x1xf32>
    %15 = vector.broadcast %7 : vector<16x1xf32> to vector<16x32xf32>
    %16 = arith.subf %3, %15 : vector<16x32xf32>
    %cst_8 = arith.constant 9.99999974E-6 : f32
    %17 = vector.broadcast %cst_8 : f32 to vector<16x1xf32>
    %18 = arith.addf %14, %17 : vector<16x1xf32>
    %19 = math.rsqrt %18 : vector<16x1xf32>
    %20 = vector.broadcast %19 : vector<16x1xf32> to vector<16x32xf32>
    %21 = arith.mulf %16, %20 : vector<16x32xf32>
    %22 = vector.broadcast %1 : vector<1x32xf32> to vector<16x32xf32>
    %23 = arith.mulf %21, %22 : vector<16x32xf32>
    %24 = vector.broadcast %2 : vector<1x32xf32> to vector<16x32xf32>
    %25 = arith.addf %23, %24 : vector<16x32xf32>
    %26 = arith.truncf %25 : vector<16x32xf32> to vector<16x32xbf16>
    %c0_9 = arith.constant 0 : index
    %c0_10 = arith.constant 0 : index
    %27 = vector.load %arg5[%c0_9, %c0_10] : memref<512x32xbf16, #tpu.memory_space<vmem>>, vector<512x32xbf16>
    %cst_11 = arith.constant dense<0.000000e+00> : vector<16x512xf32>
    %28 = tpu.matmul %26, %27, %cst_11 {dimension_numbers = #tpu.dot_dimension_numbers<[1], [1], [0], [0], [0, 0, 1, 0], [], []>} : vector<16x32xbf16>, vector<512x32xbf16>, vector<16x512xf32> -> vector<16x512xf32>
    %c0_12 = arith.constant 0 : index
    %c0_13 = arith.constant 0 : index
    %29 = vector.load %arg6[%c0_12, %c0_13] : memref<16x512xf32, #tpu.memory_space<vmem>>, vector<16x512xf32>
    tpu.vector_store %arg6[%c0_12, %c0_13], %28 {strides = array<i32>} : memref<16x512xf32, #tpu.memory_space<vmem>>, vector<16x512xf32>,
    return
  }
  func.func @transform_0(%arg0: i32, %arg1: i32) -> (i32, i32) {
    %c0_i32 = arith.constant 0 : i32
    %c0_i32_0 = arith.constant 0 : i32
    return %arg0, %c0_i32 : i32, i32
  }
  func.func @transform_1(%arg0: i32, %arg1: i32) -> (i32, i32) {
    %c0_i32 = arith.constant 0 : i32
    %c0_i32_0 = arith.constant 0 : i32
    %c0_i32_1 = arith.constant 0 : i32
    return %c0_i32, %c0_i32_0 : i32, i32
  }
  func.func @transform_2(%arg0: i32, %arg1: i32) -> (i32, i32) {
    %c0_i32 = arith.constant 0 : i32
    %c0_i32_0 = arith.constant 0 : i32
    %c0_i32_1 = arith.constant 0 : i32
    return %c0_i32, %c0_i32_0 : i32, i32
  }
  func.func @transform_3(%arg0: i32, %arg1: i32) -> (i32, i32) {
    %c0_i32 = arith.constant 0 : i32
    %c0_i32_0 = arith.constant 0 : i32
    return %arg1, %c0_i32 : i32, i32
  }
  func.func @transform_4(%arg0: i32, %arg1: i32) -> (i32, i32) {
    %c0_i32 = arith.constant 0 : i32
    return %arg0, %arg1 : i32, i32
  }
}

module attributes {stable_mosaic.version = 11 : i64} {
  func.func @attn_kernel(%arg0: i32, %arg1: i32, %arg2: i32, %arg3: memref<1x8x32xbf16, #tpu.memory_space<vmem>>, %arg4: memref<1x4x8x8xbf16, #tpu.memory_space<vmem>>, %arg5: memref<1x4x8x8xbf16, #tpu.memory_space<vmem>>, %arg6: memref<1x4x8x8xbf16, #tpu.memory_space<vmem>>, %arg7: memref<4x8x32xbf16, #tpu.memory_space<vmem>>, %arg8: memref<1x32xf32, #tpu.memory_space<vmem>>, %arg9: memref<1x8x32xbf16, #tpu.memory_space<vmem>>, %arg10: memref<4x8x1xf32, #tpu.memory_space<vmem>>, %arg11: memref<4x8x1xf32, #tpu.memory_space<vmem>>, %arg12: memref<4x8x8xf32, #tpu.memory_space<vmem>>) attributes {dimension_semantics = [#tpu.dimension_semantics<parallel>, #tpu.dimension_semantics<parallel>, #tpu.dimension_semantics<arbitrary>], iteration_bounds = array<i64: 2, 1, 1>, scalar_prefetch = 0 : i64, scratch_operands = 3 : i64, tpu.core_type = #tpu.core_type<tc>, window_params = [{transform_indices = @transform_0, window_bounds = array<i64: 1, 8, 32>}, {transform_indices = @transform_1, window_bounds = array<i64: 1, 4, 8, 8>}, {transform_indices = @transform_2, window_bounds = array<i64: 1, 4, 8, 8>}, {transform_indices = @transform_3, window_bounds = array<i64: 1, 4, 8, 8>}, {pipeline_mode = #tpu.pipeline_mode<synchronous>, transform_indices = @transform_4, window_bounds = array<i64: 4, 8, 32>}, {pipeline_mode = #tpu.pipeline_mode<synchronous>, transform_indices = @transform_5, window_bounds = array<i64: 1, 32>}, {transform_indices = @transform_6, window_bounds = array<i64: 1, 8, 32>}]} {
    %c0_i32 = arith.constant 0 : i32
    %0 = arith.cmpi eq, %arg2, %c0_i32 : i32
    %1 = arith.extui %0 : i1 to i32
    %c0_i32_0 = arith.constant 0 : i32
    %2 = arith.cmpi ne, %1, %c0_i32_0 : i32
    scf.if %2 {
      %cst = arith.constant 0xFF800000 : f32
      %12 = vector.broadcast %cst : f32 to vector<4x8x1xf32>
      %c0 = arith.constant 0 : index
      %c0_5 = arith.constant 0 : index
      %c0_6 = arith.constant 0 : index
      %13 = vector.load %arg10[%c0, %c0_5, %c0_6] : memref<4x8x1xf32, #tpu.memory_space<vmem>>, vector<4x8x1xf32>
      tpu.vector_store %arg10[%c0, %c0_5, %c0_6], %12 {strides = array<i32>} : memref<4x8x1xf32, #tpu.memory_space<vmem>>, vector<4x8x1xf32>,
      %cst_7 = arith.constant 0.000000e+00 : f32
      %14 = vector.broadcast %cst_7 : f32 to vector<4x8x1xf32>
      %c0_8 = arith.constant 0 : index
      %c0_9 = arith.constant 0 : index
      %c0_10 = arith.constant 0 : index
      %15 = vector.load %arg11[%c0_8, %c0_9, %c0_10] : memref<4x8x1xf32, #tpu.memory_space<vmem>>, vector<4x8x1xf32>
      tpu.vector_store %arg11[%c0_8, %c0_9, %c0_10], %14 {strides = array<i32>} : memref<4x8x1xf32, #tpu.memory_space<vmem>>, vector<4x8x1xf32>,
      %cst_11 = arith.constant 0.000000e+00 : f32
      %16 = vector.broadcast %cst_11 : f32 to vector<4x8x8xf32>
      %c0_12 = arith.constant 0 : index
      %c0_13 = arith.constant 0 : index
      %c0_14 = arith.constant 0 : index
      %17 = vector.load %arg12[%c0_12, %c0_13, %c0_14] : memref<4x8x8xf32, #tpu.memory_space<vmem>>, vector<4x8x8xf32>
      tpu.vector_store %arg12[%c0_12, %c0_13, %c0_14], %16 {strides = array<i32>} : memref<4x8x8xf32, #tpu.memory_space<vmem>>, vector<4x8x8xf32>,
    } else {
    }
    %c8_i32 = arith.constant 8 : i32
    %3 = arith.muli %arg2, %c8_i32 : i32
    %c8_i32_1 = arith.constant 8 : i32
    %4 = arith.muli %arg1, %c8_i32_1 : i32
    %c7_i32 = arith.constant 7 : i32
    %5 = arith.addi %4, %c7_i32 : i32
    %6 = arith.cmpi sle, %3, %5 : i32
    %7 = arith.extui %6 : i1 to i32
    %c0_i32_2 = arith.constant 0 : i32
    %8 = arith.cmpi ne, %7, %c0_i32_2 : i32
    scf.if %8 {
      %c0 = arith.constant 0 : index
      %c0_5 = arith.constant 0 : index
      %c0_6 = arith.constant 0 : index
      %c0_7 = arith.constant 0 : index
      %12 = vector.load %arg4[%c0, %c0_5, %c0_6, %c0_7] : memref<1x4x8x8xbf16, #tpu.memory_space<vmem>>, vector<1x4x8x8xbf16>
      %13 = vector.shape_cast %12 : vector<1x4x8x8xbf16> to vector<4x8x8xbf16>
      %c0_8 = arith.constant 0 : index
      %c0_9 = arith.constant 0 : index
      %c0_10 = arith.constant 0 : index
      %c0_11 = arith.constant 0 : index
      %14 = vector.load %arg5[%c0_8, %c0_9, %c0_10, %c0_11] : memref<1x4x8x8xbf16, #tpu.memory_space<vmem>>, vector<1x4x8x8xbf16>
      %15 = vector.shape_cast %14 : vector<1x4x8x8xbf16> to vector<4x8x8xbf16>
      %c0_12 = arith.constant 0 : index
      %c0_13 = arith.constant 0 : index
      %c0_14 = arith.constant 0 : index
      %c0_15 = arith.constant 0 : index
      %16 = vector.load %arg6[%c0_12, %c0_13, %c0_14, %c0_15] : memref<1x4x8x8xbf16, #tpu.memory_space<vmem>>, vector<1x4x8x8xbf16>
      %17 = vector.shape_cast %16 : vector<1x4x8x8xbf16> to vector<4x8x8xbf16>
      "tpu.trace_start"() <{level = 10 : i32, message = "hqd,hkd->hqk"}> : () -> ()
      %cst = arith.constant dense<0.000000e+00> : vector<4x8x8xf32>
      %18 = tpu.matmul %13, %15, %cst {dimension_numbers = #tpu.dot_dimension_numbers<[2], [2], [1], [1], [0, 0, 0, 1, 1, 1], [0], [0]>} : vector<4x8x8xbf16>, vector<4x8x8xbf16>, vector<4x8x8xf32> -> vector<4x8x8xf32>
      "tpu.trace_stop"() : () -> ()
      %cst_16 = arith.constant 0.353553385 : f32
      %19 = vector.broadcast %cst_16 : f32 to vector<4x8x8xf32>
      %20 = arith.mulf %18, %19 : vector<4x8x8xf32>
      %c8_i32_17 = arith.constant 8 : i32
      %21 = arith.muli %arg1, %c8_i32_17 : i32
      %22 = tpu.iota {dimensions = array<i32: 0>} : vector<8x8xi32>
      %23 = vector.broadcast %21 : i32 to vector<8x8xi32>
      %24 = arith.addi %23, %22 : vector<8x8xi32>
      %c8_i32_18 = arith.constant 8 : i32
      %25 = arith.muli %arg2, %c8_i32_18 : i32
      %26 = tpu.iota {dimensions = array<i32: 1>} : vector<8x8xi32>
      %27 = vector.broadcast %25 : i32 to vector<8x8xi32>
      %28 = arith.addi %27, %26 : vector<8x8xi32>
      %29 = arith.cmpi sle, %28, %24 : vector<8x8xi32>
      %30 = vector.shape_cast %29 : vector<8x8xi1> to vector<1x8x8xi1>
      %cst_19 = arith.constant -1.000000e+30 : f32
      %31 = vector.shape_cast %30 : vector<1x8x8xi1> to vector<1x8x8xi1>
      %32 = vector.broadcast %31 : vector<1x8x8xi1> to vector<4x8x8xi1>
      %33 = vector.broadcast %cst_19 : f32 to vector<4x8x8xf32>
      %34 = arith.select %32, %20, %33 : vector<4x8x8xi1>, vector<4x8x8xf32>
      %c0_20 = arith.constant 0 : index
      %c0_21 = arith.constant 0 : index
      %c0_22 = arith.constant 0 : index
      %35 = vector.load %arg10[%c0_20, %c0_21, %c0_22] : memref<4x8x1xf32, #tpu.memory_space<vmem>>, vector<4x8x1xf32>
      %cst_23 = arith.constant dense<0xFF800000> : vector<4x8xf32>
      %36 = vector.multi_reduction <maximumf>, %34, %cst_23 [2] : vector<4x8x8xf32> to vector<4x8xf32>
      %37 = vector.shape_cast %36 : vector<4x8xf32> to vector<4x8x1xf32>
      %38 = arith.maximumf %35, %37 : vector<4x8x1xf32>
      %39 = arith.subf %35, %38 : vector<4x8x1xf32>
      %40 = math.exp %39 : vector<4x8x1xf32>
      %41 = vector.broadcast %38 : vector<4x8x1xf32> to vector<4x8x8xf32>
      %42 = arith.subf %34, %41 : vector<4x8x8xf32>
      %43 = math.exp %42 : vector<4x8x8xf32>
      %cst_24 = arith.constant 0.000000e+00 : f32
      %44 = vector.shape_cast %30 : vector<1x8x8xi1> to vector<1x8x8xi1>
      %45 = vector.broadcast %44 : vector<1x8x8xi1> to vector<4x8x8xi1>
      %46 = vector.broadcast %cst_24 : f32 to vector<4x8x8xf32>
      %47 = arith.select %45, %43, %46 : vector<4x8x8xi1>, vector<4x8x8xf32>
      %c0_25 = arith.constant 0 : index
      %c0_26 = arith.constant 0 : index
      %c0_27 = arith.constant 0 : index
      %48 = vector.load %arg11[%c0_25, %c0_26, %c0_27] : memref<4x8x1xf32, #tpu.memory_space<vmem>>, vector<4x8x1xf32>
      %49 = arith.mulf %40, %48 : vector<4x8x1xf32>
      %cst_28 = arith.constant dense<0.000000e+00> : vector<4x8xf32>
      %50 = vector.multi_reduction <add>, %47, %cst_28 [2] : vector<4x8x8xf32> to vector<4x8xf32>
      %51 = vector.shape_cast %50 : vector<4x8xf32> to vector<4x8x1xf32>
      %52 = arith.addf %49, %51 : vector<4x8x1xf32>
      %c0_29 = arith.constant 0 : index
      %c0_30 = arith.constant 0 : index
      %c0_31 = arith.constant 0 : index
      %53 = vector.load %arg11[%c0_29, %c0_30, %c0_31] : memref<4x8x1xf32, #tpu.memory_space<vmem>>, vector<4x8x1xf32>
      tpu.vector_store %arg11[%c0_29, %c0_30, %c0_31], %52 {strides = array<i32>} : memref<4x8x1xf32, #tpu.memory_space<vmem>>, vector<4x8x1xf32>,
      %c0_32 = arith.constant 0 : index
      %c0_33 = arith.constant 0 : index
      %c0_34 = arith.constant 0 : index
      %54 = vector.load %arg12[%c0_32, %c0_33, %c0_34] : memref<4x8x8xf32, #tpu.memory_space<vmem>>, vector<4x8x8xf32>
      %55 = vector.broadcast %40 : vector<4x8x1xf32> to vector<4x8x8xf32>
      %56 = arith.mulf %55, %54 : vector<4x8x8xf32>
      %57 = arith.truncf %47 : vector<4x8x8xf32> to vector<4x8x8xbf16>
      "tpu.trace_start"() <{level = 10 : i32, message = "hqk,hkd->hqd"}> : () -> ()
      %cst_35 = arith.constant dense<0.000000e+00> : vector<4x8x8xf32>
      %58 = tpu.matmul %57, %17, %cst_35 {dimension_numbers = #tpu.dot_dimension_numbers<[2], [1], [1], [2], [0, 0, 0, 1, 1, 2], [0], [0]>} : vector<4x8x8xbf16>, vector<4x8x8xbf16>, vector<4x8x8xf32> -> vector<4x8x8xf32>
      "tpu.trace_stop"() : () -> ()
      %59 = arith.addf %56, %58 : vector<4x8x8xf32>
      %c0_36 = arith.constant 0 : index
      %c0_37 = arith.constant 0 : index
      %c0_38 = arith.constant 0 : index
      %60 = vector.load %arg12[%c0_36, %c0_37, %c0_38] : memref<4x8x8xf32, #tpu.memory_space<vmem>>, vector<4x8x8xf32>
      tpu.vector_store %arg12[%c0_36, %c0_37, %c0_38], %59 {strides = array<i32>} : memref<4x8x8xf32, #tpu.memory_space<vmem>>, vector<4x8x8xf32>,
      %c0_39 = arith.constant 0 : index
      %c0_40 = arith.constant 0 : index
      %c0_41 = arith.constant 0 : index
      %61 = vector.load %arg10[%c0_39, %c0_40, %c0_41] : memref<4x8x1xf32, #tpu.memory_space<vmem>>, vector<4x8x1xf32>
      tpu.vector_store %arg10[%c0_39, %c0_40, %c0_41], %38 {strides = array<i32>} : memref<4x8x1xf32, #tpu.memory_space<vmem>>, vector<4x8x1xf32>,
    } else {
    }
    %c0_i32_3 = arith.constant 0 : i32
    %9 = arith.cmpi eq, %arg2, %c0_i32_3 : i32
    %10 = arith.extui %9 : i1 to i32
    %c0_i32_4 = arith.constant 0 : i32
    %11 = arith.cmpi ne, %10, %c0_i32_4 : i32
    scf.if %11 {
      %c0 = arith.constant 0 : index
      %c0_5 = arith.constant 0 : index
      %c0_6 = arith.constant 0 : index
      %12 = vector.load %arg11[%c0, %c0_5, %c0_6] : memref<4x8x1xf32, #tpu.memory_space<vmem>>, vector<4x8x1xf32>
      %13 = tpu.reciprocal %12 {approx = true} : vector<4x8x1xf32> -> vector<4x8x1xf32>
      %c0_7 = arith.constant 0 : index
      %c0_8 = arith.constant 0 : index
      %c0_9 = arith.constant 0 : index
      %14 = vector.load %arg12[%c0_7, %c0_8, %c0_9] : memref<4x8x8xf32, #tpu.memory_space<vmem>>, vector<4x8x8xf32>
      %15 = vector.broadcast %13 : vector<4x8x1xf32> to vector<4x8x8xf32>
      %16 = arith.mulf %14, %15 : vector<4x8x8xf32>
      %17 = arith.truncf %16 : vector<4x8x8xf32> to vector<4x8x8xbf16>
      %c0_10 = arith.constant 0 : index
      %c0_11 = arith.constant 0 : index
      %c0_12 = arith.constant 0 : index
      %18 = vector.load %arg7[%c0_10, %c0_11, %c0_12] : memref<4x8x32xbf16, #tpu.memory_space<vmem>>, vector<4x8x32xbf16>
      "tpu.trace_start"() <{level = 10 : i32, message = "hqd,hdc->hqc"}> : () -> ()
      %cst = arith.constant dense<0.000000e+00> : vector<4x8x32xf32>
      %19 = tpu.matmul %17, %18, %cst {dimension_numbers = #tpu.dot_dimension_numbers<[2], [1], [1], [2], [0, 0, 0, 1, 1, 2], [0], [0]>} : vector<4x8x8xbf16>, vector<4x8x32xbf16>, vector<4x8x32xf32> -> vector<4x8x32xf32>
      "tpu.trace_stop"() : () -> ()
      %cst_13 = arith.constant dense<0.000000e+00> : vector<8x32xf32>
      %20 = vector.multi_reduction <add>, %19, %cst_13 [0] : vector<4x8x32xf32> to vector<8x32xf32>
      %c0_14 = arith.constant 0 : index
      %c0_15 = arith.constant 0 : index
      %21 = vector.load %arg8[%c0_14, %c0_15] : memref<1x32xf32, #tpu.memory_space<vmem>>, vector<1x32xf32>
      %22 = vector.broadcast %21 : vector<1x32xf32> to vector<8x32xf32>
      %23 = arith.addf %20, %22 : vector<8x32xf32>
      %c0_16 = arith.constant 0 : index
      %c0_17 = arith.constant 0 : index
      %c0_18 = arith.constant 0 : index
      %24 = vector.load %arg3[%c0_16, %c0_17, %c0_18] : memref<1x8x32xbf16, #tpu.memory_space<vmem>>, vector<1x8x32xbf16>
      %25 = vector.shape_cast %24 : vector<1x8x32xbf16> to vector<8x32xbf16>
      %26 = arith.extf %25 : vector<8x32xbf16> to vector<8x32xf32>
      %27 = arith.addf %26, %23 : vector<8x32xf32>
      %28 = arith.truncf %27 : vector<8x32xf32> to vector<8x32xbf16>
      %c0_19 = arith.constant 0 : index
      %c0_20 = arith.constant 0 : index
      %c0_21 = arith.constant 0 : index
      %29 = vector.load %arg9[%c0_19, %c0_20, %c0_21] : memref<1x8x32xbf16, #tpu.memory_space<vmem>>, vector<1x8x32xbf16>
      %30 = vector.shape_cast %29 : vector<1x8x32xbf16> to vector<8x32xbf16>
      %31 = vector.shape_cast %28 : vector<8x32xbf16> to vector<1x8x32xbf16>
      tpu.vector_store %arg9[%c0_19, %c0_20, %c0_21], %31 {strides = array<i32>} : memref<1x8x32xbf16, #tpu.memory_space<vmem>>, vector<1x8x32xbf16>,
    } else {
    }
    return
  }
  func.func @transform_0(%arg0: i32, %arg1: i32, %arg2: i32) -> (i32, i32, i32) {
    %c0_i32 = arith.constant 0 : i32
    %c0_i32_0 = arith.constant 0 : i32
    return %arg0, %arg1, %c0_i32 : i32, i32, i32
  }
  func.func @transform_1(%arg0: i32, %arg1: i32, %arg2: i32) -> (i32, i32, i32, i32) {
    %c0_i32 = arith.constant 0 : i32
    %c0_i32_0 = arith.constant 0 : i32
    %c0_i32_1 = arith.constant 0 : i32
    return %arg0, %c0_i32, %arg1, %c0_i32_0 : i32, i32, i32, i32
  }
  func.func @transform_2(%arg0: i32, %arg1: i32, %arg2: i32) -> (i32, i32, i32, i32) {
    %c0_i32 = arith.constant 0 : i32
    %c0_i32_0 = arith.constant 0 : i32
    %c0_i32_1 = arith.constant 0 : i32
    return %arg0, %c0_i32, %arg2, %c0_i32_0 : i32, i32, i32, i32
  }
  func.func @transform_3(%arg0: i32, %arg1: i32, %arg2: i32) -> (i32, i32, i32, i32) {
    %c0_i32 = arith.constant 0 : i32
    %c0_i32_0 = arith.constant 0 : i32
    %c0_i32_1 = arith.constant 0 : i32
    return %arg0, %c0_i32, %arg2, %c0_i32_0 : i32, i32, i32, i32
  }
  func.func @transform_4(%arg0: i32, %arg1: i32, %arg2: i32) -> (i32, i32, i32) {
    %c0_i32 = arith.constant 0 : i32
    %c0_i32_0 = arith.constant 0 : i32
    %c0_i32_1 = arith.constant 0 : i32
    %c0_i32_2 = arith.constant 0 : i32
    return %c0_i32, %c0_i32_0, %c0_i32_1 : i32, i32, i32
  }
  func.func @transform_5(%arg0: i32, %arg1: i32, %arg2: i32) -> (i32, i32) {
    %c0_i32 = arith.constant 0 : i32
    %c0_i32_0 = arith.constant 0 : i32
    %c0_i32_1 = arith.constant 0 : i32
    return %c0_i32, %c0_i32_0 : i32, i32
  }
  func.func @transform_6(%arg0: i32, %arg1: i32, %arg2: i32) -> (i32, i32, i32) {
    %c0_i32 = arith.constant 0 : i32
    %c0_i32_0 = arith.constant 0 : i32
    return %arg0, %arg1, %c0_i32 : i32, i32, i32
  }
}

</mosaic_0001>

<llo_original>
// kernel: _lambda_.9
$region0: #{_lambda_.9}
  #allocation0 [shape = 'u32[]', space=smem, size = 0x4, offset = 0x4, fixed_abs, tag = 'smem constant byte address 0x4 - core index']
  #allocation1 [shape = 'u32[144,128]{1,0:T(1,128)}', space=vmem, size = 0x12000, scoped, tag = 'internal scratch']
  %s0 = inlined_call_operand.vmem [shape: bf16[2,8,32], index: 0, kind: input, shape index: {}]
  %s1 = inlined_call_operand.vmem [shape: f32[1,32], index: 1, kind: input, shape index: {}]
  %s2 = inlined_call_operand.vmem [shape: f32[1,32], index: 2, kind: input, shape index: {}]
  %s3 = inlined_call_operand.vmem [shape: bf16[32,128], index: 3, kind: input, shape index: {}]
  %s4 = inlined_call_operand.vmem [shape: f32[1,128], index: 4, kind: input, shape index: {}]
  %s5 = inlined_call_operand.vmem [shape: bf16[128,32], index: 5, kind: input, shape index: {}]
  %s6 = inlined_call_operand.vmem [shape: f32[1,32], index: 6, kind: input, shape index: {}]
  %s7 = inlined_call_operand.vmem [shape: bf16[2,8,32], index: 7, kind: output, shape index: {}]
  %s8 = sld [smem:[#allocation0]]
  $region61: #{_lambda_.9} parent=0
    _
  %s10 = ssub.s32 1, %s8
  %s11 = scalar_select 0, %s10, %s8
  loop: start=0, step=1, limit=4
  $region2: #{_lambda_.9} parent=0 // loop_pre_header
    _
  $region3: #{_lambda_.9} parent=0 // loop_header
    %s13 = sphi 0, %s17
    %p14 = scmp.ge.s32.totalorder %s13, 4
    %s20 = sphi 0, %s32
    %s21 = sphi 0, %s28
    %s22 = sphi 0, %s20
    %s23 = sphi 0, %s21
    %s24 = sphi 0, %s22
    %s25 = sphi 0, %s23
    %s37 = sphi 0, %s39
    %s40 = sphi 0, %s37
    %s41 = sphi 0, %s40
    %s57 = sphi 0, %s41
    %s61 = sphi 0, %s61
    %s63 = sphi 0, %s61
    %s64 = sphi 0, %s63
    %s78 = sphi 0, %s64
    %s82 = sphi 0, %s82
    %s84 = sphi 0, %s82
    %s85 = sphi 0, %s84
    %s99 = sphi 0, %s85
    %s103 = sphi 0, %s103
    %s105 = sphi 0, %s103
    %s106 = sphi 0, %s105
    %s120 = sphi 0, %s106
    %s124 = sphi 0, %s124
    %s126 = sphi 0, %s124
    %s127 = sphi 0, %s126
    %s141 = sphi 0, %s127
    %s145 = sphi 0, %s145
    %s147 = sphi 0, %s145
    %s148 = sphi 0, %s147
    %s162 = sphi 0, %s148
    %s166 = sphi 0, %s166
    %s168 = sphi 0, %s166
    %s169 = sphi 0, %s168
    %s183 = sphi 0, %s169
    %s191 = sphi 0, %s193
    %s194 = sphi 0, %s191
    %s195 = sphi 0, %s194
    %s211 = sphi 0, %s195
  $region4: #{_lambda_.9} parent=0 // loop_header_branch
    %16 = sbr.rel (%p14) target = $region8
  $region5: #{_lambda_.9} parent=0 // loop_body
    %s18 = ssub.s32 %s13, 1
    %s19 = ssub.s32 %s13, 2
    %s26 = sadd.s32 1, %s21
    %p27 = scmp.ge.s32.totalorder %s26, 1
    %s28 = scalar_select %p27, 0, %s26
    %s29 = sadd.s32 1, %s20
    %s30 = scalar_select %p27, %s29, %s20
    %p31 = scmp.ge.s32.totalorder %s30, 2
    %s32 = scalar_select %p31, 0, %s30
    %s33 = ssub.s32 %s20, %s32
    %s34 = ssub.s32 %s21, %s28
    %s35 = sor.u32 %s33, %s34
    %p36 = scmp.eq.s32.totalorder %s35, 0
    %s38 = sadd.s32 %s37, 1
    %s39 = scalar_select %p36, %s37, %s38
    %p42 = pneg %p36
    %p43 = scmp.eq.s32.totalorder %s13, 1
    %p44 = por %p42, %p43
    %p45 = scmp.ne.s32.totalorder %s37, %s40
    %p46 = scmp.eq.s32.totalorder %s13, 0
    %p47 = por %p45, %p46
    %p48 = scmp.ne.s32.totalorder %s37, %s40
    %p49 = scmp.eq.s32.totalorder %s18, 1
    %p50 = por %p48, %p49
    %p51 = scmp.ne.s32.totalorder %s40, %s41
    %p52 = scmp.eq.s32.totalorder %s18, 0
    %p53 = por %p51, %p52
    %p54 = scmp.ne.s32.totalorder %s40, %s41
    %p55 = scmp.eq.s32.totalorder %s19, 1
    %p56 = por %p54, %p55
    %p58 = scmp.ne.s32.totalorder %s41, %s57
    %p59 = scmp.eq.s32.totalorder %s19, 0
    %p60 = por %p58, %p59
    %s62 = sadd.s32 %s61, 1
    %p65 = scmp.eq.s32.totalorder %s13, 1
    %p66 = scmp.ne.s32.totalorder %s61, %s63
    %p67 = scmp.eq.s32.totalorder %s13, 0
    %p68 = por %p66, %p67
    %p69 = scmp.ne.s32.totalorder %s61, %s63
    %p70 = scmp.eq.s32.totalorder %s18, 1
    %p71 = por %p69, %p70
    %p72 = scmp.ne.s32.totalorder %s63, %s64
    %p73 = scmp.eq.s32.totalorder %s18, 0
    %p74 = por %p72, %p73
    %p75 = scmp.ne.s32.totalorder %s63, %s64
    %p76 = scmp.eq.s32.totalorder %s19, 1
    %p77 = por %p75, %p76
    %p79 = scmp.ne.s32.totalorder %s64, %s78
    %p80 = scmp.eq.s32.totalorder %s19, 0
    %p81 = por %p79, %p80
    %s83 = sadd.s32 %s82, 1
    %p86 = scmp.eq.s32.totalorder %s13, 1
    %p87 = scmp.ne.s32.totalorder %s82, %s84
    %p88 = scmp.eq.s32.totalorder %s13, 0
    %p89 = por %p87, %p88
    %p90 = scmp.ne.s32.totalorder %s82, %s84
    %p91 = scmp.eq.s32.totalorder %s18, 1
    %p92 = por %p90, %p91
    %p93 = scmp.ne.s32.totalorder %s84, %s85
    %p94 = scmp.eq.s32.totalorder %s18, 0
    %p95 = por %p93, %p94
    %p96 = scmp.ne.s32.totalorder %s84, %s85
    %p97 = scmp.eq.s32.totalorder %s19, 1
    %p98 = por %p96, %p97
    %p100 = scmp.ne.s32.totalorder %s85, %s99
    %p101 = scmp.eq.s32.totalorder %s19, 0
    %p102 = por %p100, %p101
    %s104 = sadd.s32 %s103, 1
    %p107 = scmp.eq.s32.totalorder %s13, 1
    %p108 = scmp.ne.s32.totalorder %s103, %s105
    %p109 = scmp.eq.s32.totalorder %s13, 0
    %p110 = por %p108, %p109
    %p111 = scmp.ne.s32.totalorder %s103, %s105
    %p112 = scmp.eq.s32.totalorder %s18, 1
    %p113 = por %p111, %p112
    %p114 = scmp.ne.s32.totalorder %s105, %s106
    %p115 = scmp.eq.s32.totalorder %s18, 0
    %p116 = por %p114, %p115
    %p117 = scmp.ne.s32.totalorder %s105, %s106
    %p118 = scmp.eq.s32.totalorder %s19, 1
    %p119 = por %p117, %p118
    %p121 = scmp.ne.s32.totalorder %s106, %s120
    %p122 = scmp.eq.s32.totalorder %s19, 0
    %p123 = por %p121, %p122
    %s125 = sadd.s32 %s124, 1
    %p128 = scmp.eq.s32.totalorder %s13, 1
    %p129 = scmp.ne.s32.totalorder %s124, %s126
    %p130 = scmp.eq.s32.totalorder %s13, 0
    %p131 = por %p129, %p130
    %p132 = scmp.ne.s32.totalorder %s124, %s126
    %p133 = scmp.eq.s32.totalorder %s18, 1
    %p134 = por %p132, %p133
    %p135 = scmp.ne.s32.totalorder %s126, %s127
    %p136 = scmp.eq.s32.totalorder %s18, 0
    %p137 = por %p135, %p136
    %p138 = scmp.ne.s32.totalorder %s126, %s127
    %p139 = scmp.eq.s32.totalorder %s19, 1
    %p140 = por %p138, %p139
    %p142 = scmp.ne.s32.totalorder %s127, %s141
    %p143 = scmp.eq.s32.totalorder %s19, 0
    %p144 = por %p142, %p143
    %s146 = sadd.s32 %s145, 1
    %p149 = scmp.eq.s32.totalorder %s13, 1
    %p150 = scmp.ne.s32.totalorder %s145, %s147
    %p151 = scmp.eq.s32.totalorder %s13, 0
    %p152 = por %p150, %p151
    %p153 = scmp.ne.s32.totalorder %s145, %s147
    %p154 = scmp.eq.s32.totalorder %s18, 1
    %p155 = por %p153, %p154
    %p156 = scmp.ne.s32.totalorder %s147, %s148
    %p157 = scmp.eq.s32.totalorder %s18, 0
    %p158 = por %p156, %p157
    %p159 = scmp.ne.s32.totalorder %s147, %s148
    %p160 = scmp.eq.s32.totalorder %s19, 1
    %p161 = por %p159, %p160
    %p163 = scmp.ne.s32.totalorder %s148, %s162
    %p164 = scmp.eq.s32.totalorder %s19, 0
    %p165 = por %p163, %p164
    %s167 = sadd.s32 %s166, 1
    %p170 = scmp.eq.s32.totalorder %s13, 1
    %p171 = scmp.ne.s32.totalorder %s166, %s168
    %p172 = scmp.eq.s32.totalorder %s13, 0
    %p173 = por %p171, %p172
    %p174 = scmp.ne.s32.totalorder %s166, %s168
    %p175 = scmp.eq.s32.totalorder %s18, 1
    %p176 = por %p174, %p175
    %p177 = scmp.ne.s32.totalorder %s168, %s169
    %p178 = scmp.eq.s32.totalorder %s18, 0
    %p179 = por %p177, %p178
    %p180 = scmp.ne.s32.totalorder %s168, %s169
    %p181 = scmp.eq.s32.totalorder %s19, 1
    %p182 = por %p180, %p181
    %p184 = scmp.ne.s32.totalorder %s169, %s183
    %p185 = scmp.eq.s32.totalorder %s19, 0
    %p186 = por %p184, %p185
    %s187 = ssub.s32 %s20, %s32
    %s188 = ssub.s32 %s21, %s28
    %s189 = sor.u32 %s187, %s188
    %p190 = scmp.eq.s32.totalorder %s189, 0
    %s192 = sadd.s32 %s191, 1
    %s193 = scalar_select %p190, %s191, %s192
    %p196 = pneg %p190
    %p197 = scmp.eq.s32.totalorder %s13, 1
    %p198 = por %p196, %p197
    %p199 = scmp.ne.s32.totalorder %s191, %s194
    %p200 = scmp.eq.s32.totalorder %s13, 0
    %p201 = por %p199, %p200
    %p202 = scmp.ne.s32.totalorder %s191, %s194
    %p203 = scmp.eq.s32.totalorder %s18, 1
    %p204 = por %p202, %p203
    %p205 = scmp.ne.s32.totalorder %s194, %s195
    %p206 = scmp.eq.s32.totalorder %s18, 0
    %p207 = por %p205, %p206
    %p208 = scmp.ne.s32.totalorder %s194, %s195
    %p209 = scmp.eq.s32.totalorder %s19, 1
    %p210 = por %p208, %p209
    %p212 = scmp.ne.s32.totalorder %s195, %s211
    %p213 = scmp.eq.s32.totalorder %s19, 0
    %p214 = por %p212, %p213
    %p215 = scmp.le.s32.totalorder 1, %s13
    %p216 = scmp.lt.s32.totalorder %s13, 3
    %p217 = pnand %p215, %p216
    %p218 = pneg %p217
    // Predicated region
    $region9: #{_lambda_.9} parent=5 // pred_check
      _
    $region10: #{_lambda_.9} parent=5 // pred_check_branch
      %220 = sbr.rel (%p217) target = $region12
    $region11: #{_lambda_.9} parent=5 // pred_region
      %s221 = ssub.s32 %s13, 1
      // Predicated region
      $region13: #{_lambda_.9} parent=11 // pred_check
        %p222 = pneg %p74
      $region14: #{_lambda_.9} parent=11 // pred_check_branch
        %224 = sbr.rel (%p222) target = $region16
      $region15: #{_lambda_.9} parent=11 // pred_region
        _
      $region16: #{_lambda_.9} parent=11 // pred_fallthru
        _
      // Predicated region
      $region17: #{_lambda_.9} parent=11 // pred_check
        %p225 = pneg %p95
      $region18: #{_lambda_.9} parent=11 // pred_check_branch
        %227 = sbr.rel (%p225) target = $region20
      $region19: #{_lambda_.9} parent=11 // pred_region
        _
      $region20: #{_lambda_.9} parent=11 // pred_fallthru
        _
      // Predicated region
      $region21: #{_lambda_.9} parent=11 // pred_check
        %p228 = pneg %p116
      $region22: #{_lambda_.9} parent=11 // pred_check_branch
        %230 = sbr.rel (%p228) target = $region24
      $region23: #{_lambda_.9} parent=11 // pred_region
        _
      $region24: #{_lambda_.9} parent=11 // pred_fallthru
        _
      // Predicated region
      $region25: #{_lambda_.9} parent=11 // pred_check
        %p231 = pneg %p137
      $region26: #{_lambda_.9} parent=11 // pred_check_branch
        %233 = sbr.rel (%p231) target = $region28
      $region27: #{_lambda_.9} parent=11 // pred_region
        _
      $region28: #{_lambda_.9} parent=11 // pred_fallthru
        _
      // Predicated region
      $region29: #{_lambda_.9} parent=11 // pred_check
        %p234 = pneg %p158
      $region30: #{_lambda_.9} parent=11 // pred_check_branch
        %236 = sbr.rel (%p234) target = $region32
      $region31: #{_lambda_.9} parent=11 // pred_region
        _
      $region32: #{_lambda_.9} parent=11 // pred_fallthru
        _
      // Predicated region
      $region33: #{_lambda_.9} parent=11 // pred_check
        %p237 = pneg %p179
      $region34: #{_lambda_.9} parent=11 // pred_check_branch
        %239 = sbr.rel (%p237) target = $region36
      $region35: #{_lambda_.9} parent=11 // pred_region
        _
      $region36: #{_lambda_.9} parent=11 // pred_fallthru
        _
    $region12: #{_lambda_.9} parent=5 // pred_fallthru
      _
    %p240 = scmp.lt.s32.totalorder %s13, 2
    // Predicated region
    $region37: #{_lambda_.9} parent=5 // pred_check
      %p241 = pneg %p240
    $region38: #{_lambda_.9} parent=5 // pred_check_branch
      %243 = sbr.rel (%p241) target = $region40
    $region39: #{_lambda_.9} parent=5 // pred_region
      // Predicated region
      $region41: #{_lambda_.9} parent=39 // pred_check
        %p244 = pneg %p47
      $region42: #{_lambda_.9} parent=39 // pred_check_branch
        %246 = sbr.rel (%p244) target = $region44
      $region43: #{_lambda_.9} parent=39 // pred_region
        %p247 = scmp.lt.s32.totalorder %s20, 1
        %s248 = scalar_select %p247, %s20, 1
        %p249 = scmp.lt.s32.totalorder %s21, 0
        %s250 = scalar_select %p249, %s21, 0
        %s251 = sadd.s32 %s250, %s248
        %s252 = smul.addr %s251, 4
        %s253 = scalar_lea.vmem %s0, %s252
      $region44: #{_lambda_.9} parent=39 // pred_fallthru
        _
    $region40: #{_lambda_.9} parent=5 // pred_fallthru
      _
    %p254 = scmp.le.s32.totalorder 1, %s13
    %p255 = scmp.lt.s32.totalorder %s13, 3
    %p256 = pnand %p254, %p255
    %p257 = pneg %p256
    // Predicated region
    $region45: #{_lambda_.9} parent=5 // pred_check
      _
    $region46: #{_lambda_.9} parent=5 // pred_check_branch
      %259 = sbr.rel (%p256) target = $region48
    $region47: #{_lambda_.9} parent=5 // pred_region
      %s260 = ssub.s32 %s13, 1
      %p261 = scmp.lt.s32.totalorder %s22, 1
      %s262 = scalar_select %p261, %s22, 1
      %p263 = scmp.lt.s32.totalorder %s23, 0
      %s264 = scalar_select %p263, %s23, 0
      %s265 = sadd.s32 %s264, %s262
      %s266 = smul.addr %s265, 4
      %s267 = scalar_lea.vmem %s0, %s266
      %p268 = pneg %p53
      %p269 = pneg %p50
      %p270 = pneg %p74
      %p271 = pneg %p71
      %p272 = pneg %p95
      %p273 = pneg %p92
      %p274 = pneg %p116
      %p275 = pneg %p113
      %p276 = pneg %p137
      %p277 = pneg %p134
      %p278 = pneg %p158
      %p279 = pneg %p155
      %p280 = pneg %p179
      %p281 = pneg %p176
      %p282 = pneg %p207
      %p283 = pneg %p204
      %p284 = scmp.lt.s32.totalorder %s22, 1
      %s285 = scalar_select %p284, %s22, 1
      %p286 = scmp.lt.s32.totalorder %s23, 0
      %s287 = scalar_select %p286, %s23, 0
      %s288 = sadd.s32 %s287, %s285
      %s289 = smul.addr %s288, 4
      %s290 = scalar_lea.vmem %s7, %s289
      %p291 = scmp.lt.s32.totalorder %s22, 1
      %s292 = scalar_select %p291, %s22, 1
      %p293 = scmp.lt.s32.totalorder %s23, 0
      %s294 = scalar_select %p293, %s23, 0
      %s295 = sadd.s32 %s294, %s292
      %s296 = smul.addr %s295, 4
      %s297 = scalar_lea.vmem %s0, %s296
      %p298 = scmp.lt.s32.totalorder %s22, 1
      %s299 = scalar_select %p298, %s22, 1
      %p300 = scmp.lt.s32.totalorder %s23, 0
      %s301 = scalar_select %p300, %s23, 0
      %s302 = sadd.s32 %s301, %s299
      %s303 = smul.addr %s302, 4
      %s304 = scalar_lea.vmem %s7, %s303
      %v306 = vld [vmem:[%s297] sm:$0xf]
      %v307 = vld [vmem:[%s1] sm:$0x1]
      %v308 = vld [vmem:[%s2] sm:$0x1]
      %v309 = vunpack.c.l.bf16 %v306
      %vm310 = vcmask 261120
      %v311 = vsel %vm310, %v309, 0.0
      %312 = vadd.xlane.f32.xlu0 %v311
      %v313 = vpop.xlane.xlu0 %312
      %v314 = vrcp.pop 32.0
      %v315 = vmul.f32 %v313, %v314
      %v316 = vsub.f32 %v309, %v315
      %v317 = vmul.f32 %v316, %v316
      %v318 = vsel %vm310, %v317, 0.0
      %319 = vadd.xlane.f32.xlu0 %v318
      %v320 = vpop.xlane.xlu0 %319
      %v321 = vmul.f32 %v320, %v314
      %v322 = vadd.f32 %v321, 1e-05
      %v323 = vrsqrt.pop %v322
      %v324 = vmul.f32 %v316, %v323
      %v326 = vlaneseq
      %v327 = vshrl.u32 %v326, 7
      %v328 = vsub.s32 0, %v327
      %v329 = vrot.slane %v307, %v328
      %v331 = vmul.f32 %v324, %v329
      %v333 = vlaneseq
      %v334 = vshrl.u32 %v333, 7
      %v335 = vsub.s32 0, %v334
      %v336 = vrot.slane %v308, %v335
      %v338 = vadd.f32 %v331, %v336
      %v339 = vpack.c.bf16 %v338, %v338
      %v340 = vld [vmem:[%s3] sm:$0xf]
      %v341 = vld [vmem:[%s3 + $0x4] sm:$0xf]
      %v342 = vld [vmem:[%s3 + $0x8] sm:$0xf]
      %v343 = vld [vmem:[%s3 + $0xc] sm:$0xf]
      %v344 = vld [vmem:[%s4] sm:$0x1]
      %v346 = vlaneseq
      %v347 = vshrl.u32 %v346, 7
      %v348 = vsub.s32 0, %v347
      %v349 = vrot.slane %v344, %v348
      %v355 = vunpack.c.l.b16 %v340
      %v356 = vunpack.c.l.b16 %v341
      %v357 = vunpack.c.l.b16 %v342
      %v358 = vunpack.c.l.b16 %v343
      %v359 = vpack.c.b16 %v356, %v355
      %v360 = vpack.c.b16 %v358, %v357
      %v364 = vsel %vm310, %v339, 0
      %366 = vmatprep.subr.bf16.mxu0 0
      %367 = vmatpush1.bf16.msra.mxu0 %v359
      %368 = vmatprep.subr.bf16.mxu0 0
      %369 = vmatpush1.bf16.msra.mxu0 %v360
      %370 = vmatprep.subr.bf16.mxu0 0
      %371 = vmatpush1.bf16.msra.mxu0 0
      %372 = vmatprep.subr.bf16.mxu0 0
      %373 = vmatpush1.bf16.msra.mxu0 0
      %374 = vmatprep.subr.bf16.mxu0 0
      %375 = vmatpush1.bf16.msra.mxu0 0
      %376 = vmatprep.subr.bf16.mxu0 0
      %377 = vmatpush1.bf16.msra.mxu0 0
      %378 = vmatprep.subr.bf16.mxu0 0
      %379 = vmatpush1.bf16.msra.mxu0 0
      %380 = vmatprep.subr.bf16.mxu0 0
      %381 = vmatpush1.bf16.msra.mxu0 0
      %382 = vmatprep.subr.bf16.mxu0 0
      %383 = vmatpush1.bf16.msra.mxu0 0
      %384 = vmatprep.subr.bf16.mxu0 0
      %385 = vmatpush1.bf16.msra.mxu0 0
      %386 = vmatprep.subr.bf16.mxu0 0
      %387 = vmatpush1.bf16.msra.mxu0 0
      %388 = vmatprep.subr.bf16.mxu0 0
      %389 = vmatpush1.bf16.msra.mxu0 0
      %390 = vmatprep.subr.bf16.mxu0 0
      %391 = vmatpush1.bf16.msra.mxu0 0
      %392 = vmatprep.subr.bf16.mxu0 0
      %393 = vmatpush1.bf16.msra.mxu0 0
      %394 = vmatprep.subr.bf16.mxu0 0
      %395 = vmatpush1.bf16.msra.mxu0 0
      %396 = vmatprep.subr.bf16.mxu0 0
      %397 = vmatpush1.bf16.msra.mxu0 0
      %398 = vmatprep.mubr.bf16.mxu0 0
      %399 = vmatmul.mubr.bf16.gmra.mrb[0].mxu0 %v364
      %v400 = vpop.f32.mrb[0].mxu0
      %v401 = vadd.f32 %v349, %v400
      %v402 = vpop.f32.mrb[0].mxu0
      %v403 = vpop.f32.mrb[0].mxu0
      %v404 = vpop.f32.mrb[0].mxu0
      %405 = vdwg.mxu0
      %v406 = vmul.f32 %v401, 0.5
      %v407 = vmul.f32 %v401, 0.044715
      %v408 = vmul.f32 %v407, %v401
      %v409 = vmul.f32 %v408, %v401
      %v410 = vadd.f32 %v401, %v409
      %v411 = vmul.f32 %v410, 0.7978846
      %v412 = vtanh.pop %v411
      %v413 = vadd.f32 %v412, 1.0
      %v414 = vmul.f32 %v406, %v413
      %v415 = vpack.c.bf16 %v414, %v414
      %v416 = vld [vmem:[%s5] sm:$0xf]
      %v417 = vld [vmem:[%s5 + $0x4] sm:$0xf]
      %v418 = vld [vmem:[%s5 + $0x8] sm:$0xf]
      %v419 = vld [vmem:[%s5 + $0xc] sm:$0xf]
      %v420 = vld [vmem:[%s5 + $0x10] sm:$0xf]
      %v421 = vld [vmem:[%s5 + $0x14] sm:$0xf]
      %v422 = vld [vmem:[%s5 + $0x18] sm:$0xf]
      %v423 = vld [vmem:[%s5 + $0x1c] sm:$0xf]
      %v424 = vld [vmem:[%s5 + $0x20] sm:$0xf]
      %v425 = vld [vmem:[%s5 + $0x24] sm:$0xf]
      %v426 = vld [vmem:[%s5 + $0x28] sm:$0xf]
      %v427 = vld [vmem:[%s5 + $0x2c] sm:$0xf]
      %v428 = vld [vmem:[%s5 + $0x30] sm:$0xf]
      %v429 = vld [vmem:[%s5 + $0x34] sm:$0xf]
      %v430 = vld [vmem:[%s5 + $0x38] sm:$0xf]
      %v431 = vld [vmem:[%s5 + $0x3c] sm:$0xf]
      %v432 = vld [vmem:[%s6] sm:$0x1]
      %v434 = vlaneseq
      %v435 = vshrl.u32 %v434, 7
      %v436 = vsub.s32 0, %v435
      %v437 = vrot.slane %v432, %v436
      %v455 = vunpack.c.l.b16 %v416
      %v456 = vunpack.c.l.b16 %v417
      %v457 = vunpack.c.l.b16 %v418
      %v458 = vunpack.c.l.b16 %v419
      %v459 = vunpack.c.l.b16 %v420
      %v460 = vunpack.c.l.b16 %v421
      %v461 = vunpack.c.l.b16 %v422
      %v462 = vunpack.c.l.b16 %v423
      %v463 = vunpack.c.l.b16 %v424
      %v464 = vunpack.c.l.b16 %v425
      %v465 = vunpack.c.l.b16 %v426
      %v466 = vunpack.c.l.b16 %v427
      %v467 = vunpack.c.l.b16 %v428
      %v468 = vunpack.c.l.b16 %v429
      %v469 = vunpack.c.l.b16 %v430
      %v470 = vunpack.c.l.b16 %v431
      %v471 = vpack.c.b16 %v456, %v455
      %v472 = vpack.c.b16 %v458, %v457
      %v473 = vpack.c.b16 %v460, %v459
      %v474 = vpack.c.b16 %v462, %v461
      %v475 = vpack.c.b16 %v464, %v463
      %v476 = vpack.c.b16 %v466, %v465
      %v477 = vpack.c.b16 %v468, %v467
      %v478 = vpack.c.b16 %v470, %v469
      %487 = vmatprep.subr.bf16.mxu0 0
      %488 = vmatpush1.bf16.msra.mxu0 %v471
      %489 = vmatprep.subr.bf16.mxu0 0
      %490 = vmatpush1.bf16.msra.mxu0 %v472
      %491 = vmatprep.subr.bf16.mxu0 0
      %492 = vmatpush1.bf16.msra.mxu0 %v473
      %493 = vmatprep.subr.bf16.mxu0 0
      %494 = vmatpush1.bf16.msra.mxu0 %v474
      %495 = vmatprep.subr.bf16.mxu0 0
      %496 = vmatpush1.bf16.msra.mxu0 %v475
      %497 = vmatprep.subr.bf16.mxu0 0
      %498 = vmatpush1.bf16.msra.mxu0 %v476
      %499 = vmatprep.subr.bf16.mxu0 0
      %500 = vmatpush1.bf16.msra.mxu0 %v477
      %501 = vmatprep.subr.bf16.mxu0 0
      %502 = vmatpush1.bf16.msra.mxu0 %v478
      %503 = vmatprep.subr.bf16.mxu0 0
      %504 = vmatpush1.bf16.msra.mxu0 0
      %505 = vmatprep.subr.bf16.mxu0 0
      %506 = vmatpush1.bf16.msra.mxu0 0
      %507 = vmatprep.subr.bf16.mxu0 0
      %508 = vmatpush1.bf16.msra.mxu0 0
      %509 = vmatprep.subr.bf16.mxu0 0
      %510 = vmatpush1.bf16.msra.mxu0 0
      %511 = vmatprep.subr.bf16.mxu0 0
      %512 = vmatpush1.bf16.msra.mxu0 0
      %513 = vmatprep.subr.bf16.mxu0 0
      %514 = vmatpush1.bf16.msra.mxu0 0
      %515 = vmatprep.subr.bf16.mxu0 0
      %516 = vmatpush1.bf16.msra.mxu0 0
      %517 = vmatprep.subr.bf16.mxu0 0
      %518 = vmatpush1.bf16.msra.mxu0 0
      %519 = vmatprep.mubr.bf16.mxu0 0
      %520 = vmatmul.mubr.bf16.gmra.mrb[0].mxu0 %v415
      %v521 = vpop.f32.mrb[0].mxu0
      %v522 = vadd.f32 %v437, %v521
      %v523 = vpop.f32.mrb[0].mxu0
      %v524 = vpop.f32.mrb[0].mxu0
      %v525 = vpop.f32.mrb[0].mxu0
      %526 = vdwg.mxu0
      %v527 = vadd.f32 %v309, %v522
      %v528 = vpack.c.bf16 %v527, %v527
      %vm529 = vcmask 257024
      %530 = vst.msk [vmem:[%s304] sm:$0xf] %vm529, %v528
      %p531 = scmp.lt.s32.totalorder %s22, 1
      %s532 = scalar_select %p531, %s22, 1
      %p533 = scmp.lt.s32.totalorder %s23, 0
      %s534 = scalar_select %p533, %s23, 0
      %s535 = sadd.s32 %s534, %s532
      %s536 = smul.addr %s535, 4
      %s537 = scalar_lea.vmem %s7, %s536
      // Predicated region
      $region49: #{_lambda_.9} parent=47 // pred_check
        %p538 = pneg %p204
      $region50: #{_lambda_.9} parent=47 // pred_check_branch
        %540 = sbr.rel (%p538) target = $region52
      $region51: #{_lambda_.9} parent=47 // pred_region
        _
      $region52: #{_lambda_.9} parent=47 // pred_fallthru
        _
    $region48: #{_lambda_.9} parent=5 // pred_fallthru
      _
    %p541 = scmp.le.s32.totalorder 2, %s13
    // Predicated region
    $region53: #{_lambda_.9} parent=5 // pred_check
      %p542 = pneg %p541
    $region54: #{_lambda_.9} parent=5 // pred_check_branch
      %544 = sbr.rel (%p542) target = $region56
    $region55: #{_lambda_.9} parent=5 // pred_region
      %s545 = ssub.s32 %s13, 2
      // Predicated region
      $region57: #{_lambda_.9} parent=55 // pred_check
        %p546 = pneg %p210
      $region58: #{_lambda_.9} parent=55 // pred_check_branch
        %548 = sbr.rel (%p546) target = $region60
      $region59: #{_lambda_.9} parent=55 // pred_region
        %p549 = scmp.lt.s32.totalorder %s24, 1
        %s550 = scalar_select %p549, %s24, 1
        %p551 = scmp.lt.s32.totalorder %s25, 0
        %s552 = scalar_select %p551, %s25, 0
        %s553 = sadd.s32 %s552, %s550
        %s554 = smul.addr %s553, 4
        %s555 = scalar_lea.vmem %s7, %s554
      $region60: #{_lambda_.9} parent=55 // pred_fallthru
        _
    $region56: #{_lambda_.9} parent=5 // pred_fallthru
      _
  $region6: #{_lambda_.9} parent=0 // loop_footer
    %s17 = sadd.s32 1, %s13
  $region7: #{_lambda_.9} parent=0 // loop_footer_branch
    %12 = sbr.rel target = $region3
  $region8: #{_lambda_.9} parent=0 // loop_exit
    _

// kernel: _lambda_.7
$region0: #{_lambda_.7}
  #allocation0 [shape = 'u32[]', space=smem, size = 0x4, offset = 0x4, fixed_abs, tag = 'smem constant byte address 0x4 - core index']
  #allocation1 [shape = 'u32[144,128]{1,0:T(1,128)}', space=vmem, size = 0x12000, scoped, tag = 'internal scratch']
  %s0 = inlined_call_operand.vmem [shape: bf16[2,8,32], index: 0, kind: input, shape index: {}]
  %s1 = inlined_call_operand.vmem [shape: f32[1,32], index: 1, kind: input, shape index: {}]
  %s2 = inlined_call_operand.vmem [shape: f32[1,32], index: 2, kind: input, shape index: {}]
  %s3 = inlined_call_operand.vmem [shape: bf16[32,96], index: 3, kind: input, shape index: {}]
  %s4 = inlined_call_operand.vmem [shape: f32[1,96], index: 4, kind: input, shape index: {}]
  %s5 = inlined_call_operand.vmem [shape: bf16[2,4,8,8], index: 5, kind: output, shape index: {0}]
  %s6 = inlined_call_operand.vmem [shape: bf16[2,4,8,8], index: 6, kind: output, shape index: {1}]
  %s7 = inlined_call_operand.vmem [shape: bf16[2,4,8,8], index: 7, kind: output, shape index: {2}]
  %8 = xla_tuple %s5, %s6, %s7
  %s9 = sld [smem:[#allocation0]]
  $region69: #{_lambda_.7} parent=0
    _
  %s11 = ssub.s32 1, %s9
  %s12 = scalar_select 0, %s11, %s9
  loop: start=0, step=1, limit=4
  $region2: #{_lambda_.7} parent=0 // loop_pre_header
    _
  $region3: #{_lambda_.7} parent=0 // loop_header
    %s14 = sphi 0, %s18
    %p15 = scmp.ge.s32.totalorder %s14, 4
    %s21 = sphi 0, %s33
    %s22 = sphi 0, %s29
    %s23 = sphi 0, %s21
    %s24 = sphi 0, %s22
    %s25 = sphi 0, %s23
    %s26 = sphi 0, %s24
    %s38 = sphi 0, %s40
    %s41 = sphi 0, %s38
    %s42 = sphi 0, %s41
    %s58 = sphi 0, %s42
    %s62 = sphi 0, %s62
    %s64 = sphi 0, %s62
    %s65 = sphi 0, %s64
    %s79 = sphi 0, %s65
    %s83 = sphi 0, %s83
    %s85 = sphi 0, %s83
    %s86 = sphi 0, %s85
    %s100 = sphi 0, %s86
    %s104 = sphi 0, %s104
    %s106 = sphi 0, %s104
    %s107 = sphi 0, %s106
    %s121 = sphi 0, %s107
    %s125 = sphi 0, %s125
    %s127 = sphi 0, %s125
    %s128 = sphi 0, %s127
    %s142 = sphi 0, %s128
    %s150 = sphi 0, %s152
    %s153 = sphi 0, %s150
    %s154 = sphi 0, %s153
    %s170 = sphi 0, %s154
    %s178 = sphi 0, %s180
    %s181 = sphi 0, %s178
    %s182 = sphi 0, %s181
    %s198 = sphi 0, %s182
    %s206 = sphi 0, %s208
    %s209 = sphi 0, %s206
    %s210 = sphi 0, %s209
    %s226 = sphi 0, %s210
  $region4: #{_lambda_.7} parent=0 // loop_header_branch
    %17 = sbr.rel (%p15) target = $region8
  $region5: #{_lambda_.7} parent=0 // loop_body
    %s19 = ssub.s32 %s14, 1
    %s20 = ssub.s32 %s14, 2
    %s27 = sadd.s32 1, %s22
    %p28 = scmp.ge.s32.totalorder %s27, 1
    %s29 = scalar_select %p28, 0, %s27
    %s30 = sadd.s32 1, %s21
    %s31 = scalar_select %p28, %s30, %s21
    %p32 = scmp.ge.s32.totalorder %s31, 2
    %s33 = scalar_select %p32, 0, %s31
    %s34 = ssub.s32 %s21, %s33
    %s35 = ssub.s32 %s22, %s29
    %s36 = sor.u32 %s34, %s35
    %p37 = scmp.eq.s32.totalorder %s36, 0
    %s39 = sadd.s32 %s38, 1
    %s40 = scalar_select %p37, %s38, %s39
    %p43 = pneg %p37
    %p44 = scmp.eq.s32.totalorder %s14, 1
    %p45 = por %p43, %p44
    %p46 = scmp.ne.s32.totalorder %s38, %s41
    %p47 = scmp.eq.s32.totalorder %s14, 0
    %p48 = por %p46, %p47
    %p49 = scmp.ne.s32.totalorder %s38, %s41
    %p50 = scmp.eq.s32.totalorder %s19, 1
    %p51 = por %p49, %p50
    %p52 = scmp.ne.s32.totalorder %s41, %s42
    %p53 = scmp.eq.s32.totalorder %s19, 0
    %p54 = por %p52, %p53
    %p55 = scmp.ne.s32.totalorder %s41, %s42
    %p56 = scmp.eq.s32.totalorder %s20, 1
    %p57 = por %p55, %p56
    %p59 = scmp.ne.s32.totalorder %s42, %s58
    %p60 = scmp.eq.s32.totalorder %s20, 0
    %p61 = por %p59, %p60
    %s63 = sadd.s32 %s62, 1
    %p66 = scmp.eq.s32.totalorder %s14, 1
    %p67 = scmp.ne.s32.totalorder %s62, %s64
    %p68 = scmp.eq.s32.totalorder %s14, 0
    %p69 = por %p67, %p68
    %p70 = scmp.ne.s32.totalorder %s62, %s64
    %p71 = scmp.eq.s32.totalorder %s19, 1
    %p72 = por %p70, %p71
    %p73 = scmp.ne.s32.totalorder %s64, %s65
    %p74 = scmp.eq.s32.totalorder %s19, 0
    %p75 = por %p73, %p74
    %p76 = scmp.ne.s32.totalorder %s64, %s65
    %p77 = scmp.eq.s32.totalorder %s20, 1
    %p78 = por %p76, %p77
    %p80 = scmp.ne.s32.totalorder %s65, %s79
    %p81 = scmp.eq.s32.totalorder %s20, 0
    %p82 = por %p80, %p81
    %s84 = sadd.s32 %s83, 1
    %p87 = scmp.eq.s32.totalorder %s14, 1
    %p88 = scmp.ne.s32.totalorder %s83, %s85
    %p89 = scmp.eq.s32.totalorder %s14, 0
    %p90 = por %p88, %p89
    %p91 = scmp.ne.s32.totalorder %s83, %s85
    %p92 = scmp.eq.s32.totalorder %s19, 1
    %p93 = por %p91, %p92
    %p94 = scmp.ne.s32.totalorder %s85, %s86
    %p95 = scmp.eq.s32.totalorder %s19, 0
    %p96 = por %p94, %p95
    %p97 = scmp.ne.s32.totalorder %s85, %s86
    %p98 = scmp.eq.s32.totalorder %s20, 1
    %p99 = por %p97, %p98
    %p101 = scmp.ne.s32.totalorder %s86, %s100
    %p102 = scmp.eq.s32.totalorder %s20, 0
    %p103 = por %p101, %p102
    %s105 = sadd.s32 %s104, 1
    %p108 = scmp.eq.s32.totalorder %s14, 1
    %p109 = scmp.ne.s32.totalorder %s104, %s106
    %p110 = scmp.eq.s32.totalorder %s14, 0
    %p111 = por %p109, %p110
    %p112 = scmp.ne.s32.totalorder %s104, %s106
    %p113 = scmp.eq.s32.totalorder %s19, 1
    %p114 = por %p112, %p113
    %p115 = scmp.ne.s32.totalorder %s106, %s107
    %p116 = scmp.eq.s32.totalorder %s19, 0
    %p117 = por %p115, %p116
    %p118 = scmp.ne.s32.totalorder %s106, %s107
    %p119 = scmp.eq.s32.totalorder %s20, 1
    %p120 = por %p118, %p119
    %p122 = scmp.ne.s32.totalorder %s107, %s121
    %p123 = scmp.eq.s32.totalorder %s20, 0
    %p124 = por %p122, %p123
    %s126 = sadd.s32 %s125, 1
    %p129 = scmp.eq.s32.totalorder %s14, 1
    %p130 = scmp.ne.s32.totalorder %s125, %s127
    %p131 = scmp.eq.s32.totalorder %s14, 0
    %p132 = por %p130, %p131
    %p133 = scmp.ne.s32.totalorder %s125, %s127
    %p134 = scmp.eq.s32.totalorder %s19, 1
    %p135 = por %p133, %p134
    %p136 = scmp.ne.s32.totalorder %s127, %s128
    %p137 = scmp.eq.s32.totalorder %s19, 0
    %p138 = por %p136, %p137
    %p139 = scmp.ne.s32.totalorder %s127, %s128
    %p140 = scmp.eq.s32.totalorder %s20, 1
    %p141 = por %p139, %p140
    %p143 = scmp.ne.s32.totalorder %s128, %s142
    %p144 = scmp.eq.s32.totalorder %s20, 0
    %p145 = por %p143, %p144
    %s146 = ssub.s32 %s21, %s33
    %s147 = ssub.s32 %s22, %s29
    %s148 = sor.u32 %s146, %s147
    %p149 = scmp.eq.s32.totalorder %s148, 0
    %s151 = sadd.s32 %s150, 1
    %s152 = scalar_select %p149, %s150, %s151
    %p155 = pneg %p149
    %p156 = scmp.eq.s32.totalorder %s14, 1
    %p157 = por %p155, %p156
    %p158 = scmp.ne.s32.totalorder %s150, %s153
    %p159 = scmp.eq.s32.totalorder %s14, 0
    %p160 = por %p158, %p159
    %p161 = scmp.ne.s32.totalorder %s150, %s153
    %p162 = scmp.eq.s32.totalorder %s19, 1
    %p163 = por %p161, %p162
    %p164 = scmp.ne.s32.totalorder %s153, %s154
    %p165 = scmp.eq.s32.totalorder %s19, 0
    %p166 = por %p164, %p165
    %p167 = scmp.ne.s32.totalorder %s153, %s154
    %p168 = scmp.eq.s32.totalorder %s20, 1
    %p169 = por %p167, %p168
    %p171 = scmp.ne.s32.totalorder %s154, %s170
    %p172 = scmp.eq.s32.totalorder %s20, 0
    %p173 = por %p171, %p172
    %s174 = ssub.s32 %s21, %s33
    %s175 = ssub.s32 %s22, %s29
    %s176 = sor.u32 %s174, %s175
    %p177 = scmp.eq.s32.totalorder %s176, 0
    %s179 = sadd.s32 %s178, 1
    %s180 = scalar_select %p177, %s178, %s179
    %p183 = pneg %p177
    %p184 = scmp.eq.s32.totalorder %s14, 1
    %p185 = por %p183, %p184
    %p186 = scmp.ne.s32.totalorder %s178, %s181
    %p187 = scmp.eq.s32.totalorder %s14, 0
    %p188 = por %p186, %p187
    %p189 = scmp.ne.s32.totalorder %s178, %s181
    %p190 = scmp.eq.s32.totalorder %s19, 1
    %p191 = por %p189, %p190
    %p192 = scmp.ne.s32.totalorder %s181, %s182
    %p193 = scmp.eq.s32.totalorder %s19, 0
    %p194 = por %p192, %p193
    %p195 = scmp.ne.s32.totalorder %s181, %s182
    %p196 = scmp.eq.s32.totalorder %s20, 1
    %p197 = por %p195, %p196
    %p199 = scmp.ne.s32.totalorder %s182, %s198
    %p200 = scmp.eq.s32.totalorder %s20, 0
    %p201 = por %p199, %p200
    %s202 = ssub.s32 %s21, %s33
    %s203 = ssub.s32 %s22, %s29
    %s204 = sor.u32 %s202, %s203
    %p205 = scmp.eq.s32.totalorder %s204, 0
    %s207 = sadd.s32 %s206, 1
    %s208 = scalar_select %p205, %s206, %s207
    %p211 = pneg %p205
    %p212 = scmp.eq.s32.totalorder %s14, 1
    %p213 = por %p211, %p212
    %p214 = scmp.ne.s32.totalorder %s206, %s209
    %p215 = scmp.eq.s32.totalorder %s14, 0
    %p216 = por %p214, %p215
    %p217 = scmp.ne.s32.totalorder %s206, %s209
    %p218 = scmp.eq.s32.totalorder %s19, 1
    %p219 = por %p217, %p218
    %p220 = scmp.ne.s32.totalorder %s209, %s210
    %p221 = scmp.eq.s32.totalorder %s19, 0
    %p222 = por %p220, %p221
    %p223 = scmp.ne.s32.totalorder %s209, %s210
    %p224 = scmp.eq.s32.totalorder %s20, 1
    %p225 = por %p223, %p224
    %p227 = scmp.ne.s32.totalorder %s210, %s226
    %p228 = scmp.eq.s32.totalorder %s20, 0
    %p229 = por %p227, %p228
    %p230 = scmp.le.s32.totalorder 1, %s14
    %p231 = scmp.lt.s32.totalorder %s14, 3
    %p232 = pnand %p230, %p231
    %p233 = pneg %p232
    // Predicated region
    $region9: #{_lambda_.7} parent=5 // pred_check
      _
    $region10: #{_lambda_.7} parent=5 // pred_check_branch
      %235 = sbr.rel (%p232) target = $region12
    $region11: #{_lambda_.7} parent=5 // pred_region
      %s236 = ssub.s32 %s14, 1
      // Predicated region
      $region13: #{_lambda_.7} parent=11 // pred_check
        %p237 = pneg %p75
      $region14: #{_lambda_.7} parent=11 // pred_check_branch
        %239 = sbr.rel (%p237) target = $region16
      $region15: #{_lambda_.7} parent=11 // pred_region
        _
      $region16: #{_lambda_.7} parent=11 // pred_fallthru
        _
      // Predicated region
      $region17: #{_lambda_.7} parent=11 // pred_check
        %p240 = pneg %p96
      $region18: #{_lambda_.7} parent=11 // pred_check_branch
        %242 = sbr.rel (%p240) target = $region20
      $region19: #{_lambda_.7} parent=11 // pred_region
        _
      $region20: #{_lambda_.7} parent=11 // pred_fallthru
        _
      // Predicated region
      $region21: #{_lambda_.7} parent=11 // pred_check
        %p243 = pneg %p117
      $region22: #{_lambda_.7} parent=11 // pred_check_branch
        %245 = sbr.rel (%p243) target = $region24
      $region23: #{_lambda_.7} parent=11 // pred_region
        _
      $region24: #{_lambda_.7} parent=11 // pred_fallthru
        _
      // Predicated region
      $region25: #{_lambda_.7} parent=11 // pred_check
        %p246 = pneg %p138
      $region26: #{_lambda_.7} parent=11 // pred_check_branch
        %248 = sbr.rel (%p246) target = $region28
      $region27: #{_lambda_.7} parent=11 // pred_region
        _
      $region28: #{_lambda_.7} parent=11 // pred_fallthru
        _
    $region12: #{_lambda_.7} parent=5 // pred_fallthru
      _
    %p249 = scmp.lt.s32.totalorder %s14, 2
    // Predicated region
    $region29: #{_lambda_.7} parent=5 // pred_check
      %p250 = pneg %p249
    $region30: #{_lambda_.7} parent=5 // pred_check_branch
      %252 = sbr.rel (%p250) target = $region32
    $region31: #{_lambda_.7} parent=5 // pred_region
      // Predicated region
      $region33: #{_lambda_.7} parent=31 // pred_check
        %p253 = pneg %p48
      $region34: #{_lambda_.7} parent=31 // pred_check_branch
        %255 = sbr.rel (%p253) target = $region36
      $region35: #{_lambda_.7} parent=31 // pred_region
        %p256 = scmp.lt.s32.totalorder %s21, 1
        %s257 = scalar_select %p256, %s21, 1
        %p258 = scmp.lt.s32.totalorder %s22, 0
        %s259 = scalar_select %p258, %s22, 0
        %s260 = sadd.s32 %s259, %s257
        %s261 = smul.addr %s260, 4
        %s262 = scalar_lea.vmem %s0, %s261
      $region36: #{_lambda_.7} parent=31 // pred_fallthru
        _
    $region32: #{_lambda_.7} parent=5 // pred_fallthru
      _
    %p263 = scmp.le.s32.totalorder 1, %s14
    %p264 = scmp.lt.s32.totalorder %s14, 3
    %p265 = pnand %p263, %p264
    %p266 = pneg %p265
    // Predicated region
    $region37: #{_lambda_.7} parent=5 // pred_check
      _
    $region38: #{_lambda_.7} parent=5 // pred_check_branch
      %268 = sbr.rel (%p265) target = $region40
    $region39: #{_lambda_.7} parent=5 // pred_region
      %s269 = ssub.s32 %s14, 1
      %p270 = scmp.lt.s32.totalorder %s23, 1
      %s271 = scalar_select %p270, %s23, 1
      %p272 = scmp.lt.s32.totalorder %s24, 0
      %s273 = scalar_select %p272, %s24, 0
      %s274 = sadd.s32 %s273, %s271
      %s275 = smul.addr %s274, 4
      %s276 = scalar_lea.vmem %s0, %s275
      %p277 = pneg %p54
      %p278 = pneg %p51
      %p279 = pneg %p75
      %p280 = pneg %p72
      %p281 = pneg %p96
      %p282 = pneg %p93
      %p283 = pneg %p117
      %p284 = pneg %p114
      %p285 = pneg %p138
      %p286 = pneg %p135
      %p287 = pneg %p166
      %p288 = pneg %p163
      %p289 = scmp.lt.s32.totalorder %s23, 1
      %s290 = scalar_select %p289, %s23, 1
      %p291 = scmp.lt.s32.totalorder %s24, 0
      %s292 = scalar_select %p291, %s24, 0
      %s293 = smul.addr %s290, 4
      %s294 = sadd.s32 %s292, %s293
      %s295 = smul.addr %s294, 4
      %s296 = scalar_lea.vmem %s5, %s295
      %p297 = pneg %p194
      %p298 = pneg %p191
      %p299 = scmp.lt.s32.totalorder %s23, 1
      %s300 = scalar_select %p299, %s23, 1
      %p301 = scmp.lt.s32.totalorder %s24, 0
      %s302 = scalar_select %p301, %s24, 0
      %s303 = smul.addr %s300, 4
      %s304 = sadd.s32 %s302, %s303
      %s305 = smul.addr %s304, 4
      %s306 = scalar_lea.vmem %s6, %s305
      %p307 = pneg %p222
      %p308 = pneg %p219
      %p309 = scmp.lt.s32.totalorder %s23, 1
      %s310 = scalar_select %p309, %s23, 1
      %p311 = scmp.lt.s32.totalorder %s24, 0
      %s312 = scalar_select %p311, %s24, 0
      %s313 = smul.addr %s310, 4
      %s314 = sadd.s32 %s312, %s313
      %s315 = smul.addr %s314, 4
      %s316 = scalar_lea.vmem %s7, %s315
      %p317 = scmp.lt.s32.totalorder %s23, 1
      %s318 = scalar_select %p317, %s23, 1
      %p319 = scmp.lt.s32.totalorder %s24, 0
      %s320 = scalar_select %p319, %s24, 0
      %s321 = sadd.s32 %s320, %s318
      %s322 = smul.addr %s321, 4
      %s323 = scalar_lea.vmem %s0, %s322
      %p324 = scmp.lt.s32.totalorder %s23, 1
      %s325 = scalar_select %p324, %s23, 1
      %p326 = scmp.lt.s32.totalorder %s24, 0
      %s327 = scalar_select %p326, %s24, 0
      %s328 = smul.addr %s325, 4
      %s329 = sadd.s32 %s327, %s328
      %s330 = smul.addr %s329, 4
      %s331 = scalar_lea.vmem %s5, %s330
      %p332 = scmp.lt.s32.totalorder %s23, 1
      %s333 = scalar_select %p332, %s23, 1
      %p334 = scmp.lt.s32.totalorder %s24, 0
      %s335 = scalar_select %p334, %s24, 0
      %s336 = smul.addr %s333, 4
      %s337 = sadd.s32 %s335, %s336
      %s338 = smul.addr %s337, 4
      %s339 = scalar_lea.vmem %s6, %s338
      %p340 = scmp.lt.s32.totalorder %s23, 1
      %s341 = scalar_select %p340, %s23, 1
      %p342 = scmp.lt.s32.totalorder %s24, 0
      %s343 = scalar_select %p342, %s24, 0
      %s344 = smul.addr %s341, 4
      %s345 = sadd.s32 %s343, %s344
      %s346 = smul.addr %s345, 4
      %s347 = scalar_lea.vmem %s7, %s346
      %v349 = vld [vmem:[%s323] sm:$0xf]
      %v350 = vld [vmem:[%s1] sm:$0x1]
      %v351 = vld [vmem:[%s2] sm:$0x1]
      %v352 = vunpack.c.l.bf16 %v349
      %vm353 = vcmask 261120
      %v354 = vsel %vm353, %v352, 0.0
      %355 = vadd.xlane.f32.xlu0 %v354
      %v356 = vpop.xlane.xlu0 %355
      %v357 = vrcp.pop 32.0
      %v358 = vmul.f32 %v356, %v357
      %v359 = vsub.f32 %v352, %v358
      %v360 = vmul.f32 %v359, %v359
      %v361 = vsel %vm353, %v360, 0.0
      %362 = vadd.xlane.f32.xlu0 %v361
      %v363 = vpop.xlane.xlu0 %362
      %v364 = vmul.f32 %v363, %v357
      %v365 = vadd.f32 %v364, 1e-05
      %v366 = vrsqrt.pop %v365
      %v367 = vmul.f32 %v359, %v366
      %v369 = vlaneseq
      %v370 = vshrl.u32 %v369, 7
      %v371 = vsub.s32 0, %v370
      %v372 = vrot.slane %v350, %v371
      %v374 = vmul.f32 %v367, %v372
      %v376 = vlaneseq
      %v377 = vshrl.u32 %v376, 7
      %v378 = vsub.s32 0, %v377
      %v379 = vrot.slane %v351, %v378
      %v381 = vadd.f32 %v374, %v379
      %v382 = vpack.c.bf16 %v381, %v381
      %v383 = vld [vmem:[%s3] sm:$0xf]
      %v384 = vld [vmem:[%s3 + $0x4] sm:$0xf]
      %v385 = vld [vmem:[%s3 + $0x8] sm:$0xf]
      %v386 = vld [vmem:[%s3 + $0xc] sm:$0xf]
      %v387 = vld [vmem:[%s4] sm:$0x1]
      %v389 = vlaneseq
      %v390 = vshrl.u32 %v389, 7
      %v391 = vsub.s32 0, %v390
      %v392 = vrot.slane %v387, %v391
      %v398 = vunpack.c.l.b16 %v383
      %v399 = vunpack.c.l.b16 %v384
      %v400 = vunpack.c.l.b16 %v385
      %v401 = vunpack.c.l.b16 %v386
      %v402 = vpack.c.b16 %v399, %v398
      %v403 = vpack.c.b16 %v401, %v400
      %v407 = vsel %vm353, %v382, 0
      %409 = vmatprep.subr.bf16.mxu0 0
      %410 = vmatpush1.bf16.msra.mxu0 %v402
      %411 = vmatprep.subr.bf16.mxu0 0
      %412 = vmatpush1.bf16.msra.mxu0 %v403
      %413 = vmatprep.subr.bf16.mxu0 0
      %414 = vmatpush1.bf16.msra.mxu0 0
      %415 = vmatprep.subr.bf16.mxu0 0
      %416 = vmatpush1.bf16.msra.mxu0 0
      %417 = vmatprep.subr.bf16.mxu0 0
      %418 = vmatpush1.bf16.msra.mxu0 0
      %419 = vmatprep.subr.bf16.mxu0 0
      %420 = vmatpush1.bf16.msra.mxu0 0
      %421 = vmatprep.subr.bf16.mxu0 0
      %422 = vmatpush1.bf16.msra.mxu0 0
      %423 = vmatprep.subr.bf16.mxu0 0
      %424 = vmatpush1.bf16.msra.mxu0 0
      %425 = vmatprep.subr.bf16.mxu0 0
      %426 = vmatpush1.bf16.msra.mxu0 0
      %427 = vmatprep.subr.bf16.mxu0 0
      %428 = vmatpush1.bf16.msra.mxu0 0
      %429 = vmatprep.subr.bf16.mxu0 0
      %430 = vmatpush1.bf16.msra.mxu0 0
      %431 = vmatprep.subr.bf16.mxu0 0
      %432 = vmatpush1.bf16.msra.mxu0 0
      %433 = vmatprep.subr.bf16.mxu0 0
      %434 = vmatpush1.bf16.msra.mxu0 0
      %435 = vmatprep.subr.bf16.mxu0 0
      %436 = vmatpush1.bf16.msra.mxu0 0
      %437 = vmatprep.subr.bf16.mxu0 0
      %438 = vmatpush1.bf16.msra.mxu0 0
      %439 = vmatprep.subr.bf16.mxu0 0
      %440 = vmatpush1.bf16.msra.mxu0 0
      %441 = vmatprep.mubr.bf16.mxu0 0
      %442 = vmatmul.mubr.bf16.gmra.mrb[0].mxu0 %v407
      %v443 = vpop.f32.mrb[0].mxu0
      %v444 = vadd.f32 %v392, %v443
      %v445 = vpop.f32.mrb[0].mxu0
      %v446 = vpop.f32.mrb[0].mxu0
      %v447 = vpop.f32.mrb[0].mxu0
      %448 = vdwg.mxu0
      %v449 = vpack.c.bf16 %v444, %v444
      %vm450 = vcmask 60416
      %451 = vst.msk [vmem:[%s331] sm:$0xf] %vm450, %v449
      %v453 = vunpack.c.l.b16 %v449
      %v454 = vpack.c.b16 %v453, %v453
      %455 = vrot.lane.b32.xlu0 %v454, 96
      %v456 = vpop.permute.xlu0 %455
      %458 = vst.msk [vmem:[%s339] sm:$0xf] %vm450, %v456
      %459 = vrot.lane.b32.xlu0 %v454, 64
      %v460 = vpop.permute.xlu0 %459
      %462 = vst.msk [vmem:[%s347] sm:$0xf] %vm450, %v460
      %463 = vrot.lane.b32.xlu0 %v454, 120
      %v464 = vpop.permute.xlu0 %463
      %s466 = scalar_lea.vmem %s331, 4
      %467 = vst.msk [vmem:[%s466] sm:$0xf] %vm450, %v464
      %468 = vrot.lane.b32.xlu0 %v454, 88
      %v469 = vpop.permute.xlu0 %468
      %s471 = scalar_lea.vmem %s339, 4
      %472 = vst.msk [vmem:[%s471] sm:$0xf] %vm450, %v469
      %473 = vrot.lane.b32.xlu0 %v454, 56
      %v474 = vpop.permute.xlu0 %473
      %s476 = scalar_lea.vmem %s347, 4
      %477 = vst.msk [vmem:[%s476] sm:$0xf] %vm450, %v474
      %478 = vrot.lane.b32.xlu0 %v454, 112
      %v479 = vpop.permute.xlu0 %478
      %s481 = scalar_lea.vmem %s331, 8
      %482 = vst.msk [vmem:[%s481] sm:$0xf] %vm450, %v479
      %483 = vrot.lane.b32.xlu0 %v454, 80
      %v484 = vpop.permute.xlu0 %483
      %s486 = scalar_lea.vmem %s339, 8
      %487 = vst.msk [vmem:[%s486] sm:$0xf] %vm450, %v484
      %488 = vrot.lane.b32.xlu0 %v454, 48
      %v489 = vpop.permute.xlu0 %488
      %s491 = scalar_lea.vmem %s347, 8
      %492 = vst.msk [vmem:[%s491] sm:$0xf] %vm450, %v489
      %493 = vrot.lane.b32.xlu0 %v454, 104
      %v494 = vpop.permute.xlu0 %493
      %s496 = scalar_lea.vmem %s331, 12
      %497 = vst.msk [vmem:[%s496] sm:$0xf] %vm450, %v494
      %498 = vrot.lane.b32.xlu0 %v454, 72
      %v499 = vpop.permute.xlu0 %498
      %s501 = scalar_lea.vmem %s339, 12
      %502 = vst.msk [vmem:[%s501] sm:$0xf] %vm450, %v499
      %503 = vrot.lane.b32.xlu0 %v454, 40
      %v504 = vpop.permute.xlu0 %503
      %s506 = scalar_lea.vmem %s347, 12
      %507 = vst.msk [vmem:[%s506] sm:$0xf] %vm450, %v504
      %p508 = scmp.lt.s32.totalorder %s23, 1
      %s509 = scalar_select %p508, %s23, 1
      %p510 = scmp.lt.s32.totalorder %s24, 0
      %s511 = scalar_select %p510, %s24, 0
      %s512 = smul.addr %s509, 4
      %s513 = sadd.s32 %s511, %s512
      %s514 = smul.addr %s513, 4
      %s515 = scalar_lea.vmem %s5, %s514
      %p516 = scmp.lt.s32.totalorder %s23, 1
      %s517 = scalar_select %p516, %s23, 1
      %p518 = scmp.lt.s32.totalorder %s24, 0
      %s519 = scalar_select %p518, %s24, 0
      %s520 = smul.addr %s517, 4
      %s521 = sadd.s32 %s519, %s520
      %s522 = smul.addr %s521, 4
      %s523 = scalar_lea.vmem %s6, %s522
      %p524 = scmp.lt.s32.totalorder %s23, 1
      %s525 = scalar_select %p524, %s23, 1
      %p526 = scmp.lt.s32.totalorder %s24, 0
      %s527 = scalar_select %p526, %s24, 0
      %s528 = smul.addr %s525, 4
      %s529 = sadd.s32 %s527, %s528
      %s530 = smul.addr %s529, 4
      %s531 = scalar_lea.vmem %s7, %s530
      // Predicated region
      $region41: #{_lambda_.7} parent=39 // pred_check
        %p532 = pneg %p163
      $region42: #{_lambda_.7} parent=39 // pred_check_branch
        %534 = sbr.rel (%p532) target = $region44
      $region43: #{_lambda_.7} parent=39 // pred_region
        _
      $region44: #{_lambda_.7} parent=39 // pred_fallthru
        _
      // Predicated region
      $region45: #{_lambda_.7} parent=39 // pred_check
        %p535 = pneg %p191
      $region46: #{_lambda_.7} parent=39 // pred_check_branch
        %537 = sbr.rel (%p535) target = $region48
      $region47: #{_lambda_.7} parent=39 // pred_region
        _
      $region48: #{_lambda_.7} parent=39 // pred_fallthru
        _
      // Predicated region
      $region49: #{_lambda_.7} parent=39 // pred_check
        %p538 = pneg %p219
      $region50: #{_lambda_.7} parent=39 // pred_check_branch
        %540 = sbr.rel (%p538) target = $region52
      $region51: #{_lambda_.7} parent=39 // pred_region
        _
      $region52: #{_lambda_.7} parent=39 // pred_fallthru
        _
    $region40: #{_lambda_.7} parent=5 // pred_fallthru
      _
    %p541 = scmp.le.s32.totalorder 2, %s14
    // Predicated region
    $region53: #{_lambda_.7} parent=5 // pred_check
      %p542 = pneg %p541
    $region54: #{_lambda_.7} parent=5 // pred_check_branch
      %544 = sbr.rel (%p542) target = $region56
    $region55: #{_lambda_.7} parent=5 // pred_region
      %s545 = ssub.s32 %s14, 2
      // Predicated region
      $region57: #{_lambda_.7} parent=55 // pred_check
        %p546 = pneg %p169
      $region58: #{_lambda_.7} parent=55 // pred_check_branch
        %548 = sbr.rel (%p546) target = $region60
      $region59: #{_lambda_.7} parent=55 // pred_region
        %p549 = scmp.lt.s32.totalorder %s25, 1
        %s550 = scalar_select %p549, %s25, 1
        %p551 = scmp.lt.s32.totalorder %s26, 0
        %s552 = scalar_select %p551, %s26, 0
        %s553 = smul.addr %s550, 4
        %s554 = sadd.s32 %s552, %s553
        %s555 = smul.addr %s554, 4
        %s556 = scalar_lea.vmem %s5, %s555
      $region60: #{_lambda_.7} parent=55 // pred_fallthru
        _
      // Predicated region
      $region61: #{_lambda_.7} parent=55 // pred_check
        %p557 = pneg %p197
      $region62: #{_lambda_.7} parent=55 // pred_check_branch
        %559 = sbr.rel (%p557) target = $region64
      $region63: #{_lambda_.7} parent=55 // pred_region
        %p560 = scmp.lt.s32.totalorder %s25, 1
        %s561 = scalar_select %p560, %s25, 1
        %p562 = scmp.lt.s32.totalorder %s26, 0
        %s563 = scalar_select %p562, %s26, 0
        %s564 = smul.addr %s561, 4
        %s565 = sadd.s32 %s563, %s564
        %s566 = smul.addr %s565, 4
        %s567 = scalar_lea.vmem %s6, %s566
      $region64: #{_lambda_.7} parent=55 // pred_fallthru
        _
      // Predicated region
      $region65: #{_lambda_.7} parent=55 // pred_check
        %p568 = pneg %p225
      $region66: #{_lambda_.7} parent=55 // pred_check_branch
        %570 = sbr.rel (%p568) target = $region68
      $region67: #{_lambda_.7} parent=55 // pred_region
        %p571 = scmp.lt.s32.totalorder %s25, 1
        %s572 = scalar_select %p571, %s25, 1
        %p573 = scmp.lt.s32.totalorder %s26, 0
        %s574 = scalar_select %p573, %s26, 0
        %s575 = smul.addr %s572, 4
        %s576 = sadd.s32 %s574, %s575
        %s577 = smul.addr %s576, 4
        %s578 = scalar_lea.vmem %s7, %s577
      $region68: #{_lambda_.7} parent=55 // pred_fallthru
        _
    $region56: #{_lambda_.7} parent=5 // pred_fallthru
      _
  $region6: #{_lambda_.7} parent=0 // loop_footer
    %s18 = sadd.s32 1, %s14
  $region7: #{_lambda_.7} parent=0 // loop_footer_branch
    %13 = sbr.rel target = $region3
  $region8: #{_lambda_.7} parent=0 // loop_exit
    _

// kernel: _lambda_.13
$region0: #{_lambda_.13}
  #allocation0 [shape = 'u32[]', space=smem, size = 0x4, offset = 0x4, fixed_abs, tag = 'smem constant byte address 0x4 - core index']
  #allocation1 [shape = 'u32[144,128]{1,0:T(1,128)}', space=vmem, size = 0x12000, scoped, tag = 'internal scratch']
  %s0 = inlined_call_operand.vmem [shape: bf16[16,32], index: 0, kind: input, shape index: {}]
  %s1 = inlined_call_operand.vmem [shape: f32[1,32], index: 1, kind: input, shape index: {}]
  %s2 = inlined_call_operand.vmem [shape: f32[1,32], index: 2, kind: input, shape index: {}]
  %s3 = inlined_call_operand.vmem [shape: bf16[512,32], index: 3, kind: input, shape index: {}]
  %s4 = inlined_call_operand.hbm [shape: f32[16,512], index: 4, kind: output, shape index: {}]
  %s5 = sld [smem:[#allocation0]]
  $region26: #{_lambda_.13} parent=0
    _
  %s7 = ssub.s32 1, %s5
  %s8 = scalar_select 0, %s7, %s5
  $region1: #{_lambda_.13} parent=0
    #allocation2 [shape = 'u8[32768]{0}', space=vmem, size = 0x8000, scoped, tag = 'output window, operand 0, single buffered']
    #allocation3 [shape = 's32[1]{0}', space=sflag, size = 0x4, scoped, tag = 'scoped memory for _lambda_.13']
    %9 = vsyncpa [#allocation3], 0
    // Predicated region
    $region2: #{_lambda_.13} parent=1 // pred_check
      _
    $region3: #{_lambda_.13} parent=1 // pred_check_branch
      %11 = sbr.rel (0) target = $region5
    $region4: #{_lambda_.13} parent=1 // pred_region
      _
    $region5: #{_lambda_.13} parent=1 // pred_fallthru
      _
    // Predicated region
    $region6: #{_lambda_.13} parent=1 // pred_check
      _
    $region7: #{_lambda_.13} parent=1 // pred_check_branch
      %13 = sbr.rel (0) target = $region9
    $region8: #{_lambda_.13} parent=1 // pred_region
      _
    $region9: #{_lambda_.13} parent=1 // pred_fallthru
      _
    // Predicated region
    $region10: #{_lambda_.13} parent=1 // pred_check
      _
    $region11: #{_lambda_.13} parent=1 // pred_check_branch
      %15 = sbr.rel (0) target = $region13
    $region12: #{_lambda_.13} parent=1 // pred_region
      _
    $region13: #{_lambda_.13} parent=1 // pred_fallthru
      _
    // Predicated region
    $region14: #{_lambda_.13} parent=1 // pred_check
      _
    $region15: #{_lambda_.13} parent=1 // pred_check_branch
      %17 = sbr.rel (0) target = $region17
    $region16: #{_lambda_.13} parent=1 // pred_region
      _
    $region17: #{_lambda_.13} parent=1 // pred_fallthru
      _
    %v19 = vld [vmem:[%s0] sm:$0xf]
    %v20 = vld [vmem:[%s0 + $0x4] sm:$0xf]
    %v21 = vld [vmem:[%s1] sm:$0x1]
    %v22 = vld [vmem:[%s2] sm:$0x1]
    %v23 = vunpack.c.l.bf16 %v19
    %v24 = vunpack.c.l.bf16 %v20
    %vm25 = vcmask 261120
    %v26 = vsel %vm25, %v23, 0.0
    %27 = vadd.xlane.f32.xlu0 %v26
    %v28 = vpop.xlane.xlu0 %27
    %v29 = vsel %vm25, %v24, 0.0
    %30 = vadd.xlane.f32.xlu0 %v29
    %v31 = vpop.xlane.xlu0 %30
    %v32 = vrcp.pop 32.0
    %v33 = vmul.f32 %v28, %v32
    %v34 = vmul.f32 %v31, %v32
    %v35 = vsub.f32 %v23, %v33
    %v36 = vsub.f32 %v24, %v34
    %v37 = vmul.f32 %v35, %v35
    %v38 = vmul.f32 %v36, %v36
    %v39 = vsel %vm25, %v37, 0.0
    %40 = vadd.xlane.f32.xlu0 %v39
    %v41 = vpop.xlane.xlu0 %40
    %v42 = vsel %vm25, %v38, 0.0
    %43 = vadd.xlane.f32.xlu0 %v42
    %v44 = vpop.xlane.xlu0 %43
    %v45 = vmul.f32 %v41, %v32
    %v46 = vmul.f32 %v44, %v32
    %v47 = vadd.f32 %v45, 1e-05
    %v48 = vadd.f32 %v46, 1e-05
    %v49 = vrsqrt.pop %v47
    %v50 = vrsqrt.pop %v48
    %v51 = vmul.f32 %v35, %v49
    %v52 = vmul.f32 %v36, %v50
    %v54 = vlaneseq
    %v55 = vshrl.u32 %v54, 7
    %v56 = vsub.s32 0, %v55
    %v57 = vrot.slane %v21, %v56
    %v59 = vmul.f32 %v51, %v57
    %v60 = vmul.f32 %v52, %v57
    %v62 = vlaneseq
    %v63 = vshrl.u32 %v62, 7
    %v64 = vsub.s32 0, %v63
    %v65 = vrot.slane %v22, %v64
    %v67 = vadd.f32 %v59, %v65
    %v68 = vadd.f32 %v60, %v65
    %v69 = vpack.c.bf16 %v68, %v67
    %v70 = vld [vmem:[%s3] sm:$0xf]
    %v71 = vld [vmem:[%s3 + $0x4] sm:$0xf]
    %v72 = vld [vmem:[%s3 + $0x8] sm:$0xf]
    %v73 = vld [vmem:[%s3 + $0xc] sm:$0xf]
    %v74 = vld [vmem:[%s3 + $0x10] sm:$0xf]
    %v75 = vld [vmem:[%s3 + $0x14] sm:$0xf]
    %v76 = vld [vmem:[%s3 + $0x18] sm:$0xf]
    %v77 = vld [vmem:[%s3 + $0x1c] sm:$0xf]
    %v78 = vld [vmem:[%s3 + $0x20] sm:$0xf]
    %v79 = vld [vmem:[%s3 + $0x24] sm:$0xf]
    %v80 = vld [vmem:[%s3 + $0x28] sm:$0xf]
    %v81 = vld [vmem:[%s3 + $0x2c] sm:$0xf]
    %v82 = vld [vmem:[%s3 + $0x30] sm:$0xf]
    %v83 = vld [vmem:[%s3 + $0x34] sm:$0xf]
    %v84 = vld [vmem:[%s3 + $0x38] sm:$0xf]
    %v85 = vld [vmem:[%s3 + $0x3c] sm:$0xf]
    %v86 = vld [vmem:[%s3 + $0x40] sm:$0xf]
    %v87 = vld [vmem:[%s3 + $0x44] sm:$0xf]
    %v88 = vld [vmem:[%s3 + $0x48] sm:$0xf]
    %v89 = vld [vmem:[%s3 + $0x4c] sm:$0xf]
    %v90 = vld [vmem:[%s3 + $0x50] sm:$0xf]
    %v91 = vld [vmem:[%s3 + $0x54] sm:$0xf]
    %v92 = vld [vmem:[%s3 + $0x58] sm:$0xf]
    %v93 = vld [vmem:[%s3 + $0x5c] sm:$0xf]
    %v94 = vld [vmem:[%s3 + $0x60] sm:$0xf]
    %v95 = vld [vmem:[%s3 + $0x64] sm:$0xf]
    %v96 = vld [vmem:[%s3 + $0x68] sm:$0xf]
    %v97 = vld [vmem:[%s3 + $0x6c] sm:$0xf]
    %v98 = vld [vmem:[%s3 + $0x70] sm:$0xf]
    %v99 = vld [vmem:[%s3 + $0x74] sm:$0xf]
    %v100 = vld [vmem:[%s3 + $0x78] sm:$0xf]
    %v101 = vld [vmem:[%s3 + $0x7c] sm:$0xf]
    %v102 = vld [vmem:[%s3 + $0x80] sm:$0xf]
    %v103 = vld [vmem:[%s3 + $0x84] sm:$0xf]
    %v104 = vld [vmem:[%s3 + $0x88] sm:$0xf]
    %v105 = vld [vmem:[%s3 + $0x8c] sm:$0xf]
    %v106 = vld [vmem:[%s3 + $0x90] sm:$0xf]
    %v107 = vld [vmem:[%s3 + $0x94] sm:$0xf]
    %v108 = vld [vmem:[%s3 + $0x98] sm:$0xf]
    %v109 = vld [vmem:[%s3 + $0x9c] sm:$0xf]
    %v110 = vld [vmem:[%s3 + $0xa0] sm:$0xf]
    %v111 = vld [vmem:[%s3 + $0xa4] sm:$0xf]
    %v112 = vld [vmem:[%s3 + $0xa8] sm:$0xf]
    %v113 = vld [vmem:[%s3 + $0xac] sm:$0xf]
    %v114 = vld [vmem:[%s3 + $0xb0] sm:$0xf]
    %v115 = vld [vmem:[%s3 + $0xb4] sm:$0xf]
    %v116 = vld [vmem:[%s3 + $0xb8] sm:$0xf]
    %v117 = vld [vmem:[%s3 + $0xbc] sm:$0xf]
    %v118 = vld [vmem:[%s3 + $0xc0] sm:$0xf]
    %v119 = vld [vmem:[%s3 + $0xc4] sm:$0xf]
    %v120 = vld [vmem:[%s3 + $0xc8] sm:$0xf]
    %v121 = vld [vmem:[%s3 + $0xcc] sm:$0xf]
    %v122 = vld [vmem:[%s3 + $0xd0] sm:$0xf]
    %v123 = vld [vmem:[%s3 + $0xd4] sm:$0xf]
    %v124 = vld [vmem:[%s3 + $0xd8] sm:$0xf]
    %v125 = vld [vmem:[%s3 + $0xdc] sm:$0xf]
    %v126 = vld [vmem:[%s3 + $0xe0] sm:$0xf]
    %v127 = vld [vmem:[%s3 + $0xe4] sm:$0xf]
    %v128 = vld [vmem:[%s3 + $0xe8] sm:$0xf]
    %v129 = vld [vmem:[%s3 + $0xec] sm:$0xf]
    %v130 = vld [vmem:[%s3 + $0xf0] sm:$0xf]
    %v131 = vld [vmem:[%s3 + $0xf4] sm:$0xf]
    %v132 = vld [vmem:[%s3 + $0xf8] sm:$0xf]
    %v133 = vld [vmem:[%s3 + $0xfc] sm:$0xf]
    %v198 = vunpack.c.l.b16 %v70
    %v199 = vunpack.c.l.b16 %v71
    %v200 = vunpack.c.l.b16 %v72
    %v201 = vunpack.c.l.b16 %v73
    %v202 = vunpack.c.l.b16 %v74
    %v203 = vunpack.c.l.b16 %v75
    %v204 = vunpack.c.l.b16 %v76
    %v205 = vunpack.c.l.b16 %v77
    %v206 = vunpack.c.l.b16 %v78
    %v207 = vunpack.c.l.b16 %v79
    %v208 = vunpack.c.l.b16 %v80
    %v209 = vunpack.c.l.b16 %v81
    %v210 = vunpack.c.l.b16 %v82
    %v211 = vunpack.c.l.b16 %v83
    %v212 = vunpack.c.l.b16 %v84
    %v213 = vunpack.c.l.b16 %v85
    %v214 = vunpack.c.l.b16 %v86
    %v215 = vunpack.c.l.b16 %v87
    %v216 = vunpack.c.l.b16 %v88
    %v217 = vunpack.c.l.b16 %v89
    %v218 = vunpack.c.l.b16 %v90
    %v219 = vunpack.c.l.b16 %v91
    %v220 = vunpack.c.l.b16 %v92
    %v221 = vunpack.c.l.b16 %v93
    %v222 = vunpack.c.l.b16 %v94
    %v223 = vunpack.c.l.b16 %v95
    %v224 = vunpack.c.l.b16 %v96
    %v225 = vunpack.c.l.b16 %v97
    %v226 = vunpack.c.l.b16 %v98
    %v227 = vunpack.c.l.b16 %v99
    %v228 = vunpack.c.l.b16 %v100
    %v229 = vunpack.c.l.b16 %v101
    %v230 = vunpack.c.l.b16 %v102
    %v231 = vunpack.c.l.b16 %v103
    %v232 = vunpack.c.l.b16 %v104
    %v233 = vunpack.c.l.b16 %v105
    %v234 = vunpack.c.l.b16 %v106
    %v235 = vunpack.c.l.b16 %v107
    %v236 = vunpack.c.l.b16 %v108
    %v237 = vunpack.c.l.b16 %v109
    %v238 = vunpack.c.l.b16 %v110
    %v239 = vunpack.c.l.b16 %v111
    %v240 = vunpack.c.l.b16 %v112
    %v241 = vunpack.c.l.b16 %v113
    %v242 = vunpack.c.l.b16 %v114
    %v243 = vunpack.c.l.b16 %v115
    %v244 = vunpack.c.l.b16 %v116
    %v245 = vunpack.c.l.b16 %v117
    %v246 = vunpack.c.l.b16 %v118
    %v247 = vunpack.c.l.b16 %v119
    %v248 = vunpack.c.l.b16 %v120
    %v249 = vunpack.c.l.b16 %v121
    %v250 = vunpack.c.l.b16 %v122
    %v251 = vunpack.c.l.b16 %v123
    %v252 = vunpack.c.l.b16 %v124
    %v253 = vunpack.c.l.b16 %v125
    %v254 = vunpack.c.l.b16 %v126
    %v255 = vunpack.c.l.b16 %v127
    %v256 = vunpack.c.l.b16 %v128
    %v257 = vunpack.c.l.b16 %v129
    %v258 = vunpack.c.l.b16 %v130
    %v259 = vunpack.c.l.b16 %v131
    %v260 = vunpack.c.l.b16 %v132
    %v261 = vunpack.c.l.b16 %v133
    %v262 = vpack.c.b16 %v199, %v198
    %v263 = vpack.c.b16 %v201, %v200
    %v264 = vpack.c.b16 %v203, %v202
    %v265 = vpack.c.b16 %v205, %v204
    %v266 = vpack.c.b16 %v207, %v206
    %v267 = vpack.c.b16 %v209, %v208
    %v268 = vpack.c.b16 %v211, %v210
    %v269 = vpack.c.b16 %v213, %v212
    %v270 = vpack.c.b16 %v215, %v214
    %v271 = vpack.c.b16 %v217, %v216
    %v272 = vpack.c.b16 %v219, %v218
    %v273 = vpack.c.b16 %v221, %v220
    %v274 = vpack.c.b16 %v223, %v222
    %v275 = vpack.c.b16 %v225, %v224
    %v276 = vpack.c.b16 %v227, %v226
    %v277 = vpack.c.b16 %v229, %v228
    %v278 = vpack.c.b16 %v231, %v230
    %v279 = vpack.c.b16 %v233, %v232
    %v280 = vpack.c.b16 %v235, %v234
    %v281 = vpack.c.b16 %v237, %v236
    %v282 = vpack.c.b16 %v239, %v238
    %v283 = vpack.c.b16 %v241, %v240
    %v284 = vpack.c.b16 %v243, %v242
    %v285 = vpack.c.b16 %v245, %v244
    %v286 = vpack.c.b16 %v247, %v246
    %v287 = vpack.c.b16 %v249, %v248
    %v288 = vpack.c.b16 %v251, %v250
    %v289 = vpack.c.b16 %v253, %v252
    %v290 = vpack.c.b16 %v255, %v254
    %v291 = vpack.c.b16 %v257, %v256
    %v292 = vpack.c.b16 %v259, %v258
    %v293 = vpack.c.b16 %v261, %v260
    %v295 = vsel %vm25, %v69, 0
    %v298 = vsel %vm25, %v262, 0
    %v301 = vsel %vm25, %v263, 0
    %v304 = vsel %vm25, %v264, 0
    %v307 = vsel %vm25, %v265, 0
    %v310 = vsel %vm25, %v266, 0
    %v313 = vsel %vm25, %v267, 0
    %v316 = vsel %vm25, %v268, 0
    %v319 = vsel %vm25, %v269, 0
    %v322 = vsel %vm25, %v270, 0
    %v325 = vsel %vm25, %v271, 0
    %v328 = vsel %vm25, %v272, 0
    %v331 = vsel %vm25, %v273, 0
    %v334 = vsel %vm25, %v274, 0
    %v337 = vsel %vm25, %v275, 0
    %v340 = vsel %vm25, %v276, 0
    %v343 = vsel %vm25, %v277, 0
    %v346 = vsel %vm25, %v278, 0
    %v349 = vsel %vm25, %v279, 0
    %v352 = vsel %vm25, %v280, 0
    %v355 = vsel %vm25, %v281, 0
    %v358 = vsel %vm25, %v282, 0
    %v361 = vsel %vm25, %v283, 0
    %v364 = vsel %vm25, %v284, 0
    %v367 = vsel %vm25, %v285, 0
    %v370 = vsel %vm25, %v286, 0
    %v373 = vsel %vm25, %v287, 0
    %v376 = vsel %vm25, %v288, 0
    %v379 = vsel %vm25, %v289, 0
    %v382 = vsel %vm25, %v290, 0
    %v385 = vsel %vm25, %v291, 0
    %v388 = vsel %vm25, %v292, 0
    %v391 = vsel %vm25, %v293, 0
    %393 = vmatprep.subr.bf16.mxu0 0
    %394 = vmatpush1.bf16.xpose.msra.mxu0 %v298
    %395 = vmatprep.subr.bf16.mxu0 0
    %396 = vmatpush1.bf16.xpose.msra.mxu0 %v301
    %397 = vmatprep.subr.bf16.mxu0 0
    %398 = vmatpush1.bf16.xpose.msra.mxu0 %v304
    %399 = vmatprep.subr.bf16.mxu0 0
    %400 = vmatpush1.bf16.xpose.msra.mxu0 %v307
    %401 = vmatprep.subr.bf16.mxu0 0
    %402 = vmatpush1.bf16.xpose.msra.mxu0 %v310
    %403 = vmatprep.subr.bf16.mxu0 0
    %404 = vmatpush1.bf16.xpose.msra.mxu0 %v313
    %405 = vmatprep.subr.bf16.mxu0 0
    %406 = vmatpush1.bf16.xpose.msra.mxu0 %v316
    %407 = vmatprep.subr.bf16.mxu0 0
    %408 = vmatpush1.bf16.xpose.msra.mxu0 %v319
    %409 = vmatprep.subr.bf16.mxu0 0
    %410 = vmatpush1.bf16.xpose.msra.mxu0 %v322
    %411 = vmatprep.subr.bf16.mxu0 0
    %412 = vmatpush1.bf16.xpose.msra.mxu0 %v325
    %413 = vmatprep.subr.bf16.mxu0 0
    %414 = vmatpush1.bf16.xpose.msra.mxu0 %v328
    %415 = vmatprep.subr.bf16.mxu0 0
    %416 = vmatpush1.bf16.xpose.msra.mxu0 %v331
    %417 = vmatprep.subr.bf16.mxu0 0
    %418 = vmatpush1.bf16.xpose.msra.mxu0 %v334
    %419 = vmatprep.subr.bf16.mxu0 0
    %420 = vmatpush1.bf16.xpose.msra.mxu0 %v337
    %421 = vmatprep.subr.bf16.mxu0 0
    %422 = vmatpush1.bf16.xpose.msra.mxu0 %v340
    %423 = vmatprep.subr.bf16.mxu0 0
    %424 = vmatpush1.bf16.xpose.msra.mxu0 %v343
    %425 = vmatprep.mubr.bf16.mxu0 0
    %426 = vmatmul.mubr.bf16.gmra.mrb[0].mxu0 %v295
    %v427 = vpop.f32.mrb[0].mxu0
    %v428 = vadd.f32 0.0, %v427
    %v429 = vpop.f32.mrb[0].mxu0
    %v430 = vadd.f32 0.0, %v429
    %v431 = vpop.f32.mrb[0].mxu0
    %v432 = vadd.f32 0.0, %v431
    %v433 = vpop.f32.mrb[0].mxu0
    %v434 = vadd.f32 0.0, %v433
    %435 = vdwg.mxu0
    %436 = vmatprep.subr.bf16.mxu0 0
    %437 = vmatpush1.bf16.xpose.msra.mxu0 %v346
    %438 = vmatprep.subr.bf16.mxu0 0
    %439 = vmatpush1.bf16.xpose.msra.mxu0 %v349
    %440 = vmatprep.subr.bf16.mxu0 0
    %441 = vmatpush1.bf16.xpose.msra.mxu0 %v352
    %442 = vmatprep.subr.bf16.mxu0 0
    %443 = vmatpush1.bf16.xpose.msra.mxu0 %v355
    %444 = vmatprep.subr.bf16.mxu0 0
    %445 = vmatpush1.bf16.xpose.msra.mxu0 %v358
    %446 = vmatprep.subr.bf16.mxu0 0
    %447 = vmatpush1.bf16.xpose.msra.mxu0 %v361
    %448 = vmatprep.subr.bf16.mxu0 0
    %449 = vmatpush1.bf16.xpose.msra.mxu0 %v364
    %450 = vmatprep.subr.bf16.mxu0 0
    %451 = vmatpush1.bf16.xpose.msra.mxu0 %v367
    %452 = vmatprep.subr.bf16.mxu0 0
    %453 = vmatpush1.bf16.xpose.msra.mxu0 %v370
    %454 = vmatprep.subr.bf16.mxu0 0
    %455 = vmatpush1.bf16.xpose.msra.mxu0 %v373
    %456 = vmatprep.subr.bf16.mxu0 0
    %457 = vmatpush1.bf16.xpose.msra.mxu0 %v376
    %458 = vmatprep.subr.bf16.mxu0 0
    %459 = vmatpush1.bf16.xpose.msra.mxu0 %v379
    %460 = vmatprep.subr.bf16.mxu0 0
    %461 = vmatpush1.bf16.xpose.msra.mxu0 %v382
    %462 = vmatprep.subr.bf16.mxu0 0
    %463 = vmatpush1.bf16.xpose.msra.mxu0 %v385
    %464 = vmatprep.subr.bf16.mxu0 0
    %465 = vmatpush1.bf16.xpose.msra.mxu0 %v388
    %466 = vmatprep.subr.bf16.mxu0 0
    %467 = vmatpush1.bf16.xpose.msra.mxu0 %v391
    %468 = vmatprep.mubr.bf16.mxu0 0
    %469 = vmatmul.mubr.bf16.gmra.mrb[0].mxu0 %v295
    %v470 = vpop.f32.mrb[0].mxu0
    %v471 = vadd.f32 0.0, %v470
    %v472 = vpop.f32.mrb[0].mxu0
    %v473 = vadd.f32 0.0, %v472
    %v474 = vpop.f32.mrb[0].mxu0
    %v475 = vadd.f32 0.0, %v474
    %v476 = vpop.f32.mrb[0].mxu0
    %v477 = vadd.f32 0.0, %v476
    %478 = vdwg.mxu0
    %479 = vst [vmem:[#allocation2] sm:$0xff] %v428
    %480 = vst [vmem:[#allocation2 + $0x8] sm:$0xff] %v430
    %481 = vst [vmem:[#allocation2 + $0x10] sm:$0xff] %v471
    %482 = vst [vmem:[#allocation2 + $0x18] sm:$0xff] %v473
    %483 = vst [vmem:[#allocation2 + $0x20] sm:$0xff] %v432
    %484 = vst [vmem:[#allocation2 + $0x28] sm:$0xff] %v434
    %485 = vst [vmem:[#allocation2 + $0x30] sm:$0xff] %v475
    %486 = vst [vmem:[#allocation2 + $0x38] sm:$0xff] %v477
    // Predicated region
    $region18: #{_lambda_.13} parent=1 // pred_check
      _
    $region19: #{_lambda_.13} parent=1 // pred_check_branch
      %488 = sbr.rel (0) target = $region21
    $region20: #{_lambda_.13} parent=1 // pred_region
      %s490 = ssub.s32 1024, 1024
      %491 = vsyncadd [#allocation3], %s490
      %s492 = sshll.u32 [#allocation2], 4
      %s493 = int_to_ptr.vmem [resolvable:$true] %s492
      %498 = dma.vmem_to_hbm [thread:$0]  %s493, 1024, %s4, [#allocation3], 512, 512, 32
    $region21: #{_lambda_.13} parent=1 // pred_fallthru
      _
    // Predicated region
    $region22: #{_lambda_.13} parent=1 // pred_check
      _
    $region23: #{_lambda_.13} parent=1 // pred_check_branch
      %500 = sbr.rel (0) target = $region25
    $region24: #{_lambda_.13} parent=1 // pred_region
      %501 = dma.done [#allocation3], 1024
    $region25: #{_lambda_.13} parent=1 // pred_fallthru
      _
    %502 = vsyncpa [#allocation3], 1

// kernel: _lambda_.8
$region0: #{_lambda_.8}
  #allocation0 [shape = 'u32[]', space=smem, size = 0x4, offset = 0x4, fixed_abs, tag = 'smem constant byte address 0x4 - core index']
  #allocation1 [shape = 'u32[144,128]{1,0:T(1,128)}', space=vmem, size = 0x12000, scoped, tag = 'internal scratch']
  #allocation2 [shape = 'f32[4,8,1]{2,1,0:T(8,128)}', space=vmem, size = 0x4000, scoped, tag = 'scratch operand']
  #allocation3 [shape = 'f32[4,8,1]{2,1,0:T(8,128)}', space=vmem, size = 0x4000, scoped, tag = 'scratch operand']
  #allocation4 [shape = 'f32[4,8,8]{2,1,0:T(8,128)}', space=vmem, size = 0x4000, scoped, tag = 'scratch operand']
  %s0 = inlined_call_operand.vmem [shape: bf16[2,8,32], index: 0, kind: input, shape index: {}]
  %s1 = inlined_call_operand.vmem [shape: bf16[2,4,8,8], index: 1, kind: input, shape index: {}]
  %s2 = inlined_call_operand.vmem [shape: bf16[2,4,8,8], index: 2, kind: input, shape index: {}]
  %s3 = inlined_call_operand.vmem [shape: bf16[2,4,8,8], index: 3, kind: input, shape index: {}]
  %s4 = inlined_call_operand.vmem [shape: bf16[4,8,32], index: 4, kind: input, shape index: {}]
  %s5 = inlined_call_operand.vmem [shape: f32[1,32], index: 5, kind: input, shape index: {}]
  %s6 = inlined_call_operand.vmem [shape: bf16[2,8,32], index: 6, kind: output, shape index: {}]
  %s7 = sld [smem:[#allocation0]]
  $region69: #{_lambda_.8} parent=0
    _
  %s9 = ssub.s32 1, %s7
  %s10 = scalar_select 0, %s9, %s7
  loop: start=0, step=1, limit=4
  $region2: #{_lambda_.8} parent=0 // loop_pre_header
    _
  $region3: #{_lambda_.8} parent=0 // loop_header
    %s12 = sphi 0, %s16
    %p13 = scmp.ge.s32.totalorder %s12, 4
    %s19 = sphi 0, %s38
    %s20 = sphi 0, %s34
    %s21 = sphi 0, %s30
    %s22 = sphi 0, %s19
    %s23 = sphi 0, %s20
    %s24 = sphi 0, %s21
    %s25 = sphi 0, %s22
    %s26 = sphi 0, %s23
    %s27 = sphi 0, %s24
    %s43 = sphi 0, %s45
    %s46 = sphi 0, %s43
    %s47 = sphi 0, %s46
    %s63 = sphi 0, %s47
    %s71 = sphi 0, %s73
    %s74 = sphi 0, %s71
    %s75 = sphi 0, %s74
    %s91 = sphi 0, %s75
    %s99 = sphi 0, %s101
    %s102 = sphi 0, %s99
    %s103 = sphi 0, %s102
    %s119 = sphi 0, %s103
    %s127 = sphi 0, %s129
    %s130 = sphi 0, %s127
    %s131 = sphi 0, %s130
    %s147 = sphi 0, %s131
    %s151 = sphi 0, %s151
    %s153 = sphi 0, %s151
    %s154 = sphi 0, %s153
    %s168 = sphi 0, %s154
    %s172 = sphi 0, %s172
    %s174 = sphi 0, %s172
    %s175 = sphi 0, %s174
    %s189 = sphi 0, %s175
    %s197 = sphi 0, %s199
    %s200 = sphi 0, %s197
    %s201 = sphi 0, %s200
    %s217 = sphi 0, %s201
  $region4: #{_lambda_.8} parent=0 // loop_header_branch
    %15 = sbr.rel (%p13) target = $region8
  $region5: #{_lambda_.8} parent=0 // loop_body
    %s17 = ssub.s32 %s12, 1
    %s18 = ssub.s32 %s12, 2
    %s28 = sadd.s32 1, %s21
    %p29 = scmp.ge.s32.totalorder %s28, 1
    %s30 = scalar_select %p29, 0, %s28
    %s31 = sadd.s32 1, %s20
    %s32 = scalar_select %p29, %s31, %s20
    %p33 = scmp.ge.s32.totalorder %s32, 1
    %s34 = scalar_select %p33, 0, %s32
    %s35 = sadd.s32 1, %s19
    %s36 = scalar_select %p33, %s35, %s19
    %p37 = scmp.ge.s32.totalorder %s36, 2
    %s38 = scalar_select %p37, 0, %s36
    %s39 = ssub.s32 %s19, %s38
    %s40 = ssub.s32 %s20, %s34
    %s41 = sor.u32 %s39, %s40
    %p42 = scmp.eq.s32.totalorder %s41, 0
    %s44 = sadd.s32 %s43, 1
    %s45 = scalar_select %p42, %s43, %s44
    %p48 = pneg %p42
    %p49 = scmp.eq.s32.totalorder %s12, 1
    %p50 = por %p48, %p49
    %p51 = scmp.ne.s32.totalorder %s43, %s46
    %p52 = scmp.eq.s32.totalorder %s12, 0
    %p53 = por %p51, %p52
    %p54 = scmp.ne.s32.totalorder %s43, %s46
    %p55 = scmp.eq.s32.totalorder %s17, 1
    %p56 = por %p54, %p55
    %p57 = scmp.ne.s32.totalorder %s46, %s47
    %p58 = scmp.eq.s32.totalorder %s17, 0
    %p59 = por %p57, %p58
    %p60 = scmp.ne.s32.totalorder %s46, %s47
    %p61 = scmp.eq.s32.totalorder %s18, 1
    %p62 = por %p60, %p61
    %p64 = scmp.ne.s32.totalorder %s47, %s63
    %p65 = scmp.eq.s32.totalorder %s18, 0
    %p66 = por %p64, %p65
    %s67 = ssub.s32 %s19, %s38
    %s68 = ssub.s32 %s20, %s34
    %s69 = sor.u32 %s67, %s68
    %p70 = scmp.eq.s32.totalorder %s69, 0
    %s72 = sadd.s32 %s71, 1
    %s73 = scalar_select %p70, %s71, %s72
    %p76 = pneg %p70
    %p77 = scmp.eq.s32.totalorder %s12, 1
    %p78 = por %p76, %p77
    %p79 = scmp.ne.s32.totalorder %s71, %s74
    %p80 = scmp.eq.s32.totalorder %s12, 0
    %p81 = por %p79, %p80
    %p82 = scmp.ne.s32.totalorder %s71, %s74
    %p83 = scmp.eq.s32.totalorder %s17, 1
    %p84 = por %p82, %p83
    %p85 = scmp.ne.s32.totalorder %s74, %s75
    %p86 = scmp.eq.s32.totalorder %s17, 0
    %p87 = por %p85, %p86
    %p88 = scmp.ne.s32.totalorder %s74, %s75
    %p89 = scmp.eq.s32.totalorder %s18, 1
    %p90 = por %p88, %p89
    %p92 = scmp.ne.s32.totalorder %s75, %s91
    %p93 = scmp.eq.s32.totalorder %s18, 0
    %p94 = por %p92, %p93
    %s95 = ssub.s32 %s19, %s38
    %s96 = ssub.s32 %s21, %s30
    %s97 = sor.u32 %s95, %s96
    %p98 = scmp.eq.s32.totalorder %s97, 0
    %s100 = sadd.s32 %s99, 1
    %s101 = scalar_select %p98, %s99, %s100
    %p104 = pneg %p98
    %p105 = scmp.eq.s32.totalorder %s12, 1
    %p106 = por %p104, %p105
    %p107 = scmp.ne.s32.totalorder %s99, %s102
    %p108 = scmp.eq.s32.totalorder %s12, 0
    %p109 = por %p107, %p108
    %p110 = scmp.ne.s32.totalorder %s99, %s102
    %p111 = scmp.eq.s32.totalorder %s17, 1
    %p112 = por %p110, %p111
    %p113 = scmp.ne.s32.totalorder %s102, %s103
    %p114 = scmp.eq.s32.totalorder %s17, 0
    %p115 = por %p113, %p114
    %p116 = scmp.ne.s32.totalorder %s102, %s103
    %p117 = scmp.eq.s32.totalorder %s18, 1
    %p118 = por %p116, %p117
    %p120 = scmp.ne.s32.totalorder %s103, %s119
    %p121 = scmp.eq.s32.totalorder %s18, 0
    %p122 = por %p120, %p121
    %s123 = ssub.s32 %s19, %s38
    %s124 = ssub.s32 %s21, %s30
    %s125 = sor.u32 %s123, %s124
    %p126 = scmp.eq.s32.totalorder %s125, 0
    %s128 = sadd.s32 %s127, 1
    %s129 = scalar_select %p126, %s127, %s128
    %p132 = pneg %p126
    %p133 = scmp.eq.s32.totalorder %s12, 1
    %p134 = por %p132, %p133
    %p135 = scmp.ne.s32.totalorder %s127, %s130
    %p136 = scmp.eq.s32.totalorder %s12, 0
    %p137 = por %p135, %p136
    %p138 = scmp.ne.s32.totalorder %s127, %s130
    %p139 = scmp.eq.s32.totalorder %s17, 1
    %p140 = por %p138, %p139
    %p141 = scmp.ne.s32.totalorder %s130, %s131
    %p142 = scmp.eq.s32.totalorder %s17, 0
    %p143 = por %p141, %p142
    %p144 = scmp.ne.s32.totalorder %s130, %s131
    %p145 = scmp.eq.s32.totalorder %s18, 1
    %p146 = por %p144, %p145
    %p148 = scmp.ne.s32.totalorder %s131, %s147
    %p149 = scmp.eq.s32.totalorder %s18, 0
    %p150 = por %p148, %p149
    %s152 = sadd.s32 %s151, 1
    %p155 = scmp.eq.s32.totalorder %s12, 1
    %p156 = scmp.ne.s32.totalorder %s151, %s153
    %p157 = scmp.eq.s32.totalorder %s12, 0
    %p158 = por %p156, %p157
    %p159 = scmp.ne.s32.totalorder %s151, %s153
    %p160 = scmp.eq.s32.totalorder %s17, 1
    %p161 = por %p159, %p160
    %p162 = scmp.ne.s32.totalorder %s153, %s154
    %p163 = scmp.eq.s32.totalorder %s17, 0
    %p164 = por %p162, %p163
    %p165 = scmp.ne.s32.totalorder %s153, %s154
    %p166 = scmp.eq.s32.totalorder %s18, 1
    %p167 = por %p165, %p166
    %p169 = scmp.ne.s32.totalorder %s154, %s168
    %p170 = scmp.eq.s32.totalorder %s18, 0
    %p171 = por %p169, %p170
    %s173 = sadd.s32 %s172, 1
    %p176 = scmp.eq.s32.totalorder %s12, 1
    %p177 = scmp.ne.s32.totalorder %s172, %s174
    %p178 = scmp.eq.s32.totalorder %s12, 0
    %p179 = por %p177, %p178
    %p180 = scmp.ne.s32.totalorder %s172, %s174
    %p181 = scmp.eq.s32.totalorder %s17, 1
    %p182 = por %p180, %p181
    %p183 = scmp.ne.s32.totalorder %s174, %s175
    %p184 = scmp.eq.s32.totalorder %s17, 0
    %p185 = por %p183, %p184
    %p186 = scmp.ne.s32.totalorder %s174, %s175
    %p187 = scmp.eq.s32.totalorder %s18, 1
    %p188 = por %p186, %p187
    %p190 = scmp.ne.s32.totalorder %s175, %s189
    %p191 = scmp.eq.s32.totalorder %s18, 0
    %p192 = por %p190, %p191
    %s193 = ssub.s32 %s19, %s38
    %s194 = ssub.s32 %s20, %s34
    %s195 = sor.u32 %s193, %s194
    %p196 = scmp.eq.s32.totalorder %s195, 0
    %s198 = sadd.s32 %s197, 1
    %s199 = scalar_select %p196, %s197, %s198
    %p202 = pneg %p196
    %p203 = scmp.eq.s32.totalorder %s12, 1
    %p204 = por %p202, %p203
    %p205 = scmp.ne.s32.totalorder %s197, %s200
    %p206 = scmp.eq.s32.totalorder %s12, 0
    %p207 = por %p205, %p206
    %p208 = scmp.ne.s32.totalorder %s197, %s200
    %p209 = scmp.eq.s32.totalorder %s17, 1
    %p210 = por %p208, %p209
    %p211 = scmp.ne.s32.totalorder %s200, %s201
    %p212 = scmp.eq.s32.totalorder %s17, 0
    %p213 = por %p211, %p212
    %p214 = scmp.ne.s32.totalorder %s200, %s201
    %p215 = scmp.eq.s32.totalorder %s18, 1
    %p216 = por %p214, %p215
    %p218 = scmp.ne.s32.totalorder %s201, %s217
    %p219 = scmp.eq.s32.totalorder %s18, 0
    %p220 = por %p218, %p219
    %p221 = scmp.le.s32.totalorder 1, %s12
    %p222 = scmp.lt.s32.totalorder %s12, 3
    %p223 = pnand %p221, %p222
    %p224 = pneg %p223
    // Predicated region
    $region9: #{_lambda_.8} parent=5 // pred_check
      _
    $region10: #{_lambda_.8} parent=5 // pred_check_branch
      %226 = sbr.rel (%p223) target = $region12
    $region11: #{_lambda_.8} parent=5 // pred_region
      %s227 = ssub.s32 %s12, 1
      // Predicated region
      $region13: #{_lambda_.8} parent=11 // pred_check
        %p228 = pneg %p164
      $region14: #{_lambda_.8} parent=11 // pred_check_branch
        %230 = sbr.rel (%p228) target = $region16
      $region15: #{_lambda_.8} parent=11 // pred_region
        _
      $region16: #{_lambda_.8} parent=11 // pred_fallthru
        _
      // Predicated region
      $region17: #{_lambda_.8} parent=11 // pred_check
        %p231 = pneg %p185
      $region18: #{_lambda_.8} parent=11 // pred_check_branch
        %233 = sbr.rel (%p231) target = $region20
      $region19: #{_lambda_.8} parent=11 // pred_region
        _
      $region20: #{_lambda_.8} parent=11 // pred_fallthru
        _
    $region12: #{_lambda_.8} parent=5 // pred_fallthru
      _
    %p234 = scmp.lt.s32.totalorder %s12, 2
    // Predicated region
    $region21: #{_lambda_.8} parent=5 // pred_check
      %p235 = pneg %p234
    $region22: #{_lambda_.8} parent=5 // pred_check_branch
      %237 = sbr.rel (%p235) target = $region24
    $region23: #{_lambda_.8} parent=5 // pred_region
      // Predicated region
      $region25: #{_lambda_.8} parent=23 // pred_check
        %p238 = pneg %p53
      $region26: #{_lambda_.8} parent=23 // pred_check_branch
        %240 = sbr.rel (%p238) target = $region28
      $region27: #{_lambda_.8} parent=23 // pred_region
        %p241 = scmp.lt.s32.totalorder %s19, 1
        %s242 = scalar_select %p241, %s19, 1
        %p243 = scmp.lt.s32.totalorder %s20, 0
        %s244 = scalar_select %p243, %s20, 0
        %s245 = sadd.s32 %s244, %s242
        %s246 = smul.addr %s245, 4
        %s247 = scalar_lea.vmem %s0, %s246
      $region28: #{_lambda_.8} parent=23 // pred_fallthru
        _
      // Predicated region
      $region29: #{_lambda_.8} parent=23 // pred_check
        %p248 = pneg %p81
      $region30: #{_lambda_.8} parent=23 // pred_check_branch
        %250 = sbr.rel (%p248) target = $region32
      $region31: #{_lambda_.8} parent=23 // pred_region
        %p251 = scmp.lt.s32.totalorder %s19, 1
        %s252 = scalar_select %p251, %s19, 1
        %p253 = scmp.lt.s32.totalorder %s20, 0
        %s254 = scalar_select %p253, %s20, 0
        %s255 = smul.addr %s252, 4
        %s256 = sadd.s32 %s254, %s255
        %s257 = smul.addr %s256, 4
        %s258 = scalar_lea.vmem %s1, %s257
      $region32: #{_lambda_.8} parent=23 // pred_fallthru
        _
      // Predicated region
      $region33: #{_lambda_.8} parent=23 // pred_check
        %p259 = pneg %p109
      $region34: #{_lambda_.8} parent=23 // pred_check_branch
        %261 = sbr.rel (%p259) target = $region36
      $region35: #{_lambda_.8} parent=23 // pred_region
        %p262 = scmp.lt.s32.totalorder %s19, 1
        %s263 = scalar_select %p262, %s19, 1
        %p264 = scmp.lt.s32.totalorder %s21, 0
        %s265 = scalar_select %p264, %s21, 0
        %s266 = smul.addr %s263, 4
        %s267 = sadd.s32 %s265, %s266
        %s268 = smul.addr %s267, 4
        %s269 = scalar_lea.vmem %s2, %s268
      $region36: #{_lambda_.8} parent=23 // pred_fallthru
        _
      // Predicated region
      $region37: #{_lambda_.8} parent=23 // pred_check
        %p270 = pneg %p137
      $region38: #{_lambda_.8} parent=23 // pred_check_branch
        %272 = sbr.rel (%p270) target = $region40
      $region39: #{_lambda_.8} parent=23 // pred_region
        %p273 = scmp.lt.s32.totalorder %s19, 1
        %s274 = scalar_select %p273, %s19, 1
        %p275 = scmp.lt.s32.totalorder %s21, 0
        %s276 = scalar_select %p275, %s21, 0
        %s277 = smul.addr %s274, 4
        %s278 = sadd.s32 %s276, %s277
        %s279 = smul.addr %s278, 4
        %s280 = scalar_lea.vmem %s3, %s279
      $region40: #{_lambda_.8} parent=23 // pred_fallthru
        _
    $region24: #{_lambda_.8} parent=5 // pred_fallthru
      _
    %p281 = scmp.le.s32.totalorder 1, %s12
    %p282 = scmp.lt.s32.totalorder %s12, 3
    %p283 = pnand %p281, %p282
    %p284 = pneg %p283
    // Predicated region
    $region41: #{_lambda_.8} parent=5 // pred_check
      _
    $region42: #{_lambda_.8} parent=5 // pred_check_branch
      %286 = sbr.rel (%p283) target = $region44
    $region43: #{_lambda_.8} parent=5 // pred_region
      %s287 = ssub.s32 %s12, 1
      %p288 = scmp.lt.s32.totalorder %s22, 1
      %s289 = scalar_select %p288, %s22, 1
      %p290 = scmp.lt.s32.totalorder %s23, 0
      %s291 = scalar_select %p290, %s23, 0
      %s292 = sadd.s32 %s291, %s289
      %s293 = smul.addr %s292, 4
      %s294 = scalar_lea.vmem %s0, %s293
      %p295 = pneg %p59
      %p296 = pneg %p56
      %p297 = scmp.lt.s32.totalorder %s22, 1
      %s298 = scalar_select %p297, %s22, 1
      %p299 = scmp.lt.s32.totalorder %s23, 0
      %s300 = scalar_select %p299, %s23, 0
      %s301 = smul.addr %s298, 4
      %s302 = sadd.s32 %s300, %s301
      %s303 = smul.addr %s302, 4
      %s304 = scalar_lea.vmem %s1, %s303
      %p305 = pneg %p87
      %p306 = pneg %p84
      %p307 = scmp.lt.s32.totalorder %s22, 1
      %s308 = scalar_select %p307, %s22, 1
      %p309 = scmp.lt.s32.totalorder %s24, 0
      %s310 = scalar_select %p309, %s24, 0
      %s311 = smul.addr %s308, 4
      %s312 = sadd.s32 %s310, %s311
      %s313 = smul.addr %s312, 4
      %s314 = scalar_lea.vmem %s2, %s313
      %p315 = pneg %p115
      %p316 = pneg %p112
      %p317 = scmp.lt.s32.totalorder %s22, 1
      %s318 = scalar_select %p317, %s22, 1
      %p319 = scmp.lt.s32.totalorder %s24, 0
      %s320 = scalar_select %p319, %s24, 0
      %s321 = smul.addr %s318, 4
      %s322 = sadd.s32 %s320, %s321
      %s323 = smul.addr %s322, 4
      %s324 = scalar_lea.vmem %s3, %s323
      %p325 = pneg %p143
      %p326 = pneg %p140
      %p327 = pneg %p164
      %p328 = pneg %p161
      %p329 = pneg %p185
      %p330 = pneg %p182
      %p331 = pneg %p213
      %p332 = pneg %p210
      %p333 = scmp.lt.s32.totalorder %s22, 1
      %s334 = scalar_select %p333, %s22, 1
      %p335 = scmp.lt.s32.totalorder %s23, 0
      %s336 = scalar_select %p335, %s23, 0
      %s337 = sadd.s32 %s336, %s334
      %s338 = smul.addr %s337, 4
      %s339 = scalar_lea.vmem %s6, %s338
      %p340 = scmp.lt.s32.totalorder %s22, 1
      %s341 = scalar_select %p340, %s22, 1
      %p342 = scmp.lt.s32.totalorder %s23, 0
      %s343 = scalar_select %p342, %s23, 0
      %s344 = sadd.s32 %s343, %s341
      %s345 = smul.addr %s344, 4
      %s346 = scalar_lea.vmem %s0, %s345
      %p347 = scmp.lt.s32.totalorder %s22, 1
      %s348 = scalar_select %p347, %s22, 1
      %p349 = scmp.lt.s32.totalorder %s23, 0
      %s350 = scalar_select %p349, %s23, 0
      %s351 = smul.addr %s348, 4
      %s352 = sadd.s32 %s350, %s351
      %s353 = smul.addr %s352, 4
      %s354 = scalar_lea.vmem %s1, %s353
      %p355 = scmp.lt.s32.totalorder %s22, 1
      %s356 = scalar_select %p355, %s22, 1
      %p357 = scmp.lt.s32.totalorder %s24, 0
      %s358 = scalar_select %p357, %s24, 0
      %s359 = smul.addr %s356, 4
      %s360 = sadd.s32 %s358, %s359
      %s361 = smul.addr %s360, 4
      %s362 = scalar_lea.vmem %s2, %s361
      %p363 = scmp.lt.s32.totalorder %s22, 1
      %s364 = scalar_select %p363, %s22, 1
      %p365 = scmp.lt.s32.totalorder %s24, 0
      %s366 = scalar_select %p365, %s24, 0
      %s367 = smul.addr %s364, 4
      %s368 = sadd.s32 %s366, %s367
      %s369 = smul.addr %s368, 4
      %s370 = scalar_lea.vmem %s3, %s369
      %p371 = scmp.lt.s32.totalorder %s22, 1
      %s372 = scalar_select %p371, %s22, 1
      %p373 = scmp.lt.s32.totalorder %s23, 0
      %s374 = scalar_select %p373, %s23, 0
      %s375 = sadd.s32 %s374, %s372
      %s376 = smul.addr %s375, 4
      %s377 = scalar_lea.vmem %s6, %s376
      %p379 = scmp.eq.s32.totalorder %s24, 0
      // Predicated region
      $region45: #{_lambda_.8} parent=43 // pred_check
        %p380 = pneg %p379
      $region46: #{_lambda_.8} parent=43 // pred_check_branch
        %382 = sbr.rel (%p380) target = $region48
      $region47: #{_lambda_.8} parent=43 // pred_region
        %vm383 = vcmask 7168
        %384 = vst.msk [vmem:[#allocation2] sm:$0xff] %vm383, -inf
        %385 = vst.msk [vmem:[#allocation2 + $0x8] sm:$0xff] %vm383, -inf
        %386 = vst.msk [vmem:[#allocation2 + $0x10] sm:$0xff] %vm383, -inf
        %387 = vst.msk [vmem:[#allocation2 + $0x18] sm:$0xff] %vm383, -inf
        %388 = vst.msk [vmem:[#allocation3] sm:$0xff] %vm383, 0.0
        %389 = vst.msk [vmem:[#allocation3 + $0x8] sm:$0xff] %vm383, 0.0
        %390 = vst.msk [vmem:[#allocation3 + $0x10] sm:$0xff] %vm383, 0.0
        %391 = vst.msk [vmem:[#allocation3 + $0x18] sm:$0xff] %vm383, 0.0
        %vm392 = vcmask 64512
        %393 = vst.msk [vmem:[#allocation4] sm:$0xff] %vm392, 0.0
        %394 = vst.msk [vmem:[#allocation4 + $0x8] sm:$0xff] %vm392, 0.0
        %395 = vst.msk [vmem:[#allocation4 + $0x10] sm:$0xff] %vm392, 0.0
        %396 = vst.msk [vmem:[#allocation4 + $0x18] sm:$0xff] %vm392, 0.0
      $region48: #{_lambda_.8} parent=43 // pred_fallthru
        _
      %s397 = smul.u32 %s24, 8
      %s398 = smul.u32 %s23, 8
      %s399 = sadd.s32 %s398, 7
      %p400 = scmp.le.s32.totalorder %s397, %s399
      // Predicated region
      $region49: #{_lambda_.8} parent=43 // pred_check
        %p401 = pneg %p400
      $region50: #{_lambda_.8} parent=43 // pred_check_branch
        %403 = sbr.rel (%p401) target = $region52
      $region51: #{_lambda_.8} parent=43 // pred_region
        %v404 = vld [vmem:[%s354] sm:$0xf]
        %v405 = vld [vmem:[%s354 + $0x4] sm:$0xf]
        %v406 = vld [vmem:[%s354 + $0x8] sm:$0xf]
        %v407 = vld [vmem:[%s354 + $0xc] sm:$0xf]
        %v408 = vld [vmem:[%s362] sm:$0xf]
        %v409 = vld [vmem:[%s362 + $0x4] sm:$0xf]
        %v410 = vld [vmem:[%s362 + $0x8] sm:$0xf]
        %v411 = vld [vmem:[%s362 + $0xc] sm:$0xf]
        %v412 = vld [vmem:[%s370] sm:$0xf]
        %v413 = vld [vmem:[%s370 + $0x4] sm:$0xf]
        %v414 = vld [vmem:[%s370 + $0x8] sm:$0xf]
        %v415 = vld [vmem:[%s370 + $0xc] sm:$0xf]
        %vm416 = vcmask 64512
        %v418 = vsel %vm416, %v404, 0
        %v421 = vsel %vm416, %v408, 0
        %423 = vmatprep.subr.bf16.mxu0 0
        %424 = vmatpush1.bf16.xpose.msra.mxu0 %v421
        %425 = vmatprep.subr.bf16.mxu0 0
        %426 = vmatpush1.bf16.xpose.msra.mxu0 0
        %427 = vmatprep.subr.bf16.mxu0 0
        %428 = vmatpush1.bf16.xpose.msra.mxu0 0
        %429 = vmatprep.subr.bf16.mxu0 0
        %430 = vmatpush1.bf16.xpose.msra.mxu0 0
        %431 = vmatprep.subr.bf16.mxu0 0
        %432 = vmatpush1.bf16.xpose.msra.mxu0 0
        %433 = vmatprep.subr.bf16.mxu0 0
        %434 = vmatpush1.bf16.xpose.msra.mxu0 0
        %435 = vmatprep.subr.bf16.mxu0 0
        %436 = vmatpush1.bf16.xpose.msra.mxu0 0
        %437 = vmatprep.subr.bf16.mxu0 0
        %438 = vmatpush1.bf16.xpose.msra.mxu0 0
        %439 = vmatprep.subr.bf16.mxu0 0
        %440 = vmatpush1.bf16.xpose.msra.mxu0 0
        %441 = vmatprep.subr.bf16.mxu0 0
        %442 = vmatpush1.bf16.xpose.msra.mxu0 0
        %443 = vmatprep.subr.bf16.mxu0 0
        %444 = vmatpush1.bf16.xpose.msra.mxu0 0
        %445 = vmatprep.subr.bf16.mxu0 0
        %446 = vmatpush1.bf16.xpose.msra.mxu0 0
        %447 = vmatprep.subr.bf16.mxu0 0
        %448 = vmatpush1.bf16.xpose.msra.mxu0 0
        %449 = vmatprep.subr.bf16.mxu0 0
        %450 = vmatpush1.bf16.xpose.msra.mxu0 0
        %451 = vmatprep.subr.bf16.mxu0 0
        %452 = vmatpush1.bf16.xpose.msra.mxu0 0
        %453 = vmatprep.subr.bf16.mxu0 0
        %454 = vmatpush1.bf16.xpose.msra.mxu0 0
        %455 = vmatprep.mubr.bf16.mxu0 0
        %456 = vmatmul.mubr.bf16.gmra.mrb[0].mxu0 %v418
        %v457 = vpop.f32.mrb[0].mxu0
        %v458 = vadd.f32 0.0, %v457
        %v459 = vpop.f32.mrb[0].mxu0
        %v460 = vpop.f32.mrb[0].mxu0
        %v461 = vpop.f32.mrb[0].mxu0
        %462 = vdwg.mxu0
        %v464 = vsel %vm416, %v405, 0
        %v467 = vsel %vm416, %v409, 0
        %469 = vmatprep.subr.bf16.mxu0 0
        %470 = vmatpush1.bf16.xpose.msra.mxu0 %v467
        %471 = vmatprep.subr.bf16.mxu0 0
        %472 = vmatpush1.bf16.xpose.msra.mxu0 0
        %473 = vmatprep.subr.bf16.mxu0 0
        %474 = vmatpush1.bf16.xpose.msra.mxu0 0
        %475 = vmatprep.subr.bf16.mxu0 0
        %476 = vmatpush1.bf16.xpose.msra.mxu0 0
        %477 = vmatprep.subr.bf16.mxu0 0
        %478 = vmatpush1.bf16.xpose.msra.mxu0 0
        %479 = vmatprep.subr.bf16.mxu0 0
        %480 = vmatpush1.bf16.xpose.msra.mxu0 0
        %481 = vmatprep.subr.bf16.mxu0 0
        %482 = vmatpush1.bf16.xpose.msra.mxu0 0
        %483 = vmatprep.subr.bf16.mxu0 0
        %484 = vmatpush1.bf16.xpose.msra.mxu0 0
        %485 = vmatprep.subr.bf16.mxu0 0
        %486 = vmatpush1.bf16.xpose.msra.mxu0 0
        %487 = vmatprep.subr.bf16.mxu0 0
        %488 = vmatpush1.bf16.xpose.msra.mxu0 0
        %489 = vmatprep.subr.bf16.mxu0 0
        %490 = vmatpush1.bf16.xpose.msra.mxu0 0
        %491 = vmatprep.subr.bf16.mxu0 0
        %492 = vmatpush1.bf16.xpose.msra.mxu0 0
        %493 = vmatprep.subr.bf16.mxu0 0
        %494 = vmatpush1.bf16.xpose.msra.mxu0 0
        %495 = vmatprep.subr.bf16.mxu0 0
        %496 = vmatpush1.bf16.xpose.msra.mxu0 0
        %497 = vmatprep.subr.bf16.mxu0 0
        %498 = vmatpush1.bf16.xpose.msra.mxu0 0
        %499 = vmatprep.subr.bf16.mxu0 0
        %500 = vmatpush1.bf16.xpose.msra.mxu0 0
        %501 = vmatprep.mubr.bf16.mxu0 0
        %502 = vmatmul.mubr.bf16.gmra.mrb[0].mxu0 %v464
        %v503 = vpop.f32.mrb[0].mxu0
        %v504 = vadd.f32 0.0, %v503
        %v505 = vpop.f32.mrb[0].mxu0
        %v506 = vpop.f32.mrb[0].mxu0
        %v507 = vpop.f32.mrb[0].mxu0
        %508 = vdwg.mxu0
        %v510 = vsel %vm416, %v406, 0
        %v513 = vsel %vm416, %v410, 0
        %515 = vmatprep.subr.bf16.mxu0 0
        %516 = vmatpush1.bf16.xpose.msra.mxu0 %v513
        %517 = vmatprep.subr.bf16.mxu0 0
        %518 = vmatpush1.bf16.xpose.msra.mxu0 0
        %519 = vmatprep.subr.bf16.mxu0 0
        %520 = vmatpush1.bf16.xpose.msra.mxu0 0
        %521 = vmatprep.subr.bf16.mxu0 0
        %522 = vmatpush1.bf16.xpose.msra.mxu0 0
        %523 = vmatprep.subr.bf16.mxu0 0
        %524 = vmatpush1.bf16.xpose.msra.mxu0 0
        %525 = vmatprep.subr.bf16.mxu0 0
        %526 = vmatpush1.bf16.xpose.msra.mxu0 0
        %527 = vmatprep.subr.bf16.mxu0 0
        %528 = vmatpush1.bf16.xpose.msra.mxu0 0
        %529 = vmatprep.subr.bf16.mxu0 0
        %530 = vmatpush1.bf16.xpose.msra.mxu0 0
        %531 = vmatprep.subr.bf16.mxu0 0
        %532 = vmatpush1.bf16.xpose.msra.mxu0 0
        %533 = vmatprep.subr.bf16.mxu0 0
        %534 = vmatpush1.bf16.xpose.msra.mxu0 0
        %535 = vmatprep.subr.bf16.mxu0 0
        %536 = vmatpush1.bf16.xpose.msra.mxu0 0
        %537 = vmatprep.subr.bf16.mxu0 0
        %538 = vmatpush1.bf16.xpose.msra.mxu0 0
        %539 = vmatprep.subr.bf16.mxu0 0
        %540 = vmatpush1.bf16.xpose.msra.mxu0 0
        %541 = vmatprep.subr.bf16.mxu0 0
        %542 = vmatpush1.bf16.xpose.msra.mxu0 0
        %543 = vmatprep.subr.bf16.mxu0 0
        %544 = vmatpush1.bf16.xpose.msra.mxu0 0
        %545 = vmatprep.subr.bf16.mxu0 0
        %546 = vmatpush1.bf16.xpose.msra.mxu0 0
        %547 = vmatprep.mubr.bf16.mxu0 0
        %548 = vmatmul.mubr.bf16.gmra.mrb[0].mxu0 %v510
        %v549 = vpop.f32.mrb[0].mxu0
        %v550 = vadd.f32 0.0, %v549
        %v551 = vpop.f32.mrb[0].mxu0
        %v552 = vpop.f32.mrb[0].mxu0
        %v553 = vpop.f32.mrb[0].mxu0
        %554 = vdwg.mxu0
        %v556 = vsel %vm416, %v407, 0
        %v559 = vsel %vm416, %v411, 0
        %561 = vmatprep.subr.bf16.mxu0 0
        %562 = vmatpush1.bf16.xpose.msra.mxu0 %v559
        %563 = vmatprep.subr.bf16.mxu0 0
        %564 = vmatpush1.bf16.xpose.msra.mxu0 0
        %565 = vmatprep.subr.bf16.mxu0 0
        %566 = vmatpush1.bf16.xpose.msra.mxu0 0
        %567 = vmatprep.subr.bf16.mxu0 0
        %568 = vmatpush1.bf16.xpose.msra.mxu0 0
        %569 = vmatprep.subr.bf16.mxu0 0
        %570 = vmatpush1.bf16.xpose.msra.mxu0 0
        %571 = vmatprep.subr.bf16.mxu0 0
        %572 = vmatpush1.bf16.xpose.msra.mxu0 0
        %573 = vmatprep.subr.bf16.mxu0 0
        %574 = vmatpush1.bf16.xpose.msra.mxu0 0
        %575 = vmatprep.subr.bf16.mxu0 0
        %576 = vmatpush1.bf16.xpose.msra.mxu0 0
        %577 = vmatprep.subr.bf16.mxu0 0
        %578 = vmatpush1.bf16.xpose.msra.mxu0 0
        %579 = vmatprep.subr.bf16.mxu0 0
        %580 = vmatpush1.bf16.xpose.msra.mxu0 0
        %581 = vmatprep.subr.bf16.mxu0 0
        %582 = vmatpush1.bf16.xpose.msra.mxu0 0
        %583 = vmatprep.subr.bf16.mxu0 0
        %584 = vmatpush1.bf16.xpose.msra.mxu0 0
        %585 = vmatprep.subr.bf16.mxu0 0
        %586 = vmatpush1.bf16.xpose.msra.mxu0 0
        %587 = vmatprep.subr.bf16.mxu0 0
        %588 = vmatpush1.bf16.xpose.msra.mxu0 0
        %589 = vmatprep.subr.bf16.mxu0 0
        %590 = vmatpush1.bf16.xpose.msra.mxu0 0
        %591 = vmatprep.subr.bf16.mxu0 0
        %592 = vmatpush1.bf16.xpose.msra.mxu0 0
        %593 = vmatprep.mubr.bf16.mxu0 0
        %594 = vmatmul.mubr.bf16.gmra.mrb[0].mxu0 %v556
        %v595 = vpop.f32.mrb[0].mxu0
        %v596 = vadd.f32 0.0, %v595
        %v597 = vpop.f32.mrb[0].mxu0
        %v598 = vpop.f32.mrb[0].mxu0
        %v599 = vpop.f32.mrb[0].mxu0
        %600 = vdwg.mxu0
        %v601 = vmul.f32 %v458, 0.35355338
        %v602 = vmul.f32 %v504, 0.35355338
        %v603 = vmul.f32 %v550, 0.35355338
        %v604 = vmul.f32 %v596, 0.35355338
        %v605 = vlaneseq
        %v606 = vshrl.u32 %v605, 7
        %v607 = vstv %s398
        %v608 = vadd.s32 %v607, %v606
        %v609 = vlaneseq
        %v610 = vand.u32 %v609, 127
        %v611 = vstv %s397
        %v612 = vadd.s32 %v611, %v610
        %vm613 = vcmp.le.s32.totalorder %v612, %v608
        %v614 = vsel %vm613, 1, 0
        %vm615 = vcmp.eq.s32.totalorder %v614, 1
        %v616 = vsel %vm615, %v601, -1e+30
        %v617 = vsel %vm615, %v602, -1e+30
        %v618 = vsel %vm615, %v603, -1e+30
        %v619 = vsel %vm615, %v604, -1e+30
        %v620 = vld [vmem:[#allocation2] sm:$0xff]
        %v621 = vld [vmem:[#allocation2 + $0x8] sm:$0xff]
        %v622 = vld [vmem:[#allocation2 + $0x10] sm:$0xff]
        %v623 = vld [vmem:[#allocation2 + $0x18] sm:$0xff]
        %v624 = vsel %vm416, %v616, -inf
        %625 = vmax.xlane.f32.xlu0 %v624
        %v626 = vpop.xlane.xlu0 %625
        %v627 = vsel %vm416, %v617, -inf
        %628 = vmax.xlane.f32.xlu0 %v627
        %v629 = vpop.xlane.xlu0 %628
        %v630 = vsel %vm416, %v618, -inf
        %631 = vmax.xlane.f32.xlu0 %v630
        %v632 = vpop.xlane.xlu0 %631
        %v633 = vsel %vm416, %v619, -inf
        %634 = vmax.xlane.f32.xlu0 %v633
        %v635 = vpop.xlane.xlu0 %634
        %v636 = vmax.f32 %v620, %v626
        %v637 = vmax.f32 %v621, %v629
        %v638 = vmax.f32 %v622, %v632
        %v639 = vmax.f32 %v623, %v635
        %v640 = vsub.f32 %v620, %v636
        %v641 = vsub.f32 %v621, %v637
        %v642 = vsub.f32 %v622, %v638
        %v643 = vsub.f32 %v623, %v639
        %v644 = vmul.f32 %v640, 1.442695
        %v645 = vpow.pop %v644
        %v646 = vmul.f32 %v641, 1.442695
        %v647 = vpow.pop %v646
        %v648 = vmul.f32 %v642, 1.442695
        %v649 = vpow.pop %v648
        %v650 = vmul.f32 %v643, 1.442695
        %v651 = vpow.pop %v650
        %653 = vset.pattern.permute.xlu0 0
        %654 = vperm.xlu0 %653, %v636
        %v655 = vpop.permute.xlu0 %654
        %658 = vset.pattern.permute.xlu0 0
        %659 = vperm.xlu0 %658, %v637
        %v660 = vpop.permute.xlu0 %659
        %663 = vset.pattern.permute.xlu0 0
        %664 = vperm.xlu0 %663, %v638
        %v665 = vpop.permute.xlu0 %664
        %668 = vset.pattern.permute.xlu0 0
        %669 = vperm.xlu0 %668, %v639
        %v670 = vpop.permute.xlu0 %669
        %v672 = vsub.f32 %v616, %v655
        %v673 = vsub.f32 %v617, %v660
        %v674 = vsub.f32 %v618, %v665
        %v675 = vsub.f32 %v619, %v670
        %v676 = vmul.f32 %v672, 1.442695
        %v677 = vpow.pop %v676
        %v678 = vmul.f32 %v673, 1.442695
        %v679 = vpow.pop %v678
        %v680 = vmul.f32 %v674, 1.442695
        %v681 = vpow.pop %v680
        %v682 = vmul.f32 %v675, 1.442695
        %v683 = vpow.pop %v682
        %v684 = vsel %vm615, %v677, 0.0
        %v685 = vsel %vm615, %v679, 0.0
        %v686 = vsel %vm615, %v681, 0.0
        %v687 = vsel %vm615, %v683, 0.0
        %v688 = vld [vmem:[#allocation3] sm:$0xff]
        %v689 = vld [vmem:[#allocation3 + $0x8] sm:$0xff]
        %v690 = vld [vmem:[#allocation3 + $0x10] sm:$0xff]
        %v691 = vld [vmem:[#allocation3 + $0x18] sm:$0xff]
        %v692 = vmul.f32 %v645, %v688
        %v693 = vmul.f32 %v647, %v689
        %v694 = vmul.f32 %v649, %v690
        %v695 = vmul.f32 %v651, %v691
        %v696 = vsel %vm416, %v684, 0.0
        %697 = vadd.xlane.f32.xlu0 %v696
        %v698 = vpop.xlane.xlu0 %697
        %v699 = vsel %vm416, %v685, 0.0
        %700 = vadd.xlane.f32.xlu0 %v699
        %v701 = vpop.xlane.xlu0 %700
        %v702 = vsel %vm416, %v686, 0.0
        %703 = vadd.xlane.f32.xlu0 %v702
        %v704 = vpop.xlane.xlu0 %703
        %v705 = vsel %vm416, %v687, 0.0
        %706 = vadd.xlane.f32.xlu0 %v705
        %v707 = vpop.xlane.xlu0 %706
        %v708 = vadd.f32 %v692, %v698
        %v709 = vadd.f32 %v693, %v701
        %v710 = vadd.f32 %v694, %v704
        %v711 = vadd.f32 %v695, %v707
        %vm712 = vcmask 7168
        %713 = vst.msk [vmem:[#allocation3] sm:$0xff] %vm712, %v708
        %714 = vst.msk [vmem:[#allocation3 + $0x8] sm:$0xff] %vm712, %v709
        %715 = vst.msk [vmem:[#allocation3 + $0x10] sm:$0xff] %vm712, %v710
        %716 = vst.msk [vmem:[#allocation3 + $0x18] sm:$0xff] %vm712, %v711
        %v717 = vld [vmem:[#allocation4] sm:$0xff]
        %v718 = vld [vmem:[#allocation4 + $0x8] sm:$0xff]
        %v719 = vld [vmem:[#allocation4 + $0x10] sm:$0xff]
        %v720 = vld [vmem:[#allocation4 + $0x18] sm:$0xff]
        %722 = vset.pattern.permute.xlu0 0
        %723 = vperm.xlu0 %722, %v645
        %v724 = vpop.permute.xlu0 %723
        %727 = vset.pattern.permute.xlu0 0
        %728 = vperm.xlu0 %727, %v647
        %v729 = vpop.permute.xlu0 %728
        %732 = vset.pattern.permute.xlu0 0
        %733 = vperm.xlu0 %732, %v649
        %v734 = vpop.permute.xlu0 %733
        %737 = vset.pattern.permute.xlu0 0
        %738 = vperm.xlu0 %737, %v651
        %v739 = vpop.permute.xlu0 %738
        %v741 = vmul.f32 %v724, %v717
        %v742 = vmul.f32 %v729, %v718
        %v743 = vmul.f32 %v734, %v719
        %v744 = vmul.f32 %v739, %v720
        %v745 = vpack.c.bf16 %v684, %v684
        %v746 = vpack.c.bf16 %v685, %v685
        %v747 = vpack.c.bf16 %v686, %v686
        %v748 = vpack.c.bf16 %v687, %v687
        %v750 = vsel %vm416, %v745, 0
        %vm752 = vcmask 1043456
        %v754 = vsel %vm752, %v412, 0
        %756 = vmatprep.subr.bf16.mxu0 0
        %757 = vmatpush1.bf16.msra.mxu0 %v754
        %758 = vmatprep.subr.bf16.mxu0 0
        %759 = vmatpush1.bf16.msra.mxu0 0
        %760 = vmatprep.subr.bf16.mxu0 0
        %761 = vmatpush1.bf16.msra.mxu0 0
        %762 = vmatprep.subr.bf16.mxu0 0
        %763 = vmatpush1.bf16.msra.mxu0 0
        %764 = vmatprep.subr.bf16.mxu0 0
        %765 = vmatpush1.bf16.msra.mxu0 0
        %766 = vmatprep.subr.bf16.mxu0 0
        %767 = vmatpush1.bf16.msra.mxu0 0
        %768 = vmatprep.subr.bf16.mxu0 0
        %769 = vmatpush1.bf16.msra.mxu0 0
        %770 = vmatprep.subr.bf16.mxu0 0
        %771 = vmatpush1.bf16.msra.mxu0 0
        %772 = vmatprep.subr.bf16.mxu0 0
        %773 = vmatpush1.bf16.msra.mxu0 0
        %774 = vmatprep.subr.bf16.mxu0 0
        %775 = vmatpush1.bf16.msra.mxu0 0
        %776 = vmatprep.subr.bf16.mxu0 0
        %777 = vmatpush1.bf16.msra.mxu0 0
        %778 = vmatprep.subr.bf16.mxu0 0
        %779 = vmatpush1.bf16.msra.mxu0 0
        %780 = vmatprep.subr.bf16.mxu0 0
        %781 = vmatpush1.bf16.msra.mxu0 0
        %782 = vmatprep.subr.bf16.mxu0 0
        %783 = vmatpush1.bf16.msra.mxu0 0
        %784 = vmatprep.subr.bf16.mxu0 0
        %785 = vmatpush1.bf16.msra.mxu0 0
        %786 = vmatprep.subr.bf16.mxu0 0
        %787 = vmatpush1.bf16.msra.mxu0 0
        %788 = vmatprep.mubr.bf16.mxu0 0
        %789 = vmatmul.mubr.bf16.gmra.mrb[0].mxu0 %v750
        %v790 = vpop.f32.mrb[0].mxu0
        %v791 = vadd.f32 0.0, %v790
        %v792 = vpop.f32.mrb[0].mxu0
        %v793 = vpop.f32.mrb[0].mxu0
        %v794 = vpop.f32.mrb[0].mxu0
        %795 = vdwg.mxu0
        %v797 = vsel %vm416, %v746, 0
        %v800 = vsel %vm752, %v413, 0
        %802 = vmatprep.subr.bf16.mxu0 0
        %803 = vmatpush1.bf16.msra.mxu0 %v800
        %804 = vmatprep.subr.bf16.mxu0 0
        %805 = vmatpush1.bf16.msra.mxu0 0
        %806 = vmatprep.subr.bf16.mxu0 0
        %807 = vmatpush1.bf16.msra.mxu0 0
        %808 = vmatprep.subr.bf16.mxu0 0
        %809 = vmatpush1.bf16.msra.mxu0 0
        %810 = vmatprep.subr.bf16.mxu0 0
        %811 = vmatpush1.bf16.msra.mxu0 0
        %812 = vmatprep.subr.bf16.mxu0 0
        %813 = vmatpush1.bf16.msra.mxu0 0
        %814 = vmatprep.subr.bf16.mxu0 0
        %815 = vmatpush1.bf16.msra.mxu0 0
        %816 = vmatprep.subr.bf16.mxu0 0
        %817 = vmatpush1.bf16.msra.mxu0 0
        %818 = vmatprep.subr.bf16.mxu0 0
        %819 = vmatpush1.bf16.msra.mxu0 0
        %820 = vmatprep.subr.bf16.mxu0 0
        %821 = vmatpush1.bf16.msra.mxu0 0
        %822 = vmatprep.subr.bf16.mxu0 0
        %823 = vmatpush1.bf16.msra.mxu0 0
        %824 = vmatprep.subr.bf16.mxu0 0
        %825 = vmatpush1.bf16.msra.mxu0 0
        %826 = vmatprep.subr.bf16.mxu0 0
        %827 = vmatpush1.bf16.msra.mxu0 0
        %828 = vmatprep.subr.bf16.mxu0 0
        %829 = vmatpush1.bf16.msra.mxu0 0
        %830 = vmatprep.subr.bf16.mxu0 0
        %831 = vmatpush1.bf16.msra.mxu0 0
        %832 = vmatprep.subr.bf16.mxu0 0
        %833 = vmatpush1.bf16.msra.mxu0 0
        %834 = vmatprep.mubr.bf16.mxu0 0
        %835 = vmatmul.mubr.bf16.gmra.mrb[0].mxu0 %v797
        %v836 = vpop.f32.mrb[0].mxu0
        %v837 = vadd.f32 0.0, %v836
        %v838 = vpop.f32.mrb[0].mxu0
        %v839 = vpop.f32.mrb[0].mxu0
        %v840 = vpop.f32.mrb[0].mxu0
        %841 = vdwg.mxu0
        %v843 = vsel %vm416, %v747, 0
        %v846 = vsel %vm752, %v414, 0
        %848 = vmatprep.subr.bf16.mxu0 0
        %849 = vmatpush1.bf16.msra.mxu0 %v846
        %850 = vmatprep.subr.bf16.mxu0 0
        %851 = vmatpush1.bf16.msra.mxu0 0
        %852 = vmatprep.subr.bf16.mxu0 0
        %853 = vmatpush1.bf16.msra.mxu0 0
        %854 = vmatprep.subr.bf16.mxu0 0
        %855 = vmatpush1.bf16.msra.mxu0 0
        %856 = vmatprep.subr.bf16.mxu0 0
        %857 = vmatpush1.bf16.msra.mxu0 0
        %858 = vmatprep.subr.bf16.mxu0 0
        %859 = vmatpush1.bf16.msra.mxu0 0
        %860 = vmatprep.subr.bf16.mxu0 0
        %861 = vmatpush1.bf16.msra.mxu0 0
        %862 = vmatprep.subr.bf16.mxu0 0
        %863 = vmatpush1.bf16.msra.mxu0 0
        %864 = vmatprep.subr.bf16.mxu0 0
        %865 = vmatpush1.bf16.msra.mxu0 0
        %866 = vmatprep.subr.bf16.mxu0 0
        %867 = vmatpush1.bf16.msra.mxu0 0
        %868 = vmatprep.subr.bf16.mxu0 0
        %869 = vmatpush1.bf16.msra.mxu0 0
        %870 = vmatprep.subr.bf16.mxu0 0
        %871 = vmatpush1.bf16.msra.mxu0 0
        %872 = vmatprep.subr.bf16.mxu0 0
        %873 = vmatpush1.bf16.msra.mxu0 0
        %874 = vmatprep.subr.bf16.mxu0 0
        %875 = vmatpush1.bf16.msra.mxu0 0
        %876 = vmatprep.subr.bf16.mxu0 0
        %877 = vmatpush1.bf16.msra.mxu0 0
        %878 = vmatprep.subr.bf16.mxu0 0
        %879 = vmatpush1.bf16.msra.mxu0 0
        %880 = vmatprep.mubr.bf16.mxu0 0
        %881 = vmatmul.mubr.bf16.gmra.mrb[0].mxu0 %v843
        %v882 = vpop.f32.mrb[0].mxu0
        %v883 = vadd.f32 0.0, %v882
        %v884 = vpop.f32.mrb[0].mxu0
        %v885 = vpop.f32.mrb[0].mxu0
        %v886 = vpop.f32.mrb[0].mxu0
        %887 = vdwg.mxu0
        %v889 = vsel %vm416, %v748, 0
        %v892 = vsel %vm752, %v415, 0
        %894 = vmatprep.subr.bf16.mxu0 0
        %895 = vmatpush1.bf16.msra.mxu0 %v892
        %896 = vmatprep.subr.bf16.mxu0 0
        %897 = vmatpush1.bf16.msra.mxu0 0
        %898 = vmatprep.subr.bf16.mxu0 0
        %899 = vmatpush1.bf16.msra.mxu0 0
        %900 = vmatprep.subr.bf16.mxu0 0
        %901 = vmatpush1.bf16.msra.mxu0 0
        %902 = vmatprep.subr.bf16.mxu0 0
        %903 = vmatpush1.bf16.msra.mxu0 0
        %904 = vmatprep.subr.bf16.mxu0 0
        %905 = vmatpush1.bf16.msra.mxu0 0
        %906 = vmatprep.subr.bf16.mxu0 0
        %907 = vmatpush1.bf16.msra.mxu0 0
        %908 = vmatprep.subr.bf16.mxu0 0
        %909 = vmatpush1.bf16.msra.mxu0 0
        %910 = vmatprep.subr.bf16.mxu0 0
        %911 = vmatpush1.bf16.msra.mxu0 0
        %912 = vmatprep.subr.bf16.mxu0 0
        %913 = vmatpush1.bf16.msra.mxu0 0
        %914 = vmatprep.subr.bf16.mxu0 0
        %915 = vmatpush1.bf16.msra.mxu0 0
        %916 = vmatprep.subr.bf16.mxu0 0
        %917 = vmatpush1.bf16.msra.mxu0 0
        %918 = vmatprep.subr.bf16.mxu0 0
        %919 = vmatpush1.bf16.msra.mxu0 0
        %920 = vmatprep.subr.bf16.mxu0 0
        %921 = vmatpush1.bf16.msra.mxu0 0
        %922 = vmatprep.subr.bf16.mxu0 0
        %923 = vmatpush1.bf16.msra.mxu0 0
        %924 = vmatprep.subr.bf16.mxu0 0
        %925 = vmatpush1.bf16.msra.mxu0 0
        %926 = vmatprep.mubr.bf16.mxu0 0
        %927 = vmatmul.mubr.bf16.gmra.mrb[0].mxu0 %v889
        %v928 = vpop.f32.mrb[0].mxu0
        %v929 = vadd.f32 0.0, %v928
        %v930 = vpop.f32.mrb[0].mxu0
        %v931 = vpop.f32.mrb[0].mxu0
        %v932 = vpop.f32.mrb[0].mxu0
        %933 = vdwg.mxu0
        %v934 = vadd.f32 %v741, %v791
        %v935 = vadd.f32 %v742, %v837
        %v936 = vadd.f32 %v743, %v883
        %v937 = vadd.f32 %v744, %v929
        %938 = vst.msk [vmem:[#allocation4] sm:$0xff] %vm416, %v934
        %939 = vst.msk [vmem:[#allocation4 + $0x8] sm:$0xff] %vm416, %v935
        %940 = vst.msk [vmem:[#allocation4 + $0x10] sm:$0xff] %vm416, %v936
        %941 = vst.msk [vmem:[#allocation4 + $0x18] sm:$0xff] %vm416, %v937
        %942 = vst.msk [vmem:[#allocation2] sm:$0xff] %vm712, %v636
        %943 = vst.msk [vmem:[#allocation2 + $0x8] sm:$0xff] %vm712, %v637
        %944 = vst.msk [vmem:[#allocation2 + $0x10] sm:$0xff] %vm712, %v638
        %945 = vst.msk [vmem:[#allocation2 + $0x18] sm:$0xff] %vm712, %v639
      $region52: #{_lambda_.8} parent=43 // pred_fallthru
        _
      // Predicated region
      $region53: #{_lambda_.8} parent=43 // pred_check
        %p946 = pneg %p379
      $region54: #{_lambda_.8} parent=43 // pred_check_branch
        %948 = sbr.rel (%p946) target = $region56
      $region55: #{_lambda_.8} parent=43 // pred_region
        %v949 = vld [vmem:[#allocation3] sm:$0xff]
        %v950 = vld [vmem:[#allocation3 + $0x8] sm:$0xff]
        %v951 = vld [vmem:[#allocation3 + $0x10] sm:$0xff]
        %v952 = vld [vmem:[#allocation3 + $0x18] sm:$0xff]
        %v953 = vrcp.pop %v949
        %v954 = vrcp.pop %v950
        %v955 = vrcp.pop %v951
        %v956 = vrcp.pop %v952
        %v957 = vld [vmem:[#allocation4] sm:$0xff]
        %v958 = vld [vmem:[#allocation4 + $0x8] sm:$0xff]
        %v959 = vld [vmem:[#allocation4 + $0x10] sm:$0xff]
        %v960 = vld [vmem:[#allocation4 + $0x18] sm:$0xff]
        %962 = vset.pattern.permute.xlu0 0
        %963 = vperm.xlu0 %962, %v953
        %v964 = vpop.permute.xlu0 %963
        %967 = vset.pattern.permute.xlu0 0
        %968 = vperm.xlu0 %967, %v954
        %v969 = vpop.permute.xlu0 %968
        %972 = vset.pattern.permute.xlu0 0
        %973 = vperm.xlu0 %972, %v955
        %v974 = vpop.permute.xlu0 %973
        %977 = vset.pattern.permute.xlu0 0
        %978 = vperm.xlu0 %977, %v956
        %v979 = vpop.permute.xlu0 %978
        %v981 = vmul.f32 %v957, %v964
        %v982 = vmul.f32 %v958, %v969
        %v983 = vmul.f32 %v959, %v974
        %v984 = vmul.f32 %v960, %v979
        %v985 = vpack.c.bf16 %v981, %v981
        %v986 = vpack.c.bf16 %v982, %v982
        %v987 = vpack.c.bf16 %v983, %v983
        %v988 = vpack.c.bf16 %v984, %v984
        %v989 = vld [vmem:[%s4] sm:$0xf]
        %v990 = vld [vmem:[%s4 + $0x4] sm:$0xf]
        %v991 = vld [vmem:[%s4 + $0x8] sm:$0xf]
        %v992 = vld [vmem:[%s4 + $0xc] sm:$0xf]
        %vm993 = vcmask 64512
        %v995 = vsel %vm993, %v985, 0
        %vm997 = vcmask 1043456
        %v999 = vsel %vm997, %v989, 0
        %1001 = vmatprep.subr.bf16.mxu0 0
        %1002 = vmatpush1.bf16.msra.mxu0 %v999
        %1003 = vmatprep.subr.bf16.mxu0 0
        %1004 = vmatpush1.bf16.msra.mxu0 0
        %1005 = vmatprep.subr.bf16.mxu0 0
        %1006 = vmatpush1.bf16.msra.mxu0 0
        %1007 = vmatprep.subr.bf16.mxu0 0
        %1008 = vmatpush1.bf16.msra.mxu0 0
        %1009 = vmatprep.subr.bf16.mxu0 0
        %1010 = vmatpush1.bf16.msra.mxu0 0
        %1011 = vmatprep.subr.bf16.mxu0 0
        %1012 = vmatpush1.bf16.msra.mxu0 0
        %1013 = vmatprep.subr.bf16.mxu0 0
        %1014 = vmatpush1.bf16.msra.mxu0 0
        %1015 = vmatprep.subr.bf16.mxu0 0
        %1016 = vmatpush1.bf16.msra.mxu0 0
        %1017 = vmatprep.subr.bf16.mxu0 0
        %1018 = vmatpush1.bf16.msra.mxu0 0
        %1019 = vmatprep.subr.bf16.mxu0 0
        %1020 = vmatpush1.bf16.msra.mxu0 0
        %1021 = vmatprep.subr.bf16.mxu0 0
        %1022 = vmatpush1.bf16.msra.mxu0 0
        %1023 = vmatprep.subr.bf16.mxu0 0
        %1024 = vmatpush1.bf16.msra.mxu0 0
        %1025 = vmatprep.subr.bf16.mxu0 0
        %1026 = vmatpush1.bf16.msra.mxu0 0
        %1027 = vmatprep.subr.bf16.mxu0 0
        %1028 = vmatpush1.bf16.msra.mxu0 0
        %1029 = vmatprep.subr.bf16.mxu0 0
        %1030 = vmatpush1.bf16.msra.mxu0 0
        %1031 = vmatprep.subr.bf16.mxu0 0
        %1032 = vmatpush1.bf16.msra.mxu0 0
        %1033 = vmatprep.mubr.bf16.mxu0 0
        %1034 = vmatmul.mubr.bf16.gmra.mrb[0].mxu0 %v995
        %v1035 = vpop.f32.mrb[0].mxu0
        %v1036 = vadd.f32 0.0, %v1035
        %v1037 = vpop.f32.mrb[0].mxu0
        %v1038 = vpop.f32.mrb[0].mxu0
        %v1039 = vpop.f32.mrb[0].mxu0
        %1040 = vdwg.mxu0
        %v1042 = vsel %vm993, %v986, 0
        %v1045 = vsel %vm997, %v990, 0
        %1047 = vmatprep.subr.bf16.mxu0 0
        %1048 = vmatpush1.bf16.msra.mxu0 %v1045
        %1049 = vmatprep.subr.bf16.mxu0 0
        %1050 = vmatpush1.bf16.msra.mxu0 0
        %1051 = vmatprep.subr.bf16.mxu0 0
        %1052 = vmatpush1.bf16.msra.mxu0 0
        %1053 = vmatprep.subr.bf16.mxu0 0
        %1054 = vmatpush1.bf16.msra.mxu0 0
        %1055 = vmatprep.subr.bf16.mxu0 0
        %1056 = vmatpush1.bf16.msra.mxu0 0
        %1057 = vmatprep.subr.bf16.mxu0 0
        %1058 = vmatpush1.bf16.msra.mxu0 0
        %1059 = vmatprep.subr.bf16.mxu0 0
        %1060 = vmatpush1.bf16.msra.mxu0 0
        %1061 = vmatprep.subr.bf16.mxu0 0
        %1062 = vmatpush1.bf16.msra.mxu0 0
        %1063 = vmatprep.subr.bf16.mxu0 0
        %1064 = vmatpush1.bf16.msra.mxu0 0
        %1065 = vmatprep.subr.bf16.mxu0 0
        %1066 = vmatpush1.bf16.msra.mxu0 0
        %1067 = vmatprep.subr.bf16.mxu0 0
        %1068 = vmatpush1.bf16.msra.mxu0 0
        %1069 = vmatprep.subr.bf16.mxu0 0
        %1070 = vmatpush1.bf16.msra.mxu0 0
        %1071 = vmatprep.subr.bf16.mxu0 0
        %1072 = vmatpush1.bf16.msra.mxu0 0
        %1073 = vmatprep.subr.bf16.mxu0 0
        %1074 = vmatpush1.bf16.msra.mxu0 0
        %1075 = vmatprep.subr.bf16.mxu0 0
        %1076 = vmatpush1.bf16.msra.mxu0 0
        %1077 = vmatprep.subr.bf16.mxu0 0
        %1078 = vmatpush1.bf16.msra.mxu0 0
        %1079 = vmatprep.mubr.bf16.mxu0 0
        %1080 = vmatmul.mubr.bf16.gmra.mrb[0].mxu0 %v1042
        %v1081 = vpop.f32.mrb[0].mxu0
        %v1082 = vadd.f32 0.0, %v1081
        %v1083 = vpop.f32.mrb[0].mxu0
        %v1084 = vpop.f32.mrb[0].mxu0
        %v1085 = vpop.f32.mrb[0].mxu0
        %1086 = vdwg.mxu0
        %v1088 = vsel %vm993, %v987, 0
        %v1091 = vsel %vm997, %v991, 0
        %1093 = vmatprep.subr.bf16.mxu0 0
        %1094 = vmatpush1.bf16.msra.mxu0 %v1091
        %1095 = vmatprep.subr.bf16.mxu0 0
        %1096 = vmatpush1.bf16.msra.mxu0 0
        %1097 = vmatprep.subr.bf16.mxu0 0
        %1098 = vmatpush1.bf16.msra.mxu0 0
        %1099 = vmatprep.subr.bf16.mxu0 0
        %1100 = vmatpush1.bf16.msra.mxu0 0
        %1101 = vmatprep.subr.bf16.mxu0 0
        %1102 = vmatpush1.bf16.msra.mxu0 0
        %1103 = vmatprep.subr.bf16.mxu0 0
        %1104 = vmatpush1.bf16.msra.mxu0 0
        %1105 = vmatprep.subr.bf16.mxu0 0
        %1106 = vmatpush1.bf16.msra.mxu0 0
        %1107 = vmatprep.subr.bf16.mxu0 0
        %1108 = vmatpush1.bf16.msra.mxu0 0
        %1109 = vmatprep.subr.bf16.mxu0 0
        %1110 = vmatpush1.bf16.msra.mxu0 0
        %1111 = vmatprep.subr.bf16.mxu0 0
        %1112 = vmatpush1.bf16.msra.mxu0 0
        %1113 = vmatprep.subr.bf16.mxu0 0
        %1114 = vmatpush1.bf16.msra.mxu0 0
        %1115 = vmatprep.subr.bf16.mxu0 0
        %1116 = vmatpush1.bf16.msra.mxu0 0
        %1117 = vmatprep.subr.bf16.mxu0 0
        %1118 = vmatpush1.bf16.msra.mxu0 0
        %1119 = vmatprep.subr.bf16.mxu0 0
        %1120 = vmatpush1.bf16.msra.mxu0 0
        %1121 = vmatprep.subr.bf16.mxu0 0
        %1122 = vmatpush1.bf16.msra.mxu0 0
        %1123 = vmatprep.subr.bf16.mxu0 0
        %1124 = vmatpush1.bf16.msra.mxu0 0
        %1125 = vmatprep.mubr.bf16.mxu0 0
        %1126 = vmatmul.mubr.bf16.gmra.mrb[0].mxu0 %v1088
        %v1127 = vpop.f32.mrb[0].mxu0
        %v1128 = vadd.f32 0.0, %v1127
        %v1129 = vpop.f32.mrb[0].mxu0
        %v1130 = vpop.f32.mrb[0].mxu0
        %v1131 = vpop.f32.mrb[0].mxu0
        %1132 = vdwg.mxu0
        %v1134 = vsel %vm993, %v988, 0
        %v1137 = vsel %vm997, %v992, 0
        %1139 = vmatprep.subr.bf16.mxu0 0
        %1140 = vmatpush1.bf16.msra.mxu0 %v1137
        %1141 = vmatprep.subr.bf16.mxu0 0
        %1142 = vmatpush1.bf16.msra.mxu0 0
        %1143 = vmatprep.subr.bf16.mxu0 0
        %1144 = vmatpush1.bf16.msra.mxu0 0
        %1145 = vmatprep.subr.bf16.mxu0 0
        %1146 = vmatpush1.bf16.msra.mxu0 0
        %1147 = vmatprep.subr.bf16.mxu0 0
        %1148 = vmatpush1.bf16.msra.mxu0 0
        %1149 = vmatprep.subr.bf16.mxu0 0
        %1150 = vmatpush1.bf16.msra.mxu0 0
        %1151 = vmatprep.subr.bf16.mxu0 0
        %1152 = vmatpush1.bf16.msra.mxu0 0
        %1153 = vmatprep.subr.bf16.mxu0 0
        %1154 = vmatpush1.bf16.msra.mxu0 0
        %1155 = vmatprep.subr.bf16.mxu0 0
        %1156 = vmatpush1.bf16.msra.mxu0 0
        %1157 = vmatprep.subr.bf16.mxu0 0
        %1158 = vmatpush1.bf16.msra.mxu0 0
        %1159 = vmatprep.subr.bf16.mxu0 0
        %1160 = vmatpush1.bf16.msra.mxu0 0
        %1161 = vmatprep.subr.bf16.mxu0 0
        %1162 = vmatpush1.bf16.msra.mxu0 0
        %1163 = vmatprep.subr.bf16.mxu0 0
        %1164 = vmatpush1.bf16.msra.mxu0 0
        %1165 = vmatprep.subr.bf16.mxu0 0
        %1166 = vmatpush1.bf16.msra.mxu0 0
        %1167 = vmatprep.subr.bf16.mxu0 0
        %1168 = vmatpush1.bf16.msra.mxu0 0
        %1169 = vmatprep.subr.bf16.mxu0 0
        %1170 = vmatpush1.bf16.msra.mxu0 0
        %1171 = vmatprep.mubr.bf16.mxu0 0
        %1172 = vmatmul.mubr.bf16.gmra.mrb[0].mxu0 %v1134
        %v1173 = vpop.f32.mrb[0].mxu0
        %v1174 = vadd.f32 0.0, %v1173
        %v1175 = vpop.f32.mrb[0].mxu0
        %v1176 = vpop.f32.mrb[0].mxu0
        %v1177 = vpop.f32.mrb[0].mxu0
        %1178 = vdwg.mxu0
        %vm1179 = vcmask 261120
        %v1180 = vsel %vm1179, %v1036, 0.0
        %v1181 = vsel %vm1179, %v1082, 0.0
        %v1182 = vadd.f32 %v1180, %v1181
        %v1183 = vsel %vm1179, %v1128, 0.0
        %v1184 = vadd.f32 %v1182, %v1183
        %v1185 = vsel %vm1179, %v1174, 0.0
        %v1186 = vadd.f32 %v1184, %v1185
        %v1187 = vld [vmem:[%s5] sm:$0x1]
        %v1189 = vlaneseq
        %v1190 = vshrl.u32 %v1189, 7
        %v1191 = vsub.s32 0, %v1190
        %v1192 = vrot.slane %v1187, %v1191
        %v1194 = vadd.f32 %v1186, %v1192
        %v1195 = vld [vmem:[%s346] sm:$0xf]
        %v1196 = vunpack.c.l.bf16 %v1195
        %v1197 = vadd.f32 %v1196, %v1194
        %v1198 = vpack.c.bf16 %v1197, %v1197
        %vm1199 = vcmask 257024
        %1200 = vst.msk [vmem:[%s377] sm:$0xf] %vm1199, %v1198
      $region56: #{_lambda_.8} parent=43 // pred_fallthru
        _
      %p1201 = scmp.lt.s32.totalorder %s22, 1
      %s1202 = scalar_select %p1201, %s22, 1
      %p1203 = scmp.lt.s32.totalorder %s23, 0
      %s1204 = scalar_select %p1203, %s23, 0
      %s1205 = sadd.s32 %s1204, %s1202
      %s1206 = smul.addr %s1205, 4
      %s1207 = scalar_lea.vmem %s6, %s1206
      // Predicated region
      $region57: #{_lambda_.8} parent=43 // pred_check
        %p1208 = pneg %p210
      $region58: #{_lambda_.8} parent=43 // pred_check_branch
        %1210 = sbr.rel (%p1208) target = $region60
      $region59: #{_lambda_.8} parent=43 // pred_region
        _
      $region60: #{_lambda_.8} parent=43 // pred_fallthru
        _
    $region44: #{_lambda_.8} parent=5 // pred_fallthru
      _
    %p1211 = scmp.le.s32.totalorder 2, %s12
    // Predicated region
    $region61: #{_lambda_.8} parent=5 // pred_check
      %p1212 = pneg %p1211
    $region62: #{_lambda_.8} parent=5 // pred_check_branch
      %1214 = sbr.rel (%p1212) target = $region64
    $region63: #{_lambda_.8} parent=5 // pred_region
      %s1215 = ssub.s32 %s12, 2
      // Predicated region
      $region65: #{_lambda_.8} parent=63 // pred_check
        %p1216 = pneg %p216
      $region66: #{_lambda_.8} parent=63 // pred_check_branch
        %1218 = sbr.rel (%p1216) target = $region68
      $region67: #{_lambda_.8} parent=63 // pred_region
        %p1219 = scmp.lt.s32.totalorder %s25, 1
        %s1220 = scalar_select %p1219, %s25, 1
        %p1221 = scmp.lt.s32.totalorder %s26, 0
        %s1222 = scalar_select %p1221, %s26, 0
        %s1223 = sadd.s32 %s1222, %s1220
        %s1224 = smul.addr %s1223, 4
        %s1225 = scalar_lea.vmem %s6, %s1224
      $region68: #{_lambda_.8} parent=63 // pred_fallthru
        _
    $region64: #{_lambda_.8} parent=5 // pred_fallthru
      _
  $region6: #{_lambda_.8} parent=0 // loop_footer
    %s16 = sadd.s32 1, %s12
  $region7: #{_lambda_.8} parent=0 // loop_footer_branch
    %11 = sbr.rel target = $region3
  $region8: #{_lambda_.8} parent=0 // loop_exit
    _

</llo_original>
